<compile_context>
chip_gen: v7x
topology: tpu7x:2x2x1
jax: 0.10.0
libtpu: 0.0.40
codegen_flags: <defaults>
</compile_context>

<pallas_src>
import functools

import jax
import jax.numpy as jnp
import numpy as np
from jax.experimental import pallas as pl
from jax.experimental.pallas import tpu as pltpu


def _lstm_kernel(xw0_ref,          # (T, Bp, 4Hp) f32  (x @ Wih0 + b0, i/f/o pre-scaled by 0.5)
                 whh0_ref,         # (Hp, 4Hp)    bf16 (i/f/o columns pre-scaled by 0.5)
                 wih1_ref,         # (Hp, 4Hp)    bf16 (i/f/o columns pre-scaled by 0.5)
                 whh1_ref,         # (Hp, 4Hp)    bf16 (i/f/o columns pre-scaled by 0.5)
                 b1_ref,           # (1, 4Hp)     f32  (i/f/o entries pre-scaled by 0.5)
                 wfc_ref,          # (Hp, O)      bf16
                 bfc_ref,          # (1, O)       f32
                 out_ref,          # (Bp, O)      f32
                 *, T, Bp, Hp):
    bf16 = jnp.bfloat16

    # Weights loaded once; b1 broadcast hoisted out of the time loop.
    whh0 = whh0_ref[...]
    wih1 = wih1_ref[...]
    whh1 = whh1_ref[...]
    b1b = jnp.broadcast_to(b1_ref[...], (Bp, 4 * Hp))

    def cell(pre, c):
        # Gate order (i, f, o, g).  i/f/o pre-activations arrive already
        # halved, so a single tanh over the whole 4*Hp slab gives
        #   sigmoid(x) = 0.5 * tanh(0.5 * x) + 0.5   (exact power-of-2 scaling)
        # for i/f/o and tanh(x) for g -> one EUP push per cell.
        t_all = jnp.tanh(pre)
        sig = 0.5 * t_all[:, :3 * Hp] + 0.5          # one VPU fma over 3*Hp lanes
        i = sig[:, 0 * Hp:1 * Hp]                    # whole-vreg, lane-aligned slices
        f = sig[:, 1 * Hp:2 * Hp]
        o = sig[:, 2 * Hp:3 * Hp]
        g = t_all[:, 3 * Hp:4 * Hp]
        c_new = f * c + i * g
        h_new = o * jnp.tanh(c_new)
        return h_new, c_new

    def step(t, state):
        h0, c0, h1, c1 = state
        # Layer 0: input part precomputed in the wrapper; only the recurrent
        # h0 @ Whh0 matmul sits on the serial critical path.
        pre0 = xw0_ref[t] + jnp.dot(h0.astype(bf16), whh0,
                                    preferred_element_type=jnp.float32)
        h0, c0 = cell(pre0, c0)
        # Layer 1: two independent K=Hp matmuls (no per-step lane concat).
        pre1 = (jnp.dot(h0.astype(bf16), wih1, preferred_element_type=jnp.float32)
                + jnp.dot(h1.astype(bf16), whh1, preferred_element_type=jnp.float32)
                + b1b)
        h1, c1 = cell(pre1, c1)
        return (h0, c0, h1, c1)

    z = jnp.zeros((Bp, Hp), jnp.float32)
    state = (z, z, z, z)
    if T <= 16:
        # Small static trip count: full unroll, state carried in vregs.
        for t in range(T):
            state = step(t, state)
    else:
        # Long sequences: bound vreg live ranges / code size.
        state = jax.lax.fori_loop(0, T, step, state, unroll=2)
    _, _, h1, _ = state

    # fc on the last timestep's top-layer hidden state.
    out_ref[...] = (jnp.dot(h1.astype(bf16), wfc_ref[...],
                            preferred_element_type=jnp.float32)
                    + bfc_ref[...])


def lstm_stock_predictor_forward(x, params):
    """x: [B, T, D] float32 (batch_first, as in PyTorch). Returns [B, output_dim]."""
    B, T, D = x.shape
    H = params["whh0"].shape[0]
    O = params["wfc"].shape[1]
    Hp = max(128, ((H + 127) // 128) * 128)   # lane-aligned hidden dim
    Bp = max(8, ((B + 7) // 8) * 8)           # sublane-aligned batch
    bf16 = jnp.bfloat16

    def pad_gates(w):
        # (in, 4H) in PyTorch order (i,f,g,o) -> (in, 4Hp) in order (i,f,o,g),
        # each gate block zero-padded to Hp lanes; i/f/o blocks pre-scaled by
        # 0.5 (exact) so sigmoid can be computed as 0.5*tanh(0.5*x)+0.5 with a
        # single tanh over the whole slab in the kernel.
        i, f, g, o = (w[:, k * H:(k + 1) * H] for k in range(4))
        pad = lambda b: jnp.pad(b, ((0, 0), (0, Hp - H)))
        return jnp.concatenate([0.5 * pad(i), 0.5 * pad(f), 0.5 * pad(o), pad(g)],
                               axis=1)

    def pad_rows(w):
        return jnp.pad(w, ((0, Hp - H), (0, 0)))

    # Padded / reordered / pre-scaled weights (biases stay f32).
    wih0 = pad_gates(params["wih0"])                            # (D, 4Hp) f32
    b0 = pad_gates(params["b0"])                                # (1, 4Hp) f32
    whh0 = pad_rows(pad_gates(params["whh0"])).astype(bf16)     # (Hp, 4Hp)
    wih1 = pad_rows(pad_gates(params["wih1"])).astype(bf16)     # (Hp, 4Hp)
    whh1 = pad_rows(pad_gates(params["whh1"])).astype(bf16)     # (Hp, 4Hp)
    b1 = pad_gates(params["b1"])                                # (1, 4Hp) f32
    wfc = pad_rows(params["wfc"]).astype(bf16)                  # (Hp, O)
    bfc = params["bfc"]                                         # (1, O)  f32

    # Hoisted layer-0 input projection done by XLA in the wrapper (one batched
    # matmul over all timesteps, off the recurrence).  bf16 operands / f32
    # accumulation to match the in-kernel matmul numerics.  Batch rows padded
    # to 8 sublanes so every per-step read in the kernel is a whole tile.
    xt = jnp.transpose(x, (1, 0, 2)).astype(bf16)               # (T, B, D)
    xw0 = jnp.einsum("tbd,dh->tbh", xt, wih0.astype(bf16),
                     preferred_element_type=jnp.float32) + b0   # (T, B, 4Hp) f32
    xw0 = jnp.pad(xw0, ((0, 0), (0, Bp - B), (0, 0)))           # (T, Bp, 4Hp)

    vmem = pl.BlockSpec(memory_space=pltpu.MemorySpace.VMEM)
    kernel = functools.partial(_lstm_kernel, T=T, Bp=Bp, Hp=Hp)
    out = pl.pallas_call(
        kernel,
        out_shape=jax.ShapeDtypeStruct((Bp, O), jnp.float32),
        in_specs=[vmem] * 7,
        out_specs=vmem,
    )(xw0, whh0, wih1, whh1, b1, wfc, bfc)
    return out[:B]


def make_params(key, input_dim, hidden_dim, output_dim):
    """Deterministic init mirroring PyTorch shapes (weights stored transposed)."""
    H = hidden_dim
    k = 1.0 / np.sqrt(H)
    keys = jax.random.split(key, 10)

    def u(k_, shape):
        return jax.random.uniform(k_, shape, jnp.float32, minval=-k, maxval=k)

    wih0 = u(keys[0], (input_dim, 4 * H))      # = weight_ih_l0.T
    whh0 = u(keys[1], (H, 4 * H))              # = weight_hh_l0.T
    b0 = u(keys[2], (1, 4 * H)) + u(keys[3], (1, 4 * H))   # bias_ih + bias_hh
    wih1 = u(keys[4], (H, 4 * H))
    whh1 = u(keys[5], (H, 4 * H))
    b1 = u(keys[6], (1, 4 * H)) + u(keys[7], (1, 4 * H))
    wfc = u(keys[8], (H, output_dim))
    bfc = u(keys[9], (1, output_dim))
    return dict(wih0=wih0, whh0=whh0, b0=b0,
                wih1=wih1, whh1=whh1, b1=b1,
                wfc=wfc, bfc=bfc)


def reference_forward(x, params, matmul_dtype=jnp.float32):
    """Pure-JAX reference of the PyTorch forward pass.

    matmul_dtype=jnp.bfloat16 mirrors the kernel's bf16-operand / f32-accum
    matmuls; matmul_dtype=jnp.float32 is plain f32 (PyTorch) semantics.
    """
    B, T, D = x.shape
    H = params["whh0"].shape[0]
    md = matmul_dtype

    def dot(a, b):
        return jnp.dot(a.astype(md), b.astype(md),
                       preferred_element_type=jnp.float32)

    def cell(x_t, h, c, w_ih, w_hh, b):
        gates = dot(x_t, w_ih) + dot(h, w_hh) + b
        i = jax.nn.sigmoid(gates[:, 0 * H:1 * H])
        f = jax.nn.sigmoid(gates[:, 1 * H:2 * H])
        g = jnp.tanh(gates[:, 2 * H:3 * H])
        o = jax.nn.sigmoid(gates[:, 3 * H:4 * H])
        c_new = f * c + i * g
        return o * jnp.tanh(c_new), c_new

    h0 = c0 = jnp.zeros((B, H), jnp.float32)
    h1 = c1 = jnp.zeros((B, H), jnp.float32)
    for t in range(T):
        h0, c0 = cell(x[:, t, :], h0, c0,
                      params["wih0"], params["whh0"], params["b0"])
        h1, c1 = cell(h0, h1, c1,
                      params["wih1"], params["whh1"], params["b1"])
    return dot(h1, params["wfc"]) + params["bfc"]


if __name__ == "__main__":
    # Small shapes consistent with the module: num_layers=2, hidden_dim=64, output_dim=1.
    batch, seq_len, input_dim = 2, 8, 8
    hidden_dim, output_dim = 64, 1

    key = jax.random.PRNGKey(0)
    k_x, k_p = jax.random.split(key)
    x = jax.random.normal(k_x, (batch, seq_len, input_dim), jnp.float32)
    params = make_params(k_p, input_dim, hidden_dim, output_dim)

    out = lstm_stock_predictor_forward(x, params)
    out = jax.block_until_ready(out)
    assert out.shape == (batch, output_dim)

    # Tight check against a reference using the same bf16-operand / f32-accum
    # matmul numerics as the kernel (sigmoid-vs-tanh formulation differs only
    # by transcendental rounding).
    ref_matched = reference_forward(x, params, matmul_dtype=jnp.bfloat16)
    np.testing.assert_allclose(np.asarray(out), np.asarray(ref_matched),
                               rtol=1e-3, atol=1e-3)

    # Loose check against plain f32 (PyTorch-semantics) reference — the only
    # deviation is the deliberate bf16 MXU-operand optimization.
    ref_f32 = reference_forward(x, params, matmul_dtype=jnp.float32)
    np.testing.assert_allclose(np.asarray(out), np.asarray(ref_f32),
                               rtol=5e-2, atol=5e-2)

    print("KERNEL_OK")
</pallas_src>

<mosaic_0001>
module attributes {stable_mosaic.version = 11 : i64} {
  func.func @_lstm_kernel(%arg0: memref<8x8x512xf32, #tpu.memory_space<vmem>>, %arg1: memref<128x512xbf16, #tpu.memory_space<vmem>>, %arg2: memref<128x512xbf16, #tpu.memory_space<vmem>>, %arg3: memref<128x512xbf16, #tpu.memory_space<vmem>>, %arg4: memref<1x512xf32, #tpu.memory_space<vmem>>, %arg5: memref<128x1xbf16, #tpu.memory_space<vmem>>, %arg6: memref<1x1xf32, #tpu.memory_space<vmem>>, %arg7: memref<8x1xf32, #tpu.memory_space<vmem>>) attributes {dimension_semantics = [], scalar_prefetch = 0 : i64, scratch_operands = 0 : i64, tpu.core_type = #tpu.core_type<tc>} {
    %c0 = arith.constant 0 : index
    %c0_0 = arith.constant 0 : index
    %0 = vector.load %arg1[%c0, %c0_0] : memref<128x512xbf16, #tpu.memory_space<vmem>>, vector<128x512xbf16>
    %c0_1 = arith.constant 0 : index
    %c0_2 = arith.constant 0 : index
    %1 = vector.load %arg2[%c0_1, %c0_2] : memref<128x512xbf16, #tpu.memory_space<vmem>>, vector<128x512xbf16>
    %c0_3 = arith.constant 0 : index
    %c0_4 = arith.constant 0 : index
    %2 = vector.load %arg3[%c0_3, %c0_4] : memref<128x512xbf16, #tpu.memory_space<vmem>>, vector<128x512xbf16>
    %c0_5 = arith.constant 0 : index
    %c0_6 = arith.constant 0 : index
    %3 = vector.load %arg4[%c0_5, %c0_6] : memref<1x512xf32, #tpu.memory_space<vmem>>, vector<1x512xf32>
    %4 = vector.shape_cast %3 : vector<1x512xf32> to vector<1x512xf32>
    %5 = vector.broadcast %4 : vector<1x512xf32> to vector<8x512xf32>
    %cst = arith.constant 0.000000e+00 : f32
    %6 = vector.broadcast %cst : f32 to vector<8x128xf32>
    %c0_7 = arith.constant 0 : index
    %c0_8 = arith.constant 0 : index
    %c0_9 = arith.constant 0 : index
    %7 = vector.load %arg0[%c0_7, %c0_8, %c0_9] : memref<8x8x512xf32, #tpu.memory_space<vmem>>, vector<1x8x512xf32>
    %8 = vector.shape_cast %7 : vector<1x8x512xf32> to vector<8x512xf32>
    %9 = arith.truncf %6 : vector<8x128xf32> to vector<8x128xbf16>
    %cst_10 = arith.constant dense<0.000000e+00> : vector<8x512xf32>
    %10 = tpu.matmul %9, %0, %cst_10 {dimension_numbers = #tpu.dot_dimension_numbers<[1], [0], [0], [1], [0, 0, 1, 1], [], []>} : vector<8x128xbf16>, vector<128x512xbf16>, vector<8x512xf32> -> vector<8x512xf32>
    %11 = arith.addf %8, %10 : vector<8x512xf32>
    %12 = math.tanh %11 : vector<8x512xf32>
    %13 = vector.extract_strided_slice %12 {offsets = [0, 0], sizes = [8, 384], strides = [1, 1]} : vector<8x512xf32> to vector<8x384xf32>
    %cst_11 = arith.constant 5.000000e-01 : f32
    %14 = vector.broadcast %cst_11 : f32 to vector<8x384xf32>
    %15 = arith.mulf %14, %13 : vector<8x384xf32>
    %cst_12 = arith.constant 5.000000e-01 : f32
    %16 = vector.broadcast %cst_12 : f32 to vector<8x384xf32>
    %17 = arith.addf %15, %16 : vector<8x384xf32>
    %18 = vector.extract_strided_slice %17 {offsets = [0, 0], sizes = [8, 128], strides = [1, 1]} : vector<8x384xf32> to vector<8x128xf32>
    %19 = vector.extract_strided_slice %17 {offsets = [0, 128], sizes = [8, 128], strides = [1, 1]} : vector<8x384xf32> to vector<8x128xf32>
    %20 = vector.extract_strided_slice %17 {offsets = [0, 256], sizes = [8, 128], strides = [1, 1]} : vector<8x384xf32> to vector<8x128xf32>
    %21 = vector.extract_strided_slice %12 {offsets = [0, 384], sizes = [8, 128], strides = [1, 1]} : vector<8x512xf32> to vector<8x128xf32>
    %22 = arith.mulf %19, %6 : vector<8x128xf32>
    %23 = arith.mulf %18, %21 : vector<8x128xf32>
    %24 = arith.addf %22, %23 : vector<8x128xf32>
    %25 = math.tanh %24 : vector<8x128xf32>
    %26 = arith.mulf %20, %25 : vector<8x128xf32>
    %27 = arith.truncf %26 : vector<8x128xf32> to vector<8x128xbf16>
    %cst_13 = arith.constant dense<0.000000e+00> : vector<8x512xf32>
    %28 = tpu.matmul %27, %1, %cst_13 {dimension_numbers = #tpu.dot_dimension_numbers<[1], [0], [0], [1], [0, 0, 1, 1], [], []>} : vector<8x128xbf16>, vector<128x512xbf16>, vector<8x512xf32> -> vector<8x512xf32>
    %29 = arith.truncf %6 : vector<8x128xf32> to vector<8x128xbf16>
    %cst_14 = arith.constant dense<0.000000e+00> : vector<8x512xf32>
    %30 = tpu.matmul %29, %2, %cst_14 {dimension_numbers = #tpu.dot_dimension_numbers<[1], [0], [0], [1], [0, 0, 1, 1], [], []>} : vector<8x128xbf16>, vector<128x512xbf16>, vector<8x512xf32> -> vector<8x512xf32>
    %31 = arith.addf %28, %30 : vector<8x512xf32>
    %32 = arith.addf %31, %5 : vector<8x512xf32>
    %33 = math.tanh %32 : vector<8x512xf32>
    %34 = vector.extract_strided_slice %33 {offsets = [0, 0], sizes = [8, 384], strides = [1, 1]} : vector<8x512xf32> to vector<8x384xf32>
    %cst_15 = arith.constant 5.000000e-01 : f32
    %35 = vector.broadcast %cst_15 : f32 to vector<8x384xf32>
    %36 = arith.mulf %35, %34 : vector<8x384xf32>
    %cst_16 = arith.constant 5.000000e-01 : f32
    %37 = vector.broadcast %cst_16 : f32 to vector<8x384xf32>
    %38 = arith.addf %36, %37 : vector<8x384xf32>
    %39 = vector.extract_strided_slice %38 {offsets = [0, 0], sizes = [8, 128], strides = [1, 1]} : vector<8x384xf32> to vector<8x128xf32>
    %40 = vector.extract_strided_slice %38 {offsets = [0, 128], sizes = [8, 128], strides = [1, 1]} : vector<8x384xf32> to vector<8x128xf32>
    %41 = vector.extract_strided_slice %38 {offsets = [0, 256], sizes = [8, 128], strides = [1, 1]} : vector<8x384xf32> to vector<8x128xf32>
    %42 = vector.extract_strided_slice %33 {offsets = [0, 384], sizes = [8, 128], strides = [1, 1]} : vector<8x512xf32> to vector<8x128xf32>
    %43 = arith.mulf %40, %6 : vector<8x128xf32>
    %44 = arith.mulf %39, %42 : vector<8x128xf32>
    %45 = arith.addf %43, %44 : vector<8x128xf32>
    %46 = math.tanh %45 : vector<8x128xf32>
    %47 = arith.mulf %41, %46 : vector<8x128xf32>
    %c1 = arith.constant 1 : index
    %c0_17 = arith.constant 0 : index
    %c0_18 = arith.constant 0 : index
    %48 = vector.load %arg0[%c1, %c0_17, %c0_18] : memref<8x8x512xf32, #tpu.memory_space<vmem>>, vector<1x8x512xf32>
    %49 = vector.shape_cast %48 : vector<1x8x512xf32> to vector<8x512xf32>
    %50 = arith.truncf %26 : vector<8x128xf32> to vector<8x128xbf16>
    %cst_19 = arith.constant dense<0.000000e+00> : vector<8x512xf32>
    %51 = tpu.matmul %50, %0, %cst_19 {dimension_numbers = #tpu.dot_dimension_numbers<[1], [0], [0], [1], [0, 0, 1, 1], [], []>} : vector<8x128xbf16>, vector<128x512xbf16>, vector<8x512xf32> -> vector<8x512xf32>
    %52 = arith.addf %49, %51 : vector<8x512xf32>
    %53 = math.tanh %52 : vector<8x512xf32>
    %54 = vector.extract_strided_slice %53 {offsets = [0, 0], sizes = [8, 384], strides = [1, 1]} : vector<8x512xf32> to vector<8x384xf32>
    %cst_20 = arith.constant 5.000000e-01 : f32
    %55 = vector.broadcast %cst_20 : f32 to vector<8x384xf32>
    %56 = arith.mulf %55, %54 : vector<8x384xf32>
    %cst_21 = arith.constant 5.000000e-01 : f32
    %57 = vector.broadcast %cst_21 : f32 to vector<8x384xf32>
    %58 = arith.addf %56, %57 : vector<8x384xf32>
    %59 = vector.extract_strided_slice %58 {offsets = [0, 0], sizes = [8, 128], strides = [1, 1]} : vector<8x384xf32> to vector<8x128xf32>
    %60 = vector.extract_strided_slice %58 {offsets = [0, 128], sizes = [8, 128], strides = [1, 1]} : vector<8x384xf32> to vector<8x128xf32>
    %61 = vector.extract_strided_slice %58 {offsets = [0, 256], sizes = [8, 128], strides = [1, 1]} : vector<8x384xf32> to vector<8x128xf32>
    %62 = vector.extract_strided_slice %53 {offsets = [0, 384], sizes = [8, 128], strides = [1, 1]} : vector<8x512xf32> to vector<8x128xf32>
    %63 = arith.mulf %60, %24 : vector<8x128xf32>
    %64 = arith.mulf %59, %62 : vector<8x128xf32>
    %65 = arith.addf %63, %64 : vector<8x128xf32>
    %66 = math.tanh %65 : vector<8x128xf32>
    %67 = arith.mulf %61, %66 : vector<8x128xf32>
    %68 = arith.truncf %67 : vector<8x128xf32> to vector<8x128xbf16>
    %cst_22 = arith.constant dense<0.000000e+00> : vector<8x512xf32>
    %69 = tpu.matmul %68, %1, %cst_22 {dimension_numbers = #tpu.dot_dimension_numbers<[1], [0], [0], [1], [0, 0, 1, 1], [], []>} : vector<8x128xbf16>, vector<128x512xbf16>, vector<8x512xf32> -> vector<8x512xf32>
    %70 = arith.truncf %47 : vector<8x128xf32> to vector<8x128xbf16>
    %cst_23 = arith.constant dense<0.000000e+00> : vector<8x512xf32>
    %71 = tpu.matmul %70, %2, %cst_23 {dimension_numbers = #tpu.dot_dimension_numbers<[1], [0], [0], [1], [0, 0, 1, 1], [], []>} : vector<8x128xbf16>, vector<128x512xbf16>, vector<8x512xf32> -> vector<8x512xf32>
    %72 = arith.addf %69, %71 : vector<8x512xf32>
    %73 = arith.addf %72, %5 : vector<8x512xf32>
    %74 = math.tanh %73 : vector<8x512xf32>
    %75 = vector.extract_strided_slice %74 {offsets = [0, 0], sizes = [8, 384], strides = [1, 1]} : vector<8x512xf32> to vector<8x384xf32>
    %cst_24 = arith.constant 5.000000e-01 : f32
    %76 = vector.broadcast %cst_24 : f32 to vector<8x384xf32>
    %77 = arith.mulf %76, %75 : vector<8x384xf32>
    %cst_25 = arith.constant 5.000000e-01 : f32
    %78 = vector.broadcast %cst_25 : f32 to vector<8x384xf32>
    %79 = arith.addf %77, %78 : vector<8x384xf32>
    %80 = vector.extract_strided_slice %79 {offsets = [0, 0], sizes = [8, 128], strides = [1, 1]} : vector<8x384xf32> to vector<8x128xf32>
    %81 = vector.extract_strided_slice %79 {offsets = [0, 128], sizes = [8, 128], strides = [1, 1]} : vector<8x384xf32> to vector<8x128xf32>
    %82 = vector.extract_strided_slice %79 {offsets = [0, 256], sizes = [8, 128], strides = [1, 1]} : vector<8x384xf32> to vector<8x128xf32>
    %83 = vector.extract_strided_slice %74 {offsets = [0, 384], sizes = [8, 128], strides = [1, 1]} : vector<8x512xf32> to vector<8x128xf32>
    %84 = arith.mulf %81, %45 : vector<8x128xf32>
    %85 = arith.mulf %80, %83 : vector<8x128xf32>
    %86 = arith.addf %84, %85 : vector<8x128xf32>
    %87 = math.tanh %86 : vector<8x128xf32>
    %88 = arith.mulf %82, %87 : vector<8x128xf32>
    %c2 = arith.constant 2 : index
    %c0_26 = arith.constant 0 : index
    %c0_27 = arith.constant 0 : index
    %89 = vector.load %arg0[%c2, %c0_26, %c0_27] : memref<8x8x512xf32, #tpu.memory_space<vmem>>, vector<1x8x512xf32>
    %90 = vector.shape_cast %89 : vector<1x8x512xf32> to vector<8x512xf32>
    %91 = arith.truncf %67 : vector<8x128xf32> to vector<8x128xbf16>
    %cst_28 = arith.constant dense<0.000000e+00> : vector<8x512xf32>
    %92 = tpu.matmul %91, %0, %cst_28 {dimension_numbers = #tpu.dot_dimension_numbers<[1], [0], [0], [1], [0, 0, 1, 1], [], []>} : vector<8x128xbf16>, vector<128x512xbf16>, vector<8x512xf32> -> vector<8x512xf32>
    %93 = arith.addf %90, %92 : vector<8x512xf32>
    %94 = math.tanh %93 : vector<8x512xf32>
    %95 = vector.extract_strided_slice %94 {offsets = [0, 0], sizes = [8, 384], strides = [1, 1]} : vector<8x512xf32> to vector<8x384xf32>
    %cst_29 = arith.constant 5.000000e-01 : f32
    %96 = vector.broadcast %cst_29 : f32 to vector<8x384xf32>
    %97 = arith.mulf %96, %95 : vector<8x384xf32>
    %cst_30 = arith.constant 5.000000e-01 : f32
    %98 = vector.broadcast %cst_30 : f32 to vector<8x384xf32>
    %99 = arith.addf %97, %98 : vector<8x384xf32>
    %100 = vector.extract_strided_slice %99 {offsets = [0, 0], sizes = [8, 128], strides = [1, 1]} : vector<8x384xf32> to vector<8x128xf32>
    %101 = vector.extract_strided_slice %99 {offsets = [0, 128], sizes = [8, 128], strides = [1, 1]} : vector<8x384xf32> to vector<8x128xf32>
    %102 = vector.extract_strided_slice %99 {offsets = [0, 256], sizes = [8, 128], strides = [1, 1]} : vector<8x384xf32> to vector<8x128xf32>
    %103 = vector.extract_strided_slice %94 {offsets = [0, 384], sizes = [8, 128], strides = [1, 1]} : vector<8x512xf32> to vector<8x128xf32>
    %104 = arith.mulf %101, %65 : vector<8x128xf32>
    %105 = arith.mulf %100, %103 : vector<8x128xf32>
    %106 = arith.addf %104, %105 : vector<8x128xf32>
    %107 = math.tanh %106 : vector<8x128xf32>
    %108 = arith.mulf %102, %107 : vector<8x128xf32>
    %109 = arith.truncf %108 : vector<8x128xf32> to vector<8x128xbf16>
    %cst_31 = arith.constant dense<0.000000e+00> : vector<8x512xf32>
    %110 = tpu.matmul %109, %1, %cst_31 {dimension_numbers = #tpu.dot_dimension_numbers<[1], [0], [0], [1], [0, 0, 1, 1], [], []>} : vector<8x128xbf16>, vector<128x512xbf16>, vector<8x512xf32> -> vector<8x512xf32>
    %111 = arith.truncf %88 : vector<8x128xf32> to vector<8x128xbf16>
    %cst_32 = arith.constant dense<0.000000e+00> : vector<8x512xf32>
    %112 = tpu.matmul %111, %2, %cst_32 {dimension_numbers = #tpu.dot_dimension_numbers<[1], [0], [0], [1], [0, 0, 1, 1], [], []>} : vector<8x128xbf16>, vector<128x512xbf16>, vector<8x512xf32> -> vector<8x512xf32>
    %113 = arith.addf %110, %112 : vector<8x512xf32>
    %114 = arith.addf %113, %5 : vector<8x512xf32>
    %115 = math.tanh %114 : vector<8x512xf32>
    %116 = vector.extract_strided_slice %115 {offsets = [0, 0], sizes = [8, 384], strides = [1, 1]} : vector<8x512xf32> to vector<8x384xf32>
    %cst_33 = arith.constant 5.000000e-01 : f32
    %117 = vector.broadcast %cst_33 : f32 to vector<8x384xf32>
    %118 = arith.mulf %117, %116 : vector<8x384xf32>
    %cst_34 = arith.constant 5.000000e-01 : f32
    %119 = vector.broadcast %cst_34 : f32 to vector<8x384xf32>
    %120 = arith.addf %118, %119 : vector<8x384xf32>
    %121 = vector.extract_strided_slice %120 {offsets = [0, 0], sizes = [8, 128], strides = [1, 1]} : vector<8x384xf32> to vector<8x128xf32>
    %122 = vector.extract_strided_slice %120 {offsets = [0, 128], sizes = [8, 128], strides = [1, 1]} : vector<8x384xf32> to vector<8x128xf32>
    %123 = vector.extract_strided_slice %120 {offsets = [0, 256], sizes = [8, 128], strides = [1, 1]} : vector<8x384xf32> to vector<8x128xf32>
    %124 = vector.extract_strided_slice %115 {offsets = [0, 384], sizes = [8, 128], strides = [1, 1]} : vector<8x512xf32> to vector<8x128xf32>
    %125 = arith.mulf %122, %86 : vector<8x128xf32>
    %126 = arith.mulf %121, %124 : vector<8x128xf32>
    %127 = arith.addf %125, %126 : vector<8x128xf32>
    %128 = math.tanh %127 : vector<8x128xf32>
    %129 = arith.mulf %123, %128 : vector<8x128xf32>
    %c3 = arith.constant 3 : index
    %c0_35 = arith.constant 0 : index
    %c0_36 = arith.constant 0 : index
    %130 = vector.load %arg0[%c3, %c0_35, %c0_36] : memref<8x8x512xf32, #tpu.memory_space<vmem>>, vector<1x8x512xf32>
    %131 = vector.shape_cast %130 : vector<1x8x512xf32> to vector<8x512xf32>
    %132 = arith.truncf %108 : vector<8x128xf32> to vector<8x128xbf16>
    %cst_37 = arith.constant dense<0.000000e+00> : vector<8x512xf32>
    %133 = tpu.matmul %132, %0, %cst_37 {dimension_numbers = #tpu.dot_dimension_numbers<[1], [0], [0], [1], [0, 0, 1, 1], [], []>} : vector<8x128xbf16>, vector<128x512xbf16>, vector<8x512xf32> -> vector<8x512xf32>
    %134 = arith.addf %131, %133 : vector<8x512xf32>
    %135 = math.tanh %134 : vector<8x512xf32>
    %136 = vector.extract_strided_slice %135 {offsets = [0, 0], sizes = [8, 384], strides = [1, 1]} : vector<8x512xf32> to vector<8x384xf32>
    %cst_38 = arith.constant 5.000000e-01 : f32
    %137 = vector.broadcast %cst_38 : f32 to vector<8x384xf32>
    %138 = arith.mulf %137, %136 : vector<8x384xf32>
    %cst_39 = arith.constant 5.000000e-01 : f32
    %139 = vector.broadcast %cst_39 : f32 to vector<8x384xf32>
    %140 = arith.addf %138, %139 : vector<8x384xf32>
    %141 = vector.extract_strided_slice %140 {offsets = [0, 0], sizes = [8, 128], strides = [1, 1]} : vector<8x384xf32> to vector<8x128xf32>
    %142 = vector.extract_strided_slice %140 {offsets = [0, 128], sizes = [8, 128], strides = [1, 1]} : vector<8x384xf32> to vector<8x128xf32>
    %143 = vector.extract_strided_slice %140 {offsets = [0, 256], sizes = [8, 128], strides = [1, 1]} : vector<8x384xf32> to vector<8x128xf32>
    %144 = vector.extract_strided_slice %135 {offsets = [0, 384], sizes = [8, 128], strides = [1, 1]} : vector<8x512xf32> to vector<8x128xf32>
    %145 = arith.mulf %142, %106 : vector<8x128xf32>
    %146 = arith.mulf %141, %144 : vector<8x128xf32>
    %147 = arith.addf %145, %146 : vector<8x128xf32>
    %148 = math.tanh %147 : vector<8x128xf32>
    %149 = arith.mulf %143, %148 : vector<8x128xf32>
    %150 = arith.truncf %149 : vector<8x128xf32> to vector<8x128xbf16>
    %cst_40 = arith.constant dense<0.000000e+00> : vector<8x512xf32>
    %151 = tpu.matmul %150, %1, %cst_40 {dimension_numbers = #tpu.dot_dimension_numbers<[1], [0], [0], [1], [0, 0, 1, 1], [], []>} : vector<8x128xbf16>, vector<128x512xbf16>, vector<8x512xf32> -> vector<8x512xf32>
    %152 = arith.truncf %129 : vector<8x128xf32> to vector<8x128xbf16>
    %cst_41 = arith.constant dense<0.000000e+00> : vector<8x512xf32>
    %153 = tpu.matmul %152, %2, %cst_41 {dimension_numbers = #tpu.dot_dimension_numbers<[1], [0], [0], [1], [0, 0, 1, 1], [], []>} : vector<8x128xbf16>, vector<128x512xbf16>, vector<8x512xf32> -> vector<8x512xf32>
    %154 = arith.addf %151, %153 : vector<8x512xf32>
    %155 = arith.addf %154, %5 : vector<8x512xf32>
    %156 = math.tanh %155 : vector<8x512xf32>
    %157 = vector.extract_strided_slice %156 {offsets = [0, 0], sizes = [8, 384], strides = [1, 1]} : vector<8x512xf32> to vector<8x384xf32>
    %cst_42 = arith.constant 5.000000e-01 : f32
    %158 = vector.broadcast %cst_42 : f32 to vector<8x384xf32>
    %159 = arith.mulf %158, %157 : vector<8x384xf32>
    %cst_43 = arith.constant 5.000000e-01 : f32
    %160 = vector.broadcast %cst_43 : f32 to vector<8x384xf32>
    %161 = arith.addf %159, %160 : vector<8x384xf32>
    %162 = vector.extract_strided_slice %161 {offsets = [0, 0], sizes = [8, 128], strides = [1, 1]} : vector<8x384xf32> to vector<8x128xf32>
    %163 = vector.extract_strided_slice %161 {offsets = [0, 128], sizes = [8, 128], strides = [1, 1]} : vector<8x384xf32> to vector<8x128xf32>
    %164 = vector.extract_strided_slice %161 {offsets = [0, 256], sizes = [8, 128], strides = [1, 1]} : vector<8x384xf32> to vector<8x128xf32>
    %165 = vector.extract_strided_slice %156 {offsets = [0, 384], sizes = [8, 128], strides = [1, 1]} : vector<8x512xf32> to vector<8x128xf32>
    %166 = arith.mulf %163, %127 : vector<8x128xf32>
    %167 = arith.mulf %162, %165 : vector<8x128xf32>
    %168 = arith.addf %166, %167 : vector<8x128xf32>
    %169 = math.tanh %168 : vector<8x128xf32>
    %170 = arith.mulf %164, %169 : vector<8x128xf32>
    %c4 = arith.constant 4 : index
    %c0_44 = arith.constant 0 : index
    %c0_45 = arith.constant 0 : index
    %171 = vector.load %arg0[%c4, %c0_44, %c0_45] : memref<8x8x512xf32, #tpu.memory_space<vmem>>, vector<1x8x512xf32>
    %172 = vector.shape_cast %171 : vector<1x8x512xf32> to vector<8x512xf32>
    %173 = arith.truncf %149 : vector<8x128xf32> to vector<8x128xbf16>
    %cst_46 = arith.constant dense<0.000000e+00> : vector<8x512xf32>
    %174 = tpu.matmul %173, %0, %cst_46 {dimension_numbers = #tpu.dot_dimension_numbers<[1], [0], [0], [1], [0, 0, 1, 1], [], []>} : vector<8x128xbf16>, vector<128x512xbf16>, vector<8x512xf32> -> vector<8x512xf32>
    %175 = arith.addf %172, %174 : vector<8x512xf32>
    %176 = math.tanh %175 : vector<8x512xf32>
    %177 = vector.extract_strided_slice %176 {offsets = [0, 0], sizes = [8, 384], strides = [1, 1]} : vector<8x512xf32> to vector<8x384xf32>
    %cst_47 = arith.constant 5.000000e-01 : f32
    %178 = vector.broadcast %cst_47 : f32 to vector<8x384xf32>
    %179 = arith.mulf %178, %177 : vector<8x384xf32>
    %cst_48 = arith.constant 5.000000e-01 : f32
    %180 = vector.broadcast %cst_48 : f32 to vector<8x384xf32>
    %181 = arith.addf %179, %180 : vector<8x384xf32>
    %182 = vector.extract_strided_slice %181 {offsets = [0, 0], sizes = [8, 128], strides = [1, 1]} : vector<8x384xf32> to vector<8x128xf32>
    %183 = vector.extract_strided_slice %181 {offsets = [0, 128], sizes = [8, 128], strides = [1, 1]} : vector<8x384xf32> to vector<8x128xf32>
    %184 = vector.extract_strided_slice %181 {offsets = [0, 256], sizes = [8, 128], strides = [1, 1]} : vector<8x384xf32> to vector<8x128xf32>
    %185 = vector.extract_strided_slice %176 {offsets = [0, 384], sizes = [8, 128], strides = [1, 1]} : vector<8x512xf32> to vector<8x128xf32>
    %186 = arith.mulf %183, %147 : vector<8x128xf32>
    %187 = arith.mulf %182, %185 : vector<8x128xf32>
    %188 = arith.addf %186, %187 : vector<8x128xf32>
    %189 = math.tanh %188 : vector<8x128xf32>
    %190 = arith.mulf %184, %189 : vector<8x128xf32>
    %191 = arith.truncf %190 : vector<8x128xf32> to vector<8x128xbf16>
    %cst_49 = arith.constant dense<0.000000e+00> : vector<8x512xf32>
    %192 = tpu.matmul %191, %1, %cst_49 {dimension_numbers = #tpu.dot_dimension_numbers<[1], [0], [0], [1], [0, 0, 1, 1], [], []>} : vector<8x128xbf16>, vector<128x512xbf16>, vector<8x512xf32> -> vector<8x512xf32>
    %193 = arith.truncf %170 : vector<8x128xf32> to vector<8x128xbf16>
    %cst_50 = arith.constant dense<0.000000e+00> : vector<8x512xf32>
    %194 = tpu.matmul %193, %2, %cst_50 {dimension_numbers = #tpu.dot_dimension_numbers<[1], [0], [0], [1], [0, 0, 1, 1], [], []>} : vector<8x128xbf16>, vector<128x512xbf16>, vector<8x512xf32> -> vector<8x512xf32>
    %195 = arith.addf %192, %194 : vector<8x512xf32>
    %196 = arith.addf %195, %5 : vector<8x512xf32>
    %197 = math.tanh %196 : vector<8x512xf32>
    %198 = vector.extract_strided_slice %197 {offsets = [0, 0], sizes = [8, 384], strides = [1, 1]} : vector<8x512xf32> to vector<8x384xf32>
    %cst_51 = arith.constant 5.000000e-01 : f32
    %199 = vector.broadcast %cst_51 : f32 to vector<8x384xf32>
    %200 = arith.mulf %199, %198 : vector<8x384xf32>
    %cst_52 = arith.constant 5.000000e-01 : f32
    %201 = vector.broadcast %cst_52 : f32 to vector<8x384xf32>
    %202 = arith.addf %200, %201 : vector<8x384xf32>
    %203 = vector.extract_strided_slice %202 {offsets = [0, 0], sizes = [8, 128], strides = [1, 1]} : vector<8x384xf32> to vector<8x128xf32>
    %204 = vector.extract_strided_slice %202 {offsets = [0, 128], sizes = [8, 128], strides = [1, 1]} : vector<8x384xf32> to vector<8x128xf32>
    %205 = vector.extract_strided_slice %202 {offsets = [0, 256], sizes = [8, 128], strides = [1, 1]} : vector<8x384xf32> to vector<8x128xf32>
    %206 = vector.extract_strided_slice %197 {offsets = [0, 384], sizes = [8, 128], strides = [1, 1]} : vector<8x512xf32> to vector<8x128xf32>
    %207 = arith.mulf %204, %168 : vector<8x128xf32>
    %208 = arith.mulf %203, %206 : vector<8x128xf32>
    %209 = arith.addf %207, %208 : vector<8x128xf32>
    %210 = math.tanh %209 : vector<8x128xf32>
    %211 = arith.mulf %205, %210 : vector<8x128xf32>
    %c5 = arith.constant 5 : index
    %c0_53 = arith.constant 0 : index
    %c0_54 = arith.constant 0 : index
    %212 = vector.load %arg0[%c5, %c0_53, %c0_54] : memref<8x8x512xf32, #tpu.memory_space<vmem>>, vector<1x8x512xf32>
    %213 = vector.shape_cast %212 : vector<1x8x512xf32> to vector<8x512xf32>
    %214 = arith.truncf %190 : vector<8x128xf32> to vector<8x128xbf16>
    %cst_55 = arith.constant dense<0.000000e+00> : vector<8x512xf32>
    %215 = tpu.matmul %214, %0, %cst_55 {dimension_numbers = #tpu.dot_dimension_numbers<[1], [0], [0], [1], [0, 0, 1, 1], [], []>} : vector<8x128xbf16>, vector<128x512xbf16>, vector<8x512xf32> -> vector<8x512xf32>
    %216 = arith.addf %213, %215 : vector<8x512xf32>
    %217 = math.tanh %216 : vector<8x512xf32>
    %218 = vector.extract_strided_slice %217 {offsets = [0, 0], sizes = [8, 384], strides = [1, 1]} : vector<8x512xf32> to vector<8x384xf32>
    %cst_56 = arith.constant 5.000000e-01 : f32
    %219 = vector.broadcast %cst_56 : f32 to vector<8x384xf32>
    %220 = arith.mulf %219, %218 : vector<8x384xf32>
    %cst_57 = arith.constant 5.000000e-01 : f32
    %221 = vector.broadcast %cst_57 : f32 to vector<8x384xf32>
    %222 = arith.addf %220, %221 : vector<8x384xf32>
    %223 = vector.extract_strided_slice %222 {offsets = [0, 0], sizes = [8, 128], strides = [1, 1]} : vector<8x384xf32> to vector<8x128xf32>
    %224 = vector.extract_strided_slice %222 {offsets = [0, 128], sizes = [8, 128], strides = [1, 1]} : vector<8x384xf32> to vector<8x128xf32>
    %225 = vector.extract_strided_slice %222 {offsets = [0, 256], sizes = [8, 128], strides = [1, 1]} : vector<8x384xf32> to vector<8x128xf32>
    %226 = vector.extract_strided_slice %217 {offsets = [0, 384], sizes = [8, 128], strides = [1, 1]} : vector<8x512xf32> to vector<8x128xf32>
    %227 = arith.mulf %224, %188 : vector<8x128xf32>
    %228 = arith.mulf %223, %226 : vector<8x128xf32>
    %229 = arith.addf %227, %228 : vector<8x128xf32>
    %230 = math.tanh %229 : vector<8x128xf32>
    %231 = arith.mulf %225, %230 : vector<8x128xf32>
    %232 = arith.truncf %231 : vector<8x128xf32> to vector<8x128xbf16>
    %cst_58 = arith.constant dense<0.000000e+00> : vector<8x512xf32>
    %233 = tpu.matmul %232, %1, %cst_58 {dimension_numbers = #tpu.dot_dimension_numbers<[1], [0], [0], [1], [0, 0, 1, 1], [], []>} : vector<8x128xbf16>, vector<128x512xbf16>, vector<8x512xf32> -> vector<8x512xf32>
    %234 = arith.truncf %211 : vector<8x128xf32> to vector<8x128xbf16>
    %cst_59 = arith.constant dense<0.000000e+00> : vector<8x512xf32>
    %235 = tpu.matmul %234, %2, %cst_59 {dimension_numbers = #tpu.dot_dimension_numbers<[1], [0], [0], [1], [0, 0, 1, 1], [], []>} : vector<8x128xbf16>, vector<128x512xbf16>, vector<8x512xf32> -> vector<8x512xf32>
    %236 = arith.addf %233, %235 : vector<8x512xf32>
    %237 = arith.addf %236, %5 : vector<8x512xf32>
    %238 = math.tanh %237 : vector<8x512xf32>
    %239 = vector.extract_strided_slice %238 {offsets = [0, 0], sizes = [8, 384], strides = [1, 1]} : vector<8x512xf32> to vector<8x384xf32>
    %cst_60 = arith.constant 5.000000e-01 : f32
    %240 = vector.broadcast %cst_60 : f32 to vector<8x384xf32>
    %241 = arith.mulf %240, %239 : vector<8x384xf32>
    %cst_61 = arith.constant 5.000000e-01 : f32
    %242 = vector.broadcast %cst_61 : f32 to vector<8x384xf32>
    %243 = arith.addf %241, %242 : vector<8x384xf32>
    %244 = vector.extract_strided_slice %243 {offsets = [0, 0], sizes = [8, 128], strides = [1, 1]} : vector<8x384xf32> to vector<8x128xf32>
    %245 = vector.extract_strided_slice %243 {offsets = [0, 128], sizes = [8, 128], strides = [1, 1]} : vector<8x384xf32> to vector<8x128xf32>
    %246 = vector.extract_strided_slice %243 {offsets = [0, 256], sizes = [8, 128], strides = [1, 1]} : vector<8x384xf32> to vector<8x128xf32>
    %247 = vector.extract_strided_slice %238 {offsets = [0, 384], sizes = [8, 128], strides = [1, 1]} : vector<8x512xf32> to vector<8x128xf32>
    %248 = arith.mulf %245, %209 : vector<8x128xf32>
    %249 = arith.mulf %244, %247 : vector<8x128xf32>
    %250 = arith.addf %248, %249 : vector<8x128xf32>
    %251 = math.tanh %250 : vector<8x128xf32>
    %252 = arith.mulf %246, %251 : vector<8x128xf32>
    %c6 = arith.constant 6 : index
    %c0_62 = arith.constant 0 : index
    %c0_63 = arith.constant 0 : index
    %253 = vector.load %arg0[%c6, %c0_62, %c0_63] : memref<8x8x512xf32, #tpu.memory_space<vmem>>, vector<1x8x512xf32>
    %254 = vector.shape_cast %253 : vector<1x8x512xf32> to vector<8x512xf32>
    %255 = arith.truncf %231 : vector<8x128xf32> to vector<8x128xbf16>
    %cst_64 = arith.constant dense<0.000000e+00> : vector<8x512xf32>
    %256 = tpu.matmul %255, %0, %cst_64 {dimension_numbers = #tpu.dot_dimension_numbers<[1], [0], [0], [1], [0, 0, 1, 1], [], []>} : vector<8x128xbf16>, vector<128x512xbf16>, vector<8x512xf32> -> vector<8x512xf32>
    %257 = arith.addf %254, %256 : vector<8x512xf32>
    %258 = math.tanh %257 : vector<8x512xf32>
    %259 = vector.extract_strided_slice %258 {offsets = [0, 0], sizes = [8, 384], strides = [1, 1]} : vector<8x512xf32> to vector<8x384xf32>
    %cst_65 = arith.constant 5.000000e-01 : f32
    %260 = vector.broadcast %cst_65 : f32 to vector<8x384xf32>
    %261 = arith.mulf %260, %259 : vector<8x384xf32>
    %cst_66 = arith.constant 5.000000e-01 : f32
    %262 = vector.broadcast %cst_66 : f32 to vector<8x384xf32>
    %263 = arith.addf %261, %262 : vector<8x384xf32>
    %264 = vector.extract_strided_slice %263 {offsets = [0, 0], sizes = [8, 128], strides = [1, 1]} : vector<8x384xf32> to vector<8x128xf32>
    %265 = vector.extract_strided_slice %263 {offsets = [0, 128], sizes = [8, 128], strides = [1, 1]} : vector<8x384xf32> to vector<8x128xf32>
    %266 = vector.extract_strided_slice %263 {offsets = [0, 256], sizes = [8, 128], strides = [1, 1]} : vector<8x384xf32> to vector<8x128xf32>
    %267 = vector.extract_strided_slice %258 {offsets = [0, 384], sizes = [8, 128], strides = [1, 1]} : vector<8x512xf32> to vector<8x128xf32>
    %268 = arith.mulf %265, %229 : vector<8x128xf32>
    %269 = arith.mulf %264, %267 : vector<8x128xf32>
    %270 = arith.addf %268, %269 : vector<8x128xf32>
    %271 = math.tanh %270 : vector<8x128xf32>
    %272 = arith.mulf %266, %271 : vector<8x128xf32>
    %273 = arith.truncf %272 : vector<8x128xf32> to vector<8x128xbf16>
    %cst_67 = arith.constant dense<0.000000e+00> : vector<8x512xf32>
    %274 = tpu.matmul %273, %1, %cst_67 {dimension_numbers = #tpu.dot_dimension_numbers<[1], [0], [0], [1], [0, 0, 1, 1], [], []>} : vector<8x128xbf16>, vector<128x512xbf16>, vector<8x512xf32> -> vector<8x512xf32>
    %275 = arith.truncf %252 : vector<8x128xf32> to vector<8x128xbf16>
    %cst_68 = arith.constant dense<0.000000e+00> : vector<8x512xf32>
    %276 = tpu.matmul %275, %2, %cst_68 {dimension_numbers = #tpu.dot_dimension_numbers<[1], [0], [0], [1], [0, 0, 1, 1], [], []>} : vector<8x128xbf16>, vector<128x512xbf16>, vector<8x512xf32> -> vector<8x512xf32>
    %277 = arith.addf %274, %276 : vector<8x512xf32>
    %278 = arith.addf %277, %5 : vector<8x512xf32>
    %279 = math.tanh %278 : vector<8x512xf32>
    %280 = vector.extract_strided_slice %279 {offsets = [0, 0], sizes = [8, 384], strides = [1, 1]} : vector<8x512xf32> to vector<8x384xf32>
    %cst_69 = arith.constant 5.000000e-01 : f32
    %281 = vector.broadcast %cst_69 : f32 to vector<8x384xf32>
    %282 = arith.mulf %281, %280 : vector<8x384xf32>
    %cst_70 = arith.constant 5.000000e-01 : f32
    %283 = vector.broadcast %cst_70 : f32 to vector<8x384xf32>
    %284 = arith.addf %282, %283 : vector<8x384xf32>
    %285 = vector.extract_strided_slice %284 {offsets = [0, 0], sizes = [8, 128], strides = [1, 1]} : vector<8x384xf32> to vector<8x128xf32>
    %286 = vector.extract_strided_slice %284 {offsets = [0, 128], sizes = [8, 128], strides = [1, 1]} : vector<8x384xf32> to vector<8x128xf32>
    %287 = vector.extract_strided_slice %284 {offsets = [0, 256], sizes = [8, 128], strides = [1, 1]} : vector<8x384xf32> to vector<8x128xf32>
    %288 = vector.extract_strided_slice %279 {offsets = [0, 384], sizes = [8, 128], strides = [1, 1]} : vector<8x512xf32> to vector<8x128xf32>
    %289 = arith.mulf %286, %250 : vector<8x128xf32>
    %290 = arith.mulf %285, %288 : vector<8x128xf32>
    %291 = arith.addf %289, %290 : vector<8x128xf32>
    %292 = math.tanh %291 : vector<8x128xf32>
    %293 = arith.mulf %287, %292 : vector<8x128xf32>
    %c7 = arith.constant 7 : index
    %c0_71 = arith.constant 0 : index
    %c0_72 = arith.constant 0 : index
    %294 = vector.load %arg0[%c7, %c0_71, %c0_72] : memref<8x8x512xf32, #tpu.memory_space<vmem>>, vector<1x8x512xf32>
    %295 = vector.shape_cast %294 : vector<1x8x512xf32> to vector<8x512xf32>
    %296 = arith.truncf %272 : vector<8x128xf32> to vector<8x128xbf16>
    %cst_73 = arith.constant dense<0.000000e+00> : vector<8x512xf32>
    %297 = tpu.matmul %296, %0, %cst_73 {dimension_numbers = #tpu.dot_dimension_numbers<[1], [0], [0], [1], [0, 0, 1, 1], [], []>} : vector<8x128xbf16>, vector<128x512xbf16>, vector<8x512xf32> -> vector<8x512xf32>
    %298 = arith.addf %295, %297 : vector<8x512xf32>
    %299 = math.tanh %298 : vector<8x512xf32>
    %300 = vector.extract_strided_slice %299 {offsets = [0, 0], sizes = [8, 384], strides = [1, 1]} : vector<8x512xf32> to vector<8x384xf32>
    %cst_74 = arith.constant 5.000000e-01 : f32
    %301 = vector.broadcast %cst_74 : f32 to vector<8x384xf32>
    %302 = arith.mulf %301, %300 : vector<8x384xf32>
    %cst_75 = arith.constant 5.000000e-01 : f32
    %303 = vector.broadcast %cst_75 : f32 to vector<8x384xf32>
    %304 = arith.addf %302, %303 : vector<8x384xf32>
    %305 = vector.extract_strided_slice %304 {offsets = [0, 0], sizes = [8, 128], strides = [1, 1]} : vector<8x384xf32> to vector<8x128xf32>
    %306 = vector.extract_strided_slice %304 {offsets = [0, 128], sizes = [8, 128], strides = [1, 1]} : vector<8x384xf32> to vector<8x128xf32>
    %307 = vector.extract_strided_slice %304 {offsets = [0, 256], sizes = [8, 128], strides = [1, 1]} : vector<8x384xf32> to vector<8x128xf32>
    %308 = vector.extract_strided_slice %299 {offsets = [0, 384], sizes = [8, 128], strides = [1, 1]} : vector<8x512xf32> to vector<8x128xf32>
    %309 = arith.mulf %306, %270 : vector<8x128xf32>
    %310 = arith.mulf %305, %308 : vector<8x128xf32>
    %311 = arith.addf %309, %310 : vector<8x128xf32>
    %312 = math.tanh %311 : vector<8x128xf32>
    %313 = arith.mulf %307, %312 : vector<8x128xf32>
    %314 = arith.truncf %313 : vector<8x128xf32> to vector<8x128xbf16>
    %cst_76 = arith.constant dense<0.000000e+00> : vector<8x512xf32>
    %315 = tpu.matmul %314, %1, %cst_76 {dimension_numbers = #tpu.dot_dimension_numbers<[1], [0], [0], [1], [0, 0, 1, 1], [], []>} : vector<8x128xbf16>, vector<128x512xbf16>, vector<8x512xf32> -> vector<8x512xf32>
    %316 = arith.truncf %293 : vector<8x128xf32> to vector<8x128xbf16>
    %cst_77 = arith.constant dense<0.000000e+00> : vector<8x512xf32>
    %317 = tpu.matmul %316, %2, %cst_77 {dimension_numbers = #tpu.dot_dimension_numbers<[1], [0], [0], [1], [0, 0, 1, 1], [], []>} : vector<8x128xbf16>, vector<128x512xbf16>, vector<8x512xf32> -> vector<8x512xf32>
    %318 = arith.addf %315, %317 : vector<8x512xf32>
    %319 = arith.addf %318, %5 : vector<8x512xf32>
    %320 = math.tanh %319 : vector<8x512xf32>
    %321 = vector.extract_strided_slice %320 {offsets = [0, 0], sizes = [8, 384], strides = [1, 1]} : vector<8x512xf32> to vector<8x384xf32>
    %cst_78 = arith.constant 5.000000e-01 : f32
    %322 = vector.broadcast %cst_78 : f32 to vector<8x384xf32>
    %323 = arith.mulf %322, %321 : vector<8x384xf32>
    %cst_79 = arith.constant 5.000000e-01 : f32
    %324 = vector.broadcast %cst_79 : f32 to vector<8x384xf32>
    %325 = arith.addf %323, %324 : vector<8x384xf32>
    %326 = vector.extract_strided_slice %325 {offsets = [0, 0], sizes = [8, 128], strides = [1, 1]} : vector<8x384xf32> to vector<8x128xf32>
    %327 = vector.extract_strided_slice %325 {offsets = [0, 128], sizes = [8, 128], strides = [1, 1]} : vector<8x384xf32> to vector<8x128xf32>
    %328 = vector.extract_strided_slice %325 {offsets = [0, 256], sizes = [8, 128], strides = [1, 1]} : vector<8x384xf32> to vector<8x128xf32>
    %329 = vector.extract_strided_slice %320 {offsets = [0, 384], sizes = [8, 128], strides = [1, 1]} : vector<8x512xf32> to vector<8x128xf32>
    %330 = arith.mulf %327, %291 : vector<8x128xf32>
    %331 = arith.mulf %326, %329 : vector<8x128xf32>
    %332 = arith.addf %330, %331 : vector<8x128xf32>
    %333 = math.tanh %332 : vector<8x128xf32>
    %334 = arith.mulf %328, %333 : vector<8x128xf32>
    %335 = arith.truncf %334 : vector<8x128xf32> to vector<8x128xbf16>
    %c0_80 = arith.constant 0 : index
    %c0_81 = arith.constant 0 : index
    %336 = vector.load %arg5[%c0_80, %c0_81] : memref<128x1xbf16, #tpu.memory_space<vmem>>, vector<128x1xbf16>
    %cst_82 = arith.constant dense<0.000000e+00> : vector<8x1xf32>
    %337 = tpu.matmul %335, %336, %cst_82 {dimension_numbers = #tpu.dot_dimension_numbers<[1], [0], [0], [1], [0, 0, 1, 1], [], []>} : vector<8x128xbf16>, vector<128x1xbf16>, vector<8x1xf32> -> vector<8x1xf32>
    %c0_83 = arith.constant 0 : index
    %c0_84 = arith.constant 0 : index
    %338 = vector.load %arg6[%c0_83, %c0_84] : memref<1x1xf32, #tpu.memory_space<vmem>>, vector<1x1xf32>
    %339 = vector.broadcast %338 : vector<1x1xf32> to vector<8x1xf32>
    %340 = arith.addf %337, %339 : vector<8x1xf32>
    %c0_85 = arith.constant 0 : index
    %c0_86 = arith.constant 0 : index
    %341 = vector.load %arg7[%c0_85, %c0_86] : memref<8x1xf32, #tpu.memory_space<vmem>>, vector<8x1xf32>
    tpu.vector_store %arg7[%c0_85, %c0_86], %340 {strides = array<i32>} : memref<8x1xf32, #tpu.memory_space<vmem>>, vector<8x1xf32>,
    return
  }
}

</mosaic_0001>

<llo_original>
// kernel: tpu_custom_call.1
$region0: #{tpu_custom_call.1}
  #allocation0 [shape = 'u32[]', space=smem, size = 0x4, offset = 0x4, fixed_abs, tag = 'smem constant byte address 0x4 - core index']
  #allocation1 [shape = 'u32[144,128]{1,0:T(1,128)}', space=vmem, size = 0x12000, scoped, tag = 'internal scratch']
  #allocation2 [shape = 'f32[1,1]{1,0:T(1,128)S(1)}', space=vmem, size = 0x200, scoped, tag = 'scoped memory for tpu_custom_call.1']
  %s0 = inlined_call_operand.hbm [shape: f32[8,8,512], index: 0, kind: input, shape index: {}]
  %s1 = inlined_call_operand.hbm [shape: bf16[128,512], index: 1, kind: input, shape index: {}]
  %s2 = inlined_call_operand.hbm [shape: bf16[128,512], index: 2, kind: input, shape index: {}]
  %s3 = inlined_call_operand.hbm [shape: bf16[128,512], index: 3, kind: input, shape index: {}]
  %s4 = inlined_call_operand.vmem [shape: f32[1,512], index: 4, kind: input, shape index: {}]
  %s5 = inlined_call_operand.vmem [shape: bf16[128,1], index: 5, kind: input, shape index: {}]
  %s6 = inlined_call_operand.<no memory space> [shape: f32[1,1], index: 6, kind: input, shape index: {}]
  %s7 = inlined_call_operand.vmem [shape: f32[8,1], index: 7, kind: output, shape index: {}]
  %s8 = sld [smem:[#allocation0]]
  $region54: #{tpu_custom_call.1} parent=0
    _
  %s10 = ssub.s32 1, %s8
  %s11 = scalar_select 0, %s10, %s8
  %v12 = vstv %s6
  %13 = vst [vmem:[#allocation2] sm:$0x1] %v12
  $region1: #{tpu_custom_call.1} parent=0
    #allocation3 [shape = 'u8[131072]{0}', space=vmem, size = 0x20000, scoped, tag = 'input window, operand 0, single buffered']
    #allocation4 [shape = 's32[1]{0}', space=sflag, size = 0x4, scoped, tag = 'scoped memory for tpu_custom_call.1']
    #allocation5 [shape = 'u8[131072]{0}', space=vmem, size = 0x20000, scoped, tag = 'input window, operand 1, single buffered']
    #allocation6 [shape = 's32[1]{0}', space=sflag, size = 0x4, scoped, tag = 'scoped memory for tpu_custom_call.1']
    #allocation7 [shape = 'u8[131072]{0}', space=vmem, size = 0x20000, scoped, tag = 'input window, operand 2, single buffered']
    #allocation8 [shape = 'u8[131072]{0}', space=vmem, size = 0x20000, scoped, tag = 'input window, operand 3, single buffered']
    #allocation9 [shape = 's32[1]{0}', space=sflag, size = 0x4, scoped, tag = 'scoped memory for tpu_custom_call.1']
    %14 = vsyncpa [#allocation4], 0
    %15 = vsyncpa [#allocation6], 0
    %16 = vsyncpa [#allocation9], 0
    // Predicated region
    $region2: #{tpu_custom_call.1} parent=1 // pred_check
      _
    $region3: #{tpu_custom_call.1} parent=1 // pred_check_branch
      %18 = sbr.rel (0) target = $region5
    $region4: #{tpu_custom_call.1} parent=1 // pred_region
      %s20 = ssub.s32 4096, 4096
      %21 = vsyncadd [#allocation4], %s20
      %s22 = sshll.u32 [#allocation3], 4
      %s23 = int_to_ptr.vmem [resolvable:$true] %s22
      %28 = dma.hbm_to_vmem [thread:$0]  %s0, 4096, %s23, [#allocation4], 512, 512, 32
    $region5: #{tpu_custom_call.1} parent=1 // pred_fallthru
      _
    // Predicated region
    $region6: #{tpu_custom_call.1} parent=1 // pred_check
      _
    $region7: #{tpu_custom_call.1} parent=1 // pred_check_branch
      %30 = sbr.rel (0) target = $region9
    $region8: #{tpu_custom_call.1} parent=1 // pred_region
      %s32 = ssub.s32 4096, 4096
      %33 = vsyncadd [#allocation6], %s32
      %s34 = sshll.u32 [#allocation5], 4
      %s35 = int_to_ptr.vmem [resolvable:$true] %s34
      %40 = dma.hbm_to_vmem [thread:$0]  %s1, 4096, %s35, [#allocation6], 256, 256, 16
    $region9: #{tpu_custom_call.1} parent=1 // pred_fallthru
      _
    // Predicated region
    $region10: #{tpu_custom_call.1} parent=1 // pred_check
      _
    $region11: #{tpu_custom_call.1} parent=1 // pred_check_branch
      %42 = sbr.rel (0) target = $region13
    $region12: #{tpu_custom_call.1} parent=1 // pred_region
      %s44 = ssub.s32 4096, 4096
      %45 = vsyncadd [#allocation6], %s44
      %s46 = sshll.u32 [#allocation7], 4
      %s47 = int_to_ptr.vmem [resolvable:$true] %s46
      %52 = dma.hbm_to_vmem [thread:$0]  %s2, 4096, %s47, [#allocation6], 256, 256, 16
    $region13: #{tpu_custom_call.1} parent=1 // pred_fallthru
      _
    // Predicated region
    $region14: #{tpu_custom_call.1} parent=1 // pred_check
      _
    $region15: #{tpu_custom_call.1} parent=1 // pred_check_branch
      %54 = sbr.rel (0) target = $region17
    $region16: #{tpu_custom_call.1} parent=1 // pred_region
      %s56 = ssub.s32 4096, 4096
      %57 = vsyncadd [#allocation9], %s56
      %s58 = sshll.u32 [#allocation8], 4
      %s59 = int_to_ptr.vmem [resolvable:$true] %s58
      %64 = dma.hbm_to_vmem [thread:$0]  %s3, 4096, %s59, [#allocation9], 256, 256, 16
    $region17: #{tpu_custom_call.1} parent=1 // pred_fallthru
      _
    // Predicated region
    $region18: #{tpu_custom_call.1} parent=1 // pred_check
      _
    $region19: #{tpu_custom_call.1} parent=1 // pred_check_branch
      %66 = sbr.rel (0) target = $region21
    $region20: #{tpu_custom_call.1} parent=1 // pred_region
      _
    $region21: #{tpu_custom_call.1} parent=1 // pred_fallthru
      _
    // Predicated region
    $region22: #{tpu_custom_call.1} parent=1 // pred_check
      _
    $region23: #{tpu_custom_call.1} parent=1 // pred_check_branch
      %68 = sbr.rel (0) target = $region25
    $region24: #{tpu_custom_call.1} parent=1 // pred_region
      _
    $region25: #{tpu_custom_call.1} parent=1 // pred_fallthru
      _
    // Predicated region
    $region26: #{tpu_custom_call.1} parent=1 // pred_check
      _
    $region27: #{tpu_custom_call.1} parent=1 // pred_check_branch
      %70 = sbr.rel (0) target = $region29
    $region28: #{tpu_custom_call.1} parent=1 // pred_region
      _
    $region29: #{tpu_custom_call.1} parent=1 // pred_fallthru
      _
    // Predicated region
    $region30: #{tpu_custom_call.1} parent=1 // pred_check
      _
    $region31: #{tpu_custom_call.1} parent=1 // pred_check_branch
      %72 = sbr.rel (0) target = $region33
    $region32: #{tpu_custom_call.1} parent=1 // pred_region
      %73 = dma.done [#allocation4], 4096
    $region33: #{tpu_custom_call.1} parent=1 // pred_fallthru
      _
    // Predicated region
    $region34: #{tpu_custom_call.1} parent=1 // pred_check
      _
    $region35: #{tpu_custom_call.1} parent=1 // pred_check_branch
      %75 = sbr.rel (0) target = $region37
    $region36: #{tpu_custom_call.1} parent=1 // pred_region
      %76 = dma.done [#allocation6], 4096
    $region37: #{tpu_custom_call.1} parent=1 // pred_fallthru
      _
    // Predicated region
    $region38: #{tpu_custom_call.1} parent=1 // pred_check
      _
    $region39: #{tpu_custom_call.1} parent=1 // pred_check_branch
      %78 = sbr.rel (0) target = $region41
    $region40: #{tpu_custom_call.1} parent=1 // pred_region
      %79 = dma.done [#allocation6], 4096
    $region41: #{tpu_custom_call.1} parent=1 // pred_fallthru
      _
    // Predicated region
    $region42: #{tpu_custom_call.1} parent=1 // pred_check
      _
    $region43: #{tpu_custom_call.1} parent=1 // pred_check_branch
      %81 = sbr.rel (0) target = $region45
    $region44: #{tpu_custom_call.1} parent=1 // pred_region
      %82 = dma.done [#allocation9], 4096
    $region45: #{tpu_custom_call.1} parent=1 // pred_fallthru
      _
    %v84 = vld [vmem:[#allocation5] sm:$0xff]
    %v85 = vld [vmem:[#allocation5 + $0x8] sm:$0xff]
    %v86 = vld [vmem:[#allocation5 + $0x10] sm:$0xff]
    %v87 = vld [vmem:[#allocation5 + $0x18] sm:$0xff]
    %v88 = vld [vmem:[#allocation5 + $0x20] sm:$0xff]
    %v89 = vld [vmem:[#allocation5 + $0x28] sm:$0xff]
    %v90 = vld [vmem:[#allocation5 + $0x30] sm:$0xff]
    %v91 = vld [vmem:[#allocation5 + $0x38] sm:$0xff]
    %v92 = vld [vmem:[#allocation5 + $0x40] sm:$0xff]
    %v93 = vld [vmem:[#allocation5 + $0x48] sm:$0xff]
    %v94 = vld [vmem:[#allocation5 + $0x50] sm:$0xff]
    %v95 = vld [vmem:[#allocation5 + $0x58] sm:$0xff]
    %v96 = vld [vmem:[#allocation5 + $0x60] sm:$0xff]
    %v97 = vld [vmem:[#allocation5 + $0x68] sm:$0xff]
    %v98 = vld [vmem:[#allocation5 + $0x70] sm:$0xff]
    %v99 = vld [vmem:[#allocation5 + $0x78] sm:$0xff]
    %v100 = vld [vmem:[#allocation5 + $0x80] sm:$0xff]
    %v101 = vld [vmem:[#allocation5 + $0x88] sm:$0xff]
    %v102 = vld [vmem:[#allocation5 + $0x90] sm:$0xff]
    %v103 = vld [vmem:[#allocation5 + $0x98] sm:$0xff]
    %v104 = vld [vmem:[#allocation5 + $0xa0] sm:$0xff]
    %v105 = vld [vmem:[#allocation5 + $0xa8] sm:$0xff]
    %v106 = vld [vmem:[#allocation5 + $0xb0] sm:$0xff]
    %v107 = vld [vmem:[#allocation5 + $0xb8] sm:$0xff]
    %v108 = vld [vmem:[#allocation5 + $0xc0] sm:$0xff]
    %v109 = vld [vmem:[#allocation5 + $0xc8] sm:$0xff]
    %v110 = vld [vmem:[#allocation5 + $0xd0] sm:$0xff]
    %v111 = vld [vmem:[#allocation5 + $0xd8] sm:$0xff]
    %v112 = vld [vmem:[#allocation5 + $0xe0] sm:$0xff]
    %v113 = vld [vmem:[#allocation5 + $0xe8] sm:$0xff]
    %v114 = vld [vmem:[#allocation5 + $0xf0] sm:$0xff]
    %v115 = vld [vmem:[#allocation5 + $0xf8] sm:$0xff]
    %v116 = vld [vmem:[#allocation7] sm:$0xff]
    %v117 = vld [vmem:[#allocation7 + $0x8] sm:$0xff]
    %v118 = vld [vmem:[#allocation7 + $0x10] sm:$0xff]
    %v119 = vld [vmem:[#allocation7 + $0x18] sm:$0xff]
    %v120 = vld [vmem:[#allocation7 + $0x20] sm:$0xff]
    %v121 = vld [vmem:[#allocation7 + $0x28] sm:$0xff]
    %v122 = vld [vmem:[#allocation7 + $0x30] sm:$0xff]
    %v123 = vld [vmem:[#allocation7 + $0x38] sm:$0xff]
    %v124 = vld [vmem:[#allocation7 + $0x40] sm:$0xff]
    %v125 = vld [vmem:[#allocation7 + $0x48] sm:$0xff]
    %v126 = vld [vmem:[#allocation7 + $0x50] sm:$0xff]
    %v127 = vld [vmem:[#allocation7 + $0x58] sm:$0xff]
    %v128 = vld [vmem:[#allocation7 + $0x60] sm:$0xff]
    %v129 = vld [vmem:[#allocation7 + $0x68] sm:$0xff]
    %v130 = vld [vmem:[#allocation7 + $0x70] sm:$0xff]
    %v131 = vld [vmem:[#allocation7 + $0x78] sm:$0xff]
    %v132 = vld [vmem:[#allocation7 + $0x80] sm:$0xff]
    %v133 = vld [vmem:[#allocation7 + $0x88] sm:$0xff]
    %v134 = vld [vmem:[#allocation7 + $0x90] sm:$0xff]
    %v135 = vld [vmem:[#allocation7 + $0x98] sm:$0xff]
    %v136 = vld [vmem:[#allocation7 + $0xa0] sm:$0xff]
    %v137 = vld [vmem:[#allocation7 + $0xa8] sm:$0xff]
    %v138 = vld [vmem:[#allocation7 + $0xb0] sm:$0xff]
    %v139 = vld [vmem:[#allocation7 + $0xb8] sm:$0xff]
    %v140 = vld [vmem:[#allocation7 + $0xc0] sm:$0xff]
    %v141 = vld [vmem:[#allocation7 + $0xc8] sm:$0xff]
    %v142 = vld [vmem:[#allocation7 + $0xd0] sm:$0xff]
    %v143 = vld [vmem:[#allocation7 + $0xd8] sm:$0xff]
    %v144 = vld [vmem:[#allocation7 + $0xe0] sm:$0xff]
    %v145 = vld [vmem:[#allocation7 + $0xe8] sm:$0xff]
    %v146 = vld [vmem:[#allocation7 + $0xf0] sm:$0xff]
    %v147 = vld [vmem:[#allocation7 + $0xf8] sm:$0xff]
    %v148 = vld [vmem:[#allocation8] sm:$0xff]
    %v149 = vld [vmem:[#allocation8 + $0x8] sm:$0xff]
    %v150 = vld [vmem:[#allocation8 + $0x10] sm:$0xff]
    %v151 = vld [vmem:[#allocation8 + $0x18] sm:$0xff]
    %v152 = vld [vmem:[#allocation8 + $0x20] sm:$0xff]
    %v153 = vld [vmem:[#allocation8 + $0x28] sm:$0xff]
    %v154 = vld [vmem:[#allocation8 + $0x30] sm:$0xff]
    %v155 = vld [vmem:[#allocation8 + $0x38] sm:$0xff]
    %v156 = vld [vmem:[#allocation8 + $0x40] sm:$0xff]
    %v157 = vld [vmem:[#allocation8 + $0x48] sm:$0xff]
    %v158 = vld [vmem:[#allocation8 + $0x50] sm:$0xff]
    %v159 = vld [vmem:[#allocation8 + $0x58] sm:$0xff]
    %v160 = vld [vmem:[#allocation8 + $0x60] sm:$0xff]
    %v161 = vld [vmem:[#allocation8 + $0x68] sm:$0xff]
    %v162 = vld [vmem:[#allocation8 + $0x70] sm:$0xff]
    %v163 = vld [vmem:[#allocation8 + $0x78] sm:$0xff]
    %v164 = vld [vmem:[#allocation8 + $0x80] sm:$0xff]
    %v165 = vld [vmem:[#allocation8 + $0x88] sm:$0xff]
    %v166 = vld [vmem:[#allocation8 + $0x90] sm:$0xff]
    %v167 = vld [vmem:[#allocation8 + $0x98] sm:$0xff]
    %v168 = vld [vmem:[#allocation8 + $0xa0] sm:$0xff]
    %v169 = vld [vmem:[#allocation8 + $0xa8] sm:$0xff]
    %v170 = vld [vmem:[#allocation8 + $0xb0] sm:$0xff]
    %v171 = vld [vmem:[#allocation8 + $0xb8] sm:$0xff]
    %v172 = vld [vmem:[#allocation8 + $0xc0] sm:$0xff]
    %v173 = vld [vmem:[#allocation8 + $0xc8] sm:$0xff]
    %v174 = vld [vmem:[#allocation8 + $0xd0] sm:$0xff]
    %v175 = vld [vmem:[#allocation8 + $0xd8] sm:$0xff]
    %v176 = vld [vmem:[#allocation8 + $0xe0] sm:$0xff]
    %v177 = vld [vmem:[#allocation8 + $0xe8] sm:$0xff]
    %v178 = vld [vmem:[#allocation8 + $0xf0] sm:$0xff]
    %v179 = vld [vmem:[#allocation8 + $0xf8] sm:$0xff]
    %v180 = vld [vmem:[%s4] sm:$0xf]
    %v182 = vlaneseq
    %v183 = vshrl.u32 %v182, 7
    %v184 = vsub.s32 0, %v183
    %v185 = vrot.slane %v180, %v184
    %v186 = vlaneseq
    %v187 = vshrl.u32 %v186, 7
    %v188 = vsub.s32 1, %v187
    %v189 = vrot.slane %v180, %v188
    %v190 = vlaneseq
    %v191 = vshrl.u32 %v190, 7
    %v192 = vsub.s32 2, %v191
    %v193 = vrot.slane %v180, %v192
    %v194 = vlaneseq
    %v195 = vshrl.u32 %v194, 7
    %v196 = vsub.s32 3, %v195
    %v197 = vrot.slane %v180, %v196
    %v202 = vld [vmem:[#allocation3] sm:$0xff]
    %v203 = vld [vmem:[#allocation3 + $0x8] sm:$0xff]
    %v204 = vld [vmem:[#allocation3 + $0x10] sm:$0xff]
    %v205 = vld [vmem:[#allocation3 + $0x18] sm:$0xff]
    %v238 = vunpack.c.l.b16 %v84
    %v239 = vunpack.c.h.b16 %v84
    %v240 = vunpack.c.l.b16 %v85
    %v241 = vunpack.c.h.b16 %v85
    %v242 = vunpack.c.l.b16 %v86
    %v243 = vunpack.c.h.b16 %v86
    %v244 = vunpack.c.l.b16 %v87
    %v245 = vunpack.c.h.b16 %v87
    %v246 = vunpack.c.l.b16 %v88
    %v247 = vunpack.c.h.b16 %v88
    %v248 = vunpack.c.l.b16 %v89
    %v249 = vunpack.c.h.b16 %v89
    %v250 = vunpack.c.l.b16 %v90
    %v251 = vunpack.c.h.b16 %v90
    %v252 = vunpack.c.l.b16 %v91
    %v253 = vunpack.c.h.b16 %v91
    %v254 = vunpack.c.l.b16 %v92
    %v255 = vunpack.c.h.b16 %v92
    %v256 = vunpack.c.l.b16 %v93
    %v257 = vunpack.c.h.b16 %v93
    %v258 = vunpack.c.l.b16 %v94
    %v259 = vunpack.c.h.b16 %v94
    %v260 = vunpack.c.l.b16 %v95
    %v261 = vunpack.c.h.b16 %v95
    %v262 = vunpack.c.l.b16 %v96
    %v263 = vunpack.c.h.b16 %v96
    %v264 = vunpack.c.l.b16 %v97
    %v265 = vunpack.c.h.b16 %v97
    %v266 = vunpack.c.l.b16 %v98
    %v267 = vunpack.c.h.b16 %v98
    %v268 = vunpack.c.l.b16 %v99
    %v269 = vunpack.c.h.b16 %v99
    %v270 = vunpack.c.l.b16 %v100
    %v271 = vunpack.c.h.b16 %v100
    %v272 = vunpack.c.l.b16 %v101
    %v273 = vunpack.c.h.b16 %v101
    %v274 = vunpack.c.l.b16 %v102
    %v275 = vunpack.c.h.b16 %v102
    %v276 = vunpack.c.l.b16 %v103
    %v277 = vunpack.c.h.b16 %v103
    %v278 = vunpack.c.l.b16 %v104
    %v279 = vunpack.c.h.b16 %v104
    %v280 = vunpack.c.l.b16 %v105
    %v281 = vunpack.c.h.b16 %v105
    %v282 = vunpack.c.l.b16 %v106
    %v283 = vunpack.c.h.b16 %v106
    %v284 = vunpack.c.l.b16 %v107
    %v285 = vunpack.c.h.b16 %v107
    %v286 = vunpack.c.l.b16 %v108
    %v287 = vunpack.c.h.b16 %v108
    %v288 = vunpack.c.l.b16 %v109
    %v289 = vunpack.c.h.b16 %v109
    %v290 = vunpack.c.l.b16 %v110
    %v291 = vunpack.c.h.b16 %v110
    %v292 = vunpack.c.l.b16 %v111
    %v293 = vunpack.c.h.b16 %v111
    %v294 = vunpack.c.l.b16 %v112
    %v295 = vunpack.c.h.b16 %v112
    %v296 = vunpack.c.l.b16 %v113
    %v297 = vunpack.c.h.b16 %v113
    %v298 = vunpack.c.l.b16 %v114
    %v299 = vunpack.c.h.b16 %v114
    %v300 = vunpack.c.l.b16 %v115
    %v301 = vunpack.c.h.b16 %v115
    %v302 = vpack.c.b16 %v242, %v238
    %v303 = vpack.c.b16 %v243, %v239
    %v304 = vpack.c.b16 %v244, %v240
    %v305 = vpack.c.b16 %v245, %v241
    %v306 = vpack.c.b16 %v250, %v246
    %v307 = vpack.c.b16 %v251, %v247
    %v308 = vpack.c.b16 %v252, %v248
    %v309 = vpack.c.b16 %v253, %v249
    %v310 = vpack.c.b16 %v258, %v254
    %v311 = vpack.c.b16 %v259, %v255
    %v312 = vpack.c.b16 %v260, %v256
    %v313 = vpack.c.b16 %v261, %v257
    %v314 = vpack.c.b16 %v266, %v262
    %v315 = vpack.c.b16 %v267, %v263
    %v316 = vpack.c.b16 %v268, %v264
    %v317 = vpack.c.b16 %v269, %v265
    %v318 = vpack.c.b16 %v274, %v270
    %v319 = vpack.c.b16 %v275, %v271
    %v320 = vpack.c.b16 %v276, %v272
    %v321 = vpack.c.b16 %v277, %v273
    %v322 = vpack.c.b16 %v282, %v278
    %v323 = vpack.c.b16 %v283, %v279
    %v324 = vpack.c.b16 %v284, %v280
    %v325 = vpack.c.b16 %v285, %v281
    %v326 = vpack.c.b16 %v290, %v286
    %v327 = vpack.c.b16 %v291, %v287
    %v328 = vpack.c.b16 %v292, %v288
    %v329 = vpack.c.b16 %v293, %v289
    %v330 = vpack.c.b16 %v298, %v294
    %v331 = vpack.c.b16 %v299, %v295
    %v332 = vpack.c.b16 %v300, %v296
    %v333 = vpack.c.b16 %v301, %v297
    %366 = vmatprep.subr.bf16.mxu0 %v303
    %367 = vmatpush1.bf16.msra.mxu0 %v302
    %368 = vmatprep.subr.bf16.mxu0 %v307
    %369 = vmatpush1.bf16.msra.mxu0 %v306
    %370 = vmatprep.subr.bf16.mxu0 %v311
    %371 = vmatpush1.bf16.msra.mxu0 %v310
    %372 = vmatprep.subr.bf16.mxu0 %v315
    %373 = vmatpush1.bf16.msra.mxu0 %v314
    %374 = vmatprep.subr.bf16.mxu0 %v319
    %375 = vmatpush1.bf16.msra.mxu0 %v318
    %376 = vmatprep.subr.bf16.mxu0 %v323
    %377 = vmatpush1.bf16.msra.mxu0 %v322
    %378 = vmatprep.subr.bf16.mxu0 %v327
    %379 = vmatpush1.bf16.msra.mxu0 %v326
    %380 = vmatprep.subr.bf16.mxu0 %v331
    %381 = vmatpush1.bf16.msra.mxu0 %v330
    %382 = vmatprep.subr.bf16.mxu0 0
    %383 = vmatpush1.bf16.msra.mxu0 0
    %384 = vmatprep.subr.bf16.mxu0 0
    %385 = vmatpush1.bf16.msra.mxu0 0
    %386 = vmatprep.subr.bf16.mxu0 0
    %387 = vmatpush1.bf16.msra.mxu0 0
    %388 = vmatprep.subr.bf16.mxu0 0
    %389 = vmatpush1.bf16.msra.mxu0 0
    %390 = vmatprep.subr.bf16.mxu0 0
    %391 = vmatpush1.bf16.msra.mxu0 0
    %392 = vmatprep.subr.bf16.mxu0 0
    %393 = vmatpush1.bf16.msra.mxu0 0
    %394 = vmatprep.subr.bf16.mxu0 0
    %395 = vmatpush1.bf16.msra.mxu0 0
    %396 = vmatprep.subr.bf16.mxu0 0
    %397 = vmatpush1.bf16.msra.mxu0 0
    %398 = vmatprep.mubr.bf16.mxu0 0
    %399 = vmatmul.mubr.bf16.gmra.mrb[0].mxu0 0
    %v400 = vpop.f32.mrb[0].mxu0
    %v401 = vadd.f32 0.0, %v400
    %v402 = vpop.f32.mrb[0].mxu0
    %v403 = vadd.f32 0.0, %v402
    %v404 = vpop.f32.mrb[0].mxu0
    %v405 = vpop.f32.mrb[0].mxu0
    %406 = vdwg.mxu0
    %407 = vmatprep.subr.bf16.mxu0 %v305
    %408 = vmatpush1.bf16.msra.mxu0 %v304
    %409 = vmatprep.subr.bf16.mxu0 %v309
    %410 = vmatpush1.bf16.msra.mxu0 %v308
    %411 = vmatprep.subr.bf16.mxu0 %v313
    %412 = vmatpush1.bf16.msra.mxu0 %v312
    %413 = vmatprep.subr.bf16.mxu0 %v317
    %414 = vmatpush1.bf16.msra.mxu0 %v316
    %415 = vmatprep.subr.bf16.mxu0 %v321
    %416 = vmatpush1.bf16.msra.mxu0 %v320
    %417 = vmatprep.subr.bf16.mxu0 %v325
    %418 = vmatpush1.bf16.msra.mxu0 %v324
    %419 = vmatprep.subr.bf16.mxu0 %v329
    %420 = vmatpush1.bf16.msra.mxu0 %v328
    %421 = vmatprep.subr.bf16.mxu0 %v333
    %422 = vmatpush1.bf16.msra.mxu0 %v332
    %423 = vmatprep.subr.bf16.mxu0 0
    %424 = vmatpush1.bf16.msra.mxu0 0
    %425 = vmatprep.subr.bf16.mxu0 0
    %426 = vmatpush1.bf16.msra.mxu0 0
    %427 = vmatprep.subr.bf16.mxu0 0
    %428 = vmatpush1.bf16.msra.mxu0 0
    %429 = vmatprep.subr.bf16.mxu0 0
    %430 = vmatpush1.bf16.msra.mxu0 0
    %431 = vmatprep.subr.bf16.mxu0 0
    %432 = vmatpush1.bf16.msra.mxu0 0
    %433 = vmatprep.subr.bf16.mxu0 0
    %434 = vmatpush1.bf16.msra.mxu0 0
    %435 = vmatprep.subr.bf16.mxu0 0
    %436 = vmatpush1.bf16.msra.mxu0 0
    %437 = vmatprep.subr.bf16.mxu0 0
    %438 = vmatpush1.bf16.msra.mxu0 0
    %439 = vmatprep.mubr.bf16.mxu0 0
    %440 = vmatmul.mubr.bf16.gmra.mrb[0].mxu0 0
    %v441 = vpop.f32.mrb[0].mxu0
    %v442 = vadd.f32 0.0, %v441
    %v443 = vpop.f32.mrb[0].mxu0
    %v444 = vadd.f32 0.0, %v443
    %v445 = vpop.f32.mrb[0].mxu0
    %v446 = vpop.f32.mrb[0].mxu0
    %447 = vdwg.mxu0
    %v448 = vadd.f32 %v202, %v401
    %v449 = vadd.f32 %v203, %v403
    %v450 = vadd.f32 %v204, %v442
    %v451 = vadd.f32 %v205, %v444
    %v452 = vtanh.pop %v448
    %v453 = vtanh.pop %v449
    %v454 = vtanh.pop %v450
    %v455 = vtanh.pop %v451
    %v456 = vmul.f32 %v452, 0.5
    %v457 = vmul.f32 %v453, 0.5
    %v458 = vmul.f32 %v454, 0.5
    %v459 = vadd.f32 %v456, 0.5
    %v460 = vadd.f32 %v457, 0.5
    %v461 = vadd.f32 %v458, 0.5
    %v462 = vmul.f32 %v460, 0.0
    %v463 = vmul.f32 %v459, %v455
    %v464 = vadd.f32 %v462, %v463
    %v465 = vtanh.pop %v464
    %v466 = vmul.f32 %v461, %v465
    %v467 = vpack.c.bf16 %v466, %v466
    %v500 = vunpack.c.l.b16 %v148
    %v501 = vunpack.c.h.b16 %v148
    %v502 = vunpack.c.l.b16 %v149
    %v503 = vunpack.c.h.b16 %v149
    %v504 = vunpack.c.l.b16 %v150
    %v505 = vunpack.c.h.b16 %v150
    %v506 = vunpack.c.l.b16 %v151
    %v507 = vunpack.c.h.b16 %v151
    %v508 = vunpack.c.l.b16 %v152
    %v509 = vunpack.c.h.b16 %v152
    %v510 = vunpack.c.l.b16 %v153
    %v511 = vunpack.c.h.b16 %v153
    %v512 = vunpack.c.l.b16 %v154
    %v513 = vunpack.c.h.b16 %v154
    %v514 = vunpack.c.l.b16 %v155
    %v515 = vunpack.c.h.b16 %v155
    %v516 = vunpack.c.l.b16 %v156
    %v517 = vunpack.c.h.b16 %v156
    %v518 = vunpack.c.l.b16 %v157
    %v519 = vunpack.c.h.b16 %v157
    %v520 = vunpack.c.l.b16 %v158
    %v521 = vunpack.c.h.b16 %v158
    %v522 = vunpack.c.l.b16 %v159
    %v523 = vunpack.c.h.b16 %v159
    %v524 = vunpack.c.l.b16 %v160
    %v525 = vunpack.c.h.b16 %v160
    %v526 = vunpack.c.l.b16 %v161
    %v527 = vunpack.c.h.b16 %v161
    %v528 = vunpack.c.l.b16 %v162
    %v529 = vunpack.c.h.b16 %v162
    %v530 = vunpack.c.l.b16 %v163
    %v531 = vunpack.c.h.b16 %v163
    %v532 = vunpack.c.l.b16 %v164
    %v533 = vunpack.c.h.b16 %v164
    %v534 = vunpack.c.l.b16 %v165
    %v535 = vunpack.c.h.b16 %v165
    %v536 = vunpack.c.l.b16 %v166
    %v537 = vunpack.c.h.b16 %v166
    %v538 = vunpack.c.l.b16 %v167
    %v539 = vunpack.c.h.b16 %v167
    %v540 = vunpack.c.l.b16 %v168
    %v541 = vunpack.c.h.b16 %v168
    %v542 = vunpack.c.l.b16 %v169
    %v543 = vunpack.c.h.b16 %v169
    %v544 = vunpack.c.l.b16 %v170
    %v545 = vunpack.c.h.b16 %v170
    %v546 = vunpack.c.l.b16 %v171
    %v547 = vunpack.c.h.b16 %v171
    %v548 = vunpack.c.l.b16 %v172
    %v549 = vunpack.c.h.b16 %v172
    %v550 = vunpack.c.l.b16 %v173
    %v551 = vunpack.c.h.b16 %v173
    %v552 = vunpack.c.l.b16 %v174
    %v553 = vunpack.c.h.b16 %v174
    %v554 = vunpack.c.l.b16 %v175
    %v555 = vunpack.c.h.b16 %v175
    %v556 = vunpack.c.l.b16 %v176
    %v557 = vunpack.c.h.b16 %v176
    %v558 = vunpack.c.l.b16 %v177
    %v559 = vunpack.c.h.b16 %v177
    %v560 = vunpack.c.l.b16 %v178
    %v561 = vunpack.c.h.b16 %v178
    %v562 = vunpack.c.l.b16 %v179
    %v563 = vunpack.c.h.b16 %v179
    %v564 = vpack.c.b16 %v504, %v500
    %v565 = vpack.c.b16 %v505, %v501
    %v566 = vpack.c.b16 %v506, %v502
    %v567 = vpack.c.b16 %v507, %v503
    %v568 = vpack.c.b16 %v512, %v508
    %v569 = vpack.c.b16 %v513, %v509
    %v570 = vpack.c.b16 %v514, %v510
    %v571 = vpack.c.b16 %v515, %v511
    %v572 = vpack.c.b16 %v520, %v516
    %v573 = vpack.c.b16 %v521, %v517
    %v574 = vpack.c.b16 %v522, %v518
    %v575 = vpack.c.b16 %v523, %v519
    %v576 = vpack.c.b16 %v528, %v524
    %v577 = vpack.c.b16 %v529, %v525
    %v578 = vpack.c.b16 %v530, %v526
    %v579 = vpack.c.b16 %v531, %v527
    %v580 = vpack.c.b16 %v536, %v532
    %v581 = vpack.c.b16 %v537, %v533
    %v582 = vpack.c.b16 %v538, %v534
    %v583 = vpack.c.b16 %v539, %v535
    %v584 = vpack.c.b16 %v544, %v540
    %v585 = vpack.c.b16 %v545, %v541
    %v586 = vpack.c.b16 %v546, %v542
    %v587 = vpack.c.b16 %v547, %v543
    %v588 = vpack.c.b16 %v552, %v548
    %v589 = vpack.c.b16 %v553, %v549
    %v590 = vpack.c.b16 %v554, %v550
    %v591 = vpack.c.b16 %v555, %v551
    %v592 = vpack.c.b16 %v560, %v556
    %v593 = vpack.c.b16 %v561, %v557
    %v594 = vpack.c.b16 %v562, %v558
    %v595 = vpack.c.b16 %v563, %v559
    %628 = vmatprep.subr.bf16.mxu0 %v565
    %629 = vmatpush1.bf16.msra.mxu0 %v564
    %630 = vmatprep.subr.bf16.mxu0 %v569
    %631 = vmatpush1.bf16.msra.mxu0 %v568
    %632 = vmatprep.subr.bf16.mxu0 %v573
    %633 = vmatpush1.bf16.msra.mxu0 %v572
    %634 = vmatprep.subr.bf16.mxu0 %v577
    %635 = vmatpush1.bf16.msra.mxu0 %v576
    %636 = vmatprep.subr.bf16.mxu0 %v581
    %637 = vmatpush1.bf16.msra.mxu0 %v580
    %638 = vmatprep.subr.bf16.mxu0 %v585
    %639 = vmatpush1.bf16.msra.mxu0 %v584
    %640 = vmatprep.subr.bf16.mxu0 %v589
    %641 = vmatpush1.bf16.msra.mxu0 %v588
    %642 = vmatprep.subr.bf16.mxu0 %v593
    %643 = vmatpush1.bf16.msra.mxu0 %v592
    %644 = vmatprep.subr.bf16.mxu0 0
    %645 = vmatpush1.bf16.msra.mxu0 0
    %646 = vmatprep.subr.bf16.mxu0 0
    %647 = vmatpush1.bf16.msra.mxu0 0
    %648 = vmatprep.subr.bf16.mxu0 0
    %649 = vmatpush1.bf16.msra.mxu0 0
    %650 = vmatprep.subr.bf16.mxu0 0
    %651 = vmatpush1.bf16.msra.mxu0 0
    %652 = vmatprep.subr.bf16.mxu0 0
    %653 = vmatpush1.bf16.msra.mxu0 0
    %654 = vmatprep.subr.bf16.mxu0 0
    %655 = vmatpush1.bf16.msra.mxu0 0
    %656 = vmatprep.subr.bf16.mxu0 0
    %657 = vmatpush1.bf16.msra.mxu0 0
    %658 = vmatprep.subr.bf16.mxu0 0
    %659 = vmatpush1.bf16.msra.mxu0 0
    %660 = vmatprep.mubr.bf16.mxu0 0
    %661 = vmatmul.mubr.bf16.gmra.mrb[0].mxu0 0
    %v662 = vpop.f32.mrb[0].mxu0
    %v663 = vadd.f32 0.0, %v662
    %v664 = vpop.f32.mrb[0].mxu0
    %v665 = vadd.f32 0.0, %v664
    %v666 = vpop.f32.mrb[0].mxu0
    %v667 = vpop.f32.mrb[0].mxu0
    %668 = vdwg.mxu0
    %669 = vmatprep.subr.bf16.mxu0 %v567
    %670 = vmatpush1.bf16.msra.mxu0 %v566
    %671 = vmatprep.subr.bf16.mxu0 %v571
    %672 = vmatpush1.bf16.msra.mxu0 %v570
    %673 = vmatprep.subr.bf16.mxu0 %v575
    %674 = vmatpush1.bf16.msra.mxu0 %v574
    %675 = vmatprep.subr.bf16.mxu0 %v579
    %676 = vmatpush1.bf16.msra.mxu0 %v578
    %677 = vmatprep.subr.bf16.mxu0 %v583
    %678 = vmatpush1.bf16.msra.mxu0 %v582
    %679 = vmatprep.subr.bf16.mxu0 %v587
    %680 = vmatpush1.bf16.msra.mxu0 %v586
    %681 = vmatprep.subr.bf16.mxu0 %v591
    %682 = vmatpush1.bf16.msra.mxu0 %v590
    %683 = vmatprep.subr.bf16.mxu0 %v595
    %684 = vmatpush1.bf16.msra.mxu0 %v594
    %685 = vmatprep.subr.bf16.mxu0 0
    %686 = vmatpush1.bf16.msra.mxu0 0
    %687 = vmatprep.subr.bf16.mxu0 0
    %688 = vmatpush1.bf16.msra.mxu0 0
    %689 = vmatprep.subr.bf16.mxu0 0
    %690 = vmatpush1.bf16.msra.mxu0 0
    %691 = vmatprep.subr.bf16.mxu0 0
    %692 = vmatpush1.bf16.msra.mxu0 0
    %693 = vmatprep.subr.bf16.mxu0 0
    %694 = vmatpush1.bf16.msra.mxu0 0
    %695 = vmatprep.subr.bf16.mxu0 0
    %696 = vmatpush1.bf16.msra.mxu0 0
    %697 = vmatprep.subr.bf16.mxu0 0
    %698 = vmatpush1.bf16.msra.mxu0 0
    %699 = vmatprep.subr.bf16.mxu0 0
    %700 = vmatpush1.bf16.msra.mxu0 0
    %701 = vmatprep.mubr.bf16.mxu0 0
    %702 = vmatmul.mubr.bf16.gmra.mrb[0].mxu0 0
    %v703 = vpop.f32.mrb[0].mxu0
    %v704 = vadd.f32 0.0, %v703
    %v705 = vpop.f32.mrb[0].mxu0
    %v706 = vadd.f32 0.0, %v705
    %v707 = vpop.f32.mrb[0].mxu0
    %v708 = vpop.f32.mrb[0].mxu0
    %709 = vdwg.mxu0
    %v742 = vunpack.c.l.b16 %v116
    %v743 = vunpack.c.h.b16 %v116
    %v744 = vunpack.c.l.b16 %v117
    %v745 = vunpack.c.h.b16 %v117
    %v746 = vunpack.c.l.b16 %v118
    %v747 = vunpack.c.h.b16 %v118
    %v748 = vunpack.c.l.b16 %v119
    %v749 = vunpack.c.h.b16 %v119
    %v750 = vunpack.c.l.b16 %v120
    %v751 = vunpack.c.h.b16 %v120
    %v752 = vunpack.c.l.b16 %v121
    %v753 = vunpack.c.h.b16 %v121
    %v754 = vunpack.c.l.b16 %v122
    %v755 = vunpack.c.h.b16 %v122
    %v756 = vunpack.c.l.b16 %v123
    %v757 = vunpack.c.h.b16 %v123
    %v758 = vunpack.c.l.b16 %v124
    %v759 = vunpack.c.h.b16 %v124
    %v760 = vunpack.c.l.b16 %v125
    %v761 = vunpack.c.h.b16 %v125
    %v762 = vunpack.c.l.b16 %v126
    %v763 = vunpack.c.h.b16 %v126
    %v764 = vunpack.c.l.b16 %v127
    %v765 = vunpack.c.h.b16 %v127
    %v766 = vunpack.c.l.b16 %v128
    %v767 = vunpack.c.h.b16 %v128
    %v768 = vunpack.c.l.b16 %v129
    %v769 = vunpack.c.h.b16 %v129
    %v770 = vunpack.c.l.b16 %v130
    %v771 = vunpack.c.h.b16 %v130
    %v772 = vunpack.c.l.b16 %v131
    %v773 = vunpack.c.h.b16 %v131
    %v774 = vunpack.c.l.b16 %v132
    %v775 = vunpack.c.h.b16 %v132
    %v776 = vunpack.c.l.b16 %v133
    %v777 = vunpack.c.h.b16 %v133
    %v778 = vunpack.c.l.b16 %v134
    %v779 = vunpack.c.h.b16 %v134
    %v780 = vunpack.c.l.b16 %v135
    %v781 = vunpack.c.h.b16 %v135
    %v782 = vunpack.c.l.b16 %v136
    %v783 = vunpack.c.h.b16 %v136
    %v784 = vunpack.c.l.b16 %v137
    %v785 = vunpack.c.h.b16 %v137
    %v786 = vunpack.c.l.b16 %v138
    %v787 = vunpack.c.h.b16 %v138
    %v788 = vunpack.c.l.b16 %v139
    %v789 = vunpack.c.h.b16 %v139
    %v790 = vunpack.c.l.b16 %v140
    %v791 = vunpack.c.h.b16 %v140
    %v792 = vunpack.c.l.b16 %v141
    %v793 = vunpack.c.h.b16 %v141
    %v794 = vunpack.c.l.b16 %v142
    %v795 = vunpack.c.h.b16 %v142
    %v796 = vunpack.c.l.b16 %v143
    %v797 = vunpack.c.h.b16 %v143
    %v798 = vunpack.c.l.b16 %v144
    %v799 = vunpack.c.h.b16 %v144
    %v800 = vunpack.c.l.b16 %v145
    %v801 = vunpack.c.h.b16 %v145
    %v802 = vunpack.c.l.b16 %v146
    %v803 = vunpack.c.h.b16 %v146
    %v804 = vunpack.c.l.b16 %v147
    %v805 = vunpack.c.h.b16 %v147
    %v806 = vpack.c.b16 %v746, %v742
    %v807 = vpack.c.b16 %v747, %v743
    %v808 = vpack.c.b16 %v748, %v744
    %v809 = vpack.c.b16 %v749, %v745
    %v810 = vpack.c.b16 %v754, %v750
    %v811 = vpack.c.b16 %v755, %v751
    %v812 = vpack.c.b16 %v756, %v752
    %v813 = vpack.c.b16 %v757, %v753
    %v814 = vpack.c.b16 %v762, %v758
    %v815 = vpack.c.b16 %v763, %v759
    %v816 = vpack.c.b16 %v764, %v760
    %v817 = vpack.c.b16 %v765, %v761
    %v818 = vpack.c.b16 %v770, %v766
    %v819 = vpack.c.b16 %v771, %v767
    %v820 = vpack.c.b16 %v772, %v768
    %v821 = vpack.c.b16 %v773, %v769
    %v822 = vpack.c.b16 %v778, %v774
    %v823 = vpack.c.b16 %v779, %v775
    %v824 = vpack.c.b16 %v780, %v776
    %v825 = vpack.c.b16 %v781, %v777
    %v826 = vpack.c.b16 %v786, %v782
    %v827 = vpack.c.b16 %v787, %v783
    %v828 = vpack.c.b16 %v788, %v784
    %v829 = vpack.c.b16 %v789, %v785
    %v830 = vpack.c.b16 %v794, %v790
    %v831 = vpack.c.b16 %v795, %v791
    %v832 = vpack.c.b16 %v796, %v792
    %v833 = vpack.c.b16 %v797, %v793
    %v834 = vpack.c.b16 %v802, %v798
    %v835 = vpack.c.b16 %v803, %v799
    %v836 = vpack.c.b16 %v804, %v800
    %v837 = vpack.c.b16 %v805, %v801
    %870 = vmatprep.subr.bf16.mxu0 %v807
    %871 = vmatpush1.bf16.msra.mxu0 %v806
    %872 = vmatprep.subr.bf16.mxu0 %v811
    %873 = vmatpush1.bf16.msra.mxu0 %v810
    %874 = vmatprep.subr.bf16.mxu0 %v815
    %875 = vmatpush1.bf16.msra.mxu0 %v814
    %876 = vmatprep.subr.bf16.mxu0 %v819
    %877 = vmatpush1.bf16.msra.mxu0 %v818
    %878 = vmatprep.subr.bf16.mxu0 %v823
    %879 = vmatpush1.bf16.msra.mxu0 %v822
    %880 = vmatprep.subr.bf16.mxu0 %v827
    %881 = vmatpush1.bf16.msra.mxu0 %v826
    %882 = vmatprep.subr.bf16.mxu0 %v831
    %883 = vmatpush1.bf16.msra.mxu0 %v830
    %884 = vmatprep.subr.bf16.mxu0 %v835
    %885 = vmatpush1.bf16.msra.mxu0 %v834
    %886 = vmatprep.subr.bf16.mxu0 0
    %887 = vmatpush1.bf16.msra.mxu0 0
    %888 = vmatprep.subr.bf16.mxu0 0
    %889 = vmatpush1.bf16.msra.mxu0 0
    %890 = vmatprep.subr.bf16.mxu0 0
    %891 = vmatpush1.bf16.msra.mxu0 0
    %892 = vmatprep.subr.bf16.mxu0 0
    %893 = vmatpush1.bf16.msra.mxu0 0
    %894 = vmatprep.subr.bf16.mxu0 0
    %895 = vmatpush1.bf16.msra.mxu0 0
    %896 = vmatprep.subr.bf16.mxu0 0
    %897 = vmatpush1.bf16.msra.mxu0 0
    %898 = vmatprep.subr.bf16.mxu0 0
    %899 = vmatpush1.bf16.msra.mxu0 0
    %900 = vmatprep.subr.bf16.mxu0 0
    %901 = vmatpush1.bf16.msra.mxu0 0
    %902 = vmatprep.mubr.bf16.mxu0 0
    %903 = vmatmul.mubr.bf16.gmra.mrb[0].mxu0 %v467
    %v904 = vpop.f32.mrb[0].mxu0
    %v905 = vadd.f32 %v663, %v904
    %v906 = vpop.f32.mrb[0].mxu0
    %v907 = vadd.f32 %v665, %v906
    %v908 = vpop.f32.mrb[0].mxu0
    %v909 = vpop.f32.mrb[0].mxu0
    %910 = vdwg.mxu0
    %911 = vmatprep.subr.bf16.mxu0 %v809
    %912 = vmatpush1.bf16.msra.mxu0 %v808
    %913 = vmatprep.subr.bf16.mxu0 %v813
    %914 = vmatpush1.bf16.msra.mxu0 %v812
    %915 = vmatprep.subr.bf16.mxu0 %v817
    %916 = vmatpush1.bf16.msra.mxu0 %v816
    %917 = vmatprep.subr.bf16.mxu0 %v821
    %918 = vmatpush1.bf16.msra.mxu0 %v820
    %919 = vmatprep.subr.bf16.mxu0 %v825
    %920 = vmatpush1.bf16.msra.mxu0 %v824
    %921 = vmatprep.subr.bf16.mxu0 %v829
    %922 = vmatpush1.bf16.msra.mxu0 %v828
    %923 = vmatprep.subr.bf16.mxu0 %v833
    %924 = vmatpush1.bf16.msra.mxu0 %v832
    %925 = vmatprep.subr.bf16.mxu0 %v837
    %926 = vmatpush1.bf16.msra.mxu0 %v836
    %927 = vmatprep.subr.bf16.mxu0 0
    %928 = vmatpush1.bf16.msra.mxu0 0
    %929 = vmatprep.subr.bf16.mxu0 0
    %930 = vmatpush1.bf16.msra.mxu0 0
    %931 = vmatprep.subr.bf16.mxu0 0
    %932 = vmatpush1.bf16.msra.mxu0 0
    %933 = vmatprep.subr.bf16.mxu0 0
    %934 = vmatpush1.bf16.msra.mxu0 0
    %935 = vmatprep.subr.bf16.mxu0 0
    %936 = vmatpush1.bf16.msra.mxu0 0
    %937 = vmatprep.subr.bf16.mxu0 0
    %938 = vmatpush1.bf16.msra.mxu0 0
    %939 = vmatprep.subr.bf16.mxu0 0
    %940 = vmatpush1.bf16.msra.mxu0 0
    %941 = vmatprep.subr.bf16.mxu0 0
    %942 = vmatpush1.bf16.msra.mxu0 0
    %943 = vmatprep.mubr.bf16.mxu0 0
    %944 = vmatmul.mubr.bf16.gmra.mrb[0].mxu0 %v467
    %v945 = vpop.f32.mrb[0].mxu0
    %v946 = vadd.f32 %v704, %v945
    %v947 = vpop.f32.mrb[0].mxu0
    %v948 = vadd.f32 %v706, %v947
    %v949 = vpop.f32.mrb[0].mxu0
    %v950 = vpop.f32.mrb[0].mxu0
    %951 = vdwg.mxu0
    %v952 = vadd.f32 %v905, %v185
    %v953 = vadd.f32 %v907, %v189
    %v954 = vadd.f32 %v946, %v193
    %v955 = vadd.f32 %v948, %v197
    %v956 = vtanh.pop %v952
    %v957 = vtanh.pop %v953
    %v958 = vtanh.pop %v954
    %v959 = vtanh.pop %v955
    %v960 = vmul.f32 %v956, 0.5
    %v961 = vmul.f32 %v957, 0.5
    %v962 = vmul.f32 %v958, 0.5
    %v963 = vadd.f32 %v960, 0.5
    %v964 = vadd.f32 %v961, 0.5
    %v965 = vadd.f32 %v962, 0.5
    %v966 = vmul.f32 %v964, 0.0
    %v967 = vmul.f32 %v963, %v959
    %v968 = vadd.f32 %v966, %v967
    %v969 = vtanh.pop %v968
    %v970 = vmul.f32 %v965, %v969
    %s971 = scalar_lea.vmem [#allocation3], 32
    %v972 = vld [vmem:[%s971] sm:$0xff]
    %v973 = vld [vmem:[%s971 + $0x8] sm:$0xff]
    %v974 = vld [vmem:[%s971 + $0x10] sm:$0xff]
    %v975 = vld [vmem:[%s971 + $0x18] sm:$0xff]
    %976 = vmatprep.subr.bf16.mxu0 %v303
    %977 = vmatpush1.bf16.msra.mxu0 %v302
    %978 = vmatprep.subr.bf16.mxu0 %v307
    %979 = vmatpush1.bf16.msra.mxu0 %v306
    %980 = vmatprep.subr.bf16.mxu0 %v311
    %981 = vmatpush1.bf16.msra.mxu0 %v310
    %982 = vmatprep.subr.bf16.mxu0 %v315
    %983 = vmatpush1.bf16.msra.mxu0 %v314
    %984 = vmatprep.subr.bf16.mxu0 %v319
    %985 = vmatpush1.bf16.msra.mxu0 %v318
    %986 = vmatprep.subr.bf16.mxu0 %v323
    %987 = vmatpush1.bf16.msra.mxu0 %v322
    %988 = vmatprep.subr.bf16.mxu0 %v327
    %989 = vmatpush1.bf16.msra.mxu0 %v326
    %990 = vmatprep.subr.bf16.mxu0 %v331
    %991 = vmatpush1.bf16.msra.mxu0 %v330
    %992 = vmatprep.subr.bf16.mxu0 0
    %993 = vmatpush1.bf16.msra.mxu0 0
    %994 = vmatprep.subr.bf16.mxu0 0
    %995 = vmatpush1.bf16.msra.mxu0 0
    %996 = vmatprep.subr.bf16.mxu0 0
    %997 = vmatpush1.bf16.msra.mxu0 0
    %998 = vmatprep.subr.bf16.mxu0 0
    %999 = vmatpush1.bf16.msra.mxu0 0
    %1000 = vmatprep.subr.bf16.mxu0 0
    %1001 = vmatpush1.bf16.msra.mxu0 0
    %1002 = vmatprep.subr.bf16.mxu0 0
    %1003 = vmatpush1.bf16.msra.mxu0 0
    %1004 = vmatprep.subr.bf16.mxu0 0
    %1005 = vmatpush1.bf16.msra.mxu0 0
    %1006 = vmatprep.subr.bf16.mxu0 0
    %1007 = vmatpush1.bf16.msra.mxu0 0
    %1008 = vmatprep.mubr.bf16.mxu0 0
    %1009 = vmatmul.mubr.bf16.gmra.mrb[0].mxu0 %v467
    %v1010 = vpop.f32.mrb[0].mxu0
    %v1011 = vadd.f32 0.0, %v1010
    %v1012 = vpop.f32.mrb[0].mxu0
    %v1013 = vadd.f32 0.0, %v1012
    %v1014 = vpop.f32.mrb[0].mxu0
    %v1015 = vpop.f32.mrb[0].mxu0
    %1016 = vdwg.mxu0
    %1017 = vmatprep.subr.bf16.mxu0 %v305
    %1018 = vmatpush1.bf16.msra.mxu0 %v304
    %1019 = vmatprep.subr.bf16.mxu0 %v309
    %1020 = vmatpush1.bf16.msra.mxu0 %v308
    %1021 = vmatprep.subr.bf16.mxu0 %v313
    %1022 = vmatpush1.bf16.msra.mxu0 %v312
    %1023 = vmatprep.subr.bf16.mxu0 %v317
    %1024 = vmatpush1.bf16.msra.mxu0 %v316
    %1025 = vmatprep.subr.bf16.mxu0 %v321
    %1026 = vmatpush1.bf16.msra.mxu0 %v320
    %1027 = vmatprep.subr.bf16.mxu0 %v325
    %1028 = vmatpush1.bf16.msra.mxu0 %v324
    %1029 = vmatprep.subr.bf16.mxu0 %v329
    %1030 = vmatpush1.bf16.msra.mxu0 %v328
    %1031 = vmatprep.subr.bf16.mxu0 %v333
    %1032 = vmatpush1.bf16.msra.mxu0 %v332
    %1033 = vmatprep.subr.bf16.mxu0 0
    %1034 = vmatpush1.bf16.msra.mxu0 0
    %1035 = vmatprep.subr.bf16.mxu0 0
    %1036 = vmatpush1.bf16.msra.mxu0 0
    %1037 = vmatprep.subr.bf16.mxu0 0
    %1038 = vmatpush1.bf16.msra.mxu0 0
    %1039 = vmatprep.subr.bf16.mxu0 0
    %1040 = vmatpush1.bf16.msra.mxu0 0
    %1041 = vmatprep.subr.bf16.mxu0 0
    %1042 = vmatpush1.bf16.msra.mxu0 0
    %1043 = vmatprep.subr.bf16.mxu0 0
    %1044 = vmatpush1.bf16.msra.mxu0 0
    %1045 = vmatprep.subr.bf16.mxu0 0
    %1046 = vmatpush1.bf16.msra.mxu0 0
    %1047 = vmatprep.subr.bf16.mxu0 0
    %1048 = vmatpush1.bf16.msra.mxu0 0
    %1049 = vmatprep.mubr.bf16.mxu0 0
    %1050 = vmatmul.mubr.bf16.gmra.mrb[0].mxu0 %v467
    %v1051 = vpop.f32.mrb[0].mxu0
    %v1052 = vadd.f32 0.0, %v1051
    %v1053 = vpop.f32.mrb[0].mxu0
    %v1054 = vadd.f32 0.0, %v1053
    %v1055 = vpop.f32.mrb[0].mxu0
    %v1056 = vpop.f32.mrb[0].mxu0
    %1057 = vdwg.mxu0
    %v1058 = vadd.f32 %v972, %v1011
    %v1059 = vadd.f32 %v973, %v1013
    %v1060 = vadd.f32 %v974, %v1052
    %v1061 = vadd.f32 %v975, %v1054
    %v1062 = vtanh.pop %v1058
    %v1063 = vtanh.pop %v1059
    %v1064 = vtanh.pop %v1060
    %v1065 = vtanh.pop %v1061
    %v1066 = vmul.f32 %v1062, 0.5
    %v1067 = vmul.f32 %v1063, 0.5
    %v1068 = vmul.f32 %v1064, 0.5
    %v1069 = vadd.f32 %v1066, 0.5
    %v1070 = vadd.f32 %v1067, 0.5
    %v1071 = vadd.f32 %v1068, 0.5
    %v1072 = vmul.f32 %v1070, %v464
    %v1073 = vmul.f32 %v1069, %v1065
    %v1074 = vadd.f32 %v1072, %v1073
    %v1075 = vtanh.pop %v1074
    %v1076 = vmul.f32 %v1071, %v1075
    %v1077 = vpack.c.bf16 %v1076, %v1076
    %v1078 = vpack.c.bf16 %v970, %v970
    %1079 = vmatprep.subr.bf16.mxu0 %v565
    %1080 = vmatpush1.bf16.msra.mxu0 %v564
    %1081 = vmatprep.subr.bf16.mxu0 %v569
    %1082 = vmatpush1.bf16.msra.mxu0 %v568
    %1083 = vmatprep.subr.bf16.mxu0 %v573
    %1084 = vmatpush1.bf16.msra.mxu0 %v572
    %1085 = vmatprep.subr.bf16.mxu0 %v577
    %1086 = vmatpush1.bf16.msra.mxu0 %v576
    %1087 = vmatprep.subr.bf16.mxu0 %v581
    %1088 = vmatpush1.bf16.msra.mxu0 %v580
    %1089 = vmatprep.subr.bf16.mxu0 %v585
    %1090 = vmatpush1.bf16.msra.mxu0 %v584
    %1091 = vmatprep.subr.bf16.mxu0 %v589
    %1092 = vmatpush1.bf16.msra.mxu0 %v588
    %1093 = vmatprep.subr.bf16.mxu0 %v593
    %1094 = vmatpush1.bf16.msra.mxu0 %v592
    %1095 = vmatprep.subr.bf16.mxu0 0
    %1096 = vmatpush1.bf16.msra.mxu0 0
    %1097 = vmatprep.subr.bf16.mxu0 0
    %1098 = vmatpush1.bf16.msra.mxu0 0
    %1099 = vmatprep.subr.bf16.mxu0 0
    %1100 = vmatpush1.bf16.msra.mxu0 0
    %1101 = vmatprep.subr.bf16.mxu0 0
    %1102 = vmatpush1.bf16.msra.mxu0 0
    %1103 = vmatprep.subr.bf16.mxu0 0
    %1104 = vmatpush1.bf16.msra.mxu0 0
    %1105 = vmatprep.subr.bf16.mxu0 0
    %1106 = vmatpush1.bf16.msra.mxu0 0
    %1107 = vmatprep.subr.bf16.mxu0 0
    %1108 = vmatpush1.bf16.msra.mxu0 0
    %1109 = vmatprep.subr.bf16.mxu0 0
    %1110 = vmatpush1.bf16.msra.mxu0 0
    %1111 = vmatprep.mubr.bf16.mxu0 0
    %1112 = vmatmul.mubr.bf16.gmra.mrb[0].mxu0 %v1078
    %v1113 = vpop.f32.mrb[0].mxu0
    %v1114 = vadd.f32 0.0, %v1113
    %v1115 = vpop.f32.mrb[0].mxu0
    %v1116 = vadd.f32 0.0, %v1115
    %v1117 = vpop.f32.mrb[0].mxu0
    %v1118 = vpop.f32.mrb[0].mxu0
    %1119 = vdwg.mxu0
    %1120 = vmatprep.subr.bf16.mxu0 %v567
    %1121 = vmatpush1.bf16.msra.mxu0 %v566
    %1122 = vmatprep.subr.bf16.mxu0 %v571
    %1123 = vmatpush1.bf16.msra.mxu0 %v570
    %1124 = vmatprep.subr.bf16.mxu0 %v575
    %1125 = vmatpush1.bf16.msra.mxu0 %v574
    %1126 = vmatprep.subr.bf16.mxu0 %v579
    %1127 = vmatpush1.bf16.msra.mxu0 %v578
    %1128 = vmatprep.subr.bf16.mxu0 %v583
    %1129 = vmatpush1.bf16.msra.mxu0 %v582
    %1130 = vmatprep.subr.bf16.mxu0 %v587
    %1131 = vmatpush1.bf16.msra.mxu0 %v586
    %1132 = vmatprep.subr.bf16.mxu0 %v591
    %1133 = vmatpush1.bf16.msra.mxu0 %v590
    %1134 = vmatprep.subr.bf16.mxu0 %v595
    %1135 = vmatpush1.bf16.msra.mxu0 %v594
    %1136 = vmatprep.subr.bf16.mxu0 0
    %1137 = vmatpush1.bf16.msra.mxu0 0
    %1138 = vmatprep.subr.bf16.mxu0 0
    %1139 = vmatpush1.bf16.msra.mxu0 0
    %1140 = vmatprep.subr.bf16.mxu0 0
    %1141 = vmatpush1.bf16.msra.mxu0 0
    %1142 = vmatprep.subr.bf16.mxu0 0
    %1143 = vmatpush1.bf16.msra.mxu0 0
    %1144 = vmatprep.subr.bf16.mxu0 0
    %1145 = vmatpush1.bf16.msra.mxu0 0
    %1146 = vmatprep.subr.bf16.mxu0 0
    %1147 = vmatpush1.bf16.msra.mxu0 0
    %1148 = vmatprep.subr.bf16.mxu0 0
    %1149 = vmatpush1.bf16.msra.mxu0 0
    %1150 = vmatprep.subr.bf16.mxu0 0
    %1151 = vmatpush1.bf16.msra.mxu0 0
    %1152 = vmatprep.mubr.bf16.mxu0 0
    %1153 = vmatmul.mubr.bf16.gmra.mrb[0].mxu0 %v1078
    %v1154 = vpop.f32.mrb[0].mxu0
    %v1155 = vadd.f32 0.0, %v1154
    %v1156 = vpop.f32.mrb[0].mxu0
    %v1157 = vadd.f32 0.0, %v1156
    %v1158 = vpop.f32.mrb[0].mxu0
    %v1159 = vpop.f32.mrb[0].mxu0
    %1160 = vdwg.mxu0
    %1161 = vmatprep.subr.bf16.mxu0 %v807
    %1162 = vmatpush1.bf16.msra.mxu0 %v806
    %1163 = vmatprep.subr.bf16.mxu0 %v811
    %1164 = vmatpush1.bf16.msra.mxu0 %v810
    %1165 = vmatprep.subr.bf16.mxu0 %v815
    %1166 = vmatpush1.bf16.msra.mxu0 %v814
    %1167 = vmatprep.subr.bf16.mxu0 %v819
    %1168 = vmatpush1.bf16.msra.mxu0 %v818
    %1169 = vmatprep.subr.bf16.mxu0 %v823
    %1170 = vmatpush1.bf16.msra.mxu0 %v822
    %1171 = vmatprep.subr.bf16.mxu0 %v827
    %1172 = vmatpush1.bf16.msra.mxu0 %v826
    %1173 = vmatprep.subr.bf16.mxu0 %v831
    %1174 = vmatpush1.bf16.msra.mxu0 %v830
    %1175 = vmatprep.subr.bf16.mxu0 %v835
    %1176 = vmatpush1.bf16.msra.mxu0 %v834
    %1177 = vmatprep.subr.bf16.mxu0 0
    %1178 = vmatpush1.bf16.msra.mxu0 0
    %1179 = vmatprep.subr.bf16.mxu0 0
    %1180 = vmatpush1.bf16.msra.mxu0 0
    %1181 = vmatprep.subr.bf16.mxu0 0
    %1182 = vmatpush1.bf16.msra.mxu0 0
    %1183 = vmatprep.subr.bf16.mxu0 0
    %1184 = vmatpush1.bf16.msra.mxu0 0
    %1185 = vmatprep.subr.bf16.mxu0 0
    %1186 = vmatpush1.bf16.msra.mxu0 0
    %1187 = vmatprep.subr.bf16.mxu0 0
    %1188 = vmatpush1.bf16.msra.mxu0 0
    %1189 = vmatprep.subr.bf16.mxu0 0
    %1190 = vmatpush1.bf16.msra.mxu0 0
    %1191 = vmatprep.subr.bf16.mxu0 0
    %1192 = vmatpush1.bf16.msra.mxu0 0
    %1193 = vmatprep.mubr.bf16.mxu0 0
    %1194 = vmatmul.mubr.bf16.gmra.mrb[0].mxu0 %v1077
    %v1195 = vpop.f32.mrb[0].mxu0
    %v1196 = vadd.f32 %v1114, %v1195
    %v1197 = vpop.f32.mrb[0].mxu0
    %v1198 = vadd.f32 %v1116, %v1197
    %v1199 = vpop.f32.mrb[0].mxu0
    %v1200 = vpop.f32.mrb[0].mxu0
    %1201 = vdwg.mxu0
    %1202 = vmatprep.subr.bf16.mxu0 %v809
    %1203 = vmatpush1.bf16.msra.mxu0 %v808
    %1204 = vmatprep.subr.bf16.mxu0 %v813
    %1205 = vmatpush1.bf16.msra.mxu0 %v812
    %1206 = vmatprep.subr.bf16.mxu0 %v817
    %1207 = vmatpush1.bf16.msra.mxu0 %v816
    %1208 = vmatprep.subr.bf16.mxu0 %v821
    %1209 = vmatpush1.bf16.msra.mxu0 %v820
    %1210 = vmatprep.subr.bf16.mxu0 %v825
    %1211 = vmatpush1.bf16.msra.mxu0 %v824
    %1212 = vmatprep.subr.bf16.mxu0 %v829
    %1213 = vmatpush1.bf16.msra.mxu0 %v828
    %1214 = vmatprep.subr.bf16.mxu0 %v833
    %1215 = vmatpush1.bf16.msra.mxu0 %v832
    %1216 = vmatprep.subr.bf16.mxu0 %v837
    %1217 = vmatpush1.bf16.msra.mxu0 %v836
    %1218 = vmatprep.subr.bf16.mxu0 0
    %1219 = vmatpush1.bf16.msra.mxu0 0
    %1220 = vmatprep.subr.bf16.mxu0 0
    %1221 = vmatpush1.bf16.msra.mxu0 0
    %1222 = vmatprep.subr.bf16.mxu0 0
    %1223 = vmatpush1.bf16.msra.mxu0 0
    %1224 = vmatprep.subr.bf16.mxu0 0
    %1225 = vmatpush1.bf16.msra.mxu0 0
    %1226 = vmatprep.subr.bf16.mxu0 0
    %1227 = vmatpush1.bf16.msra.mxu0 0
    %1228 = vmatprep.subr.bf16.mxu0 0
    %1229 = vmatpush1.bf16.msra.mxu0 0
    %1230 = vmatprep.subr.bf16.mxu0 0
    %1231 = vmatpush1.bf16.msra.mxu0 0
    %1232 = vmatprep.subr.bf16.mxu0 0
    %1233 = vmatpush1.bf16.msra.mxu0 0
    %1234 = vmatprep.mubr.bf16.mxu0 0
    %1235 = vmatmul.mubr.bf16.gmra.mrb[0].mxu0 %v1077
    %v1236 = vpop.f32.mrb[0].mxu0
    %v1237 = vadd.f32 %v1155, %v1236
    %v1238 = vpop.f32.mrb[0].mxu0
    %v1239 = vadd.f32 %v1157, %v1238
    %v1240 = vpop.f32.mrb[0].mxu0
    %v1241 = vpop.f32.mrb[0].mxu0
    %1242 = vdwg.mxu0
    %v1243 = vadd.f32 %v1196, %v185
    %v1244 = vadd.f32 %v1198, %v189
    %v1245 = vadd.f32 %v1237, %v193
    %v1246 = vadd.f32 %v1239, %v197
    %v1247 = vtanh.pop %v1243
    %v1248 = vtanh.pop %v1244
    %v1249 = vtanh.pop %v1245
    %v1250 = vtanh.pop %v1246
    %v1251 = vmul.f32 %v1247, 0.5
    %v1252 = vmul.f32 %v1248, 0.5
    %v1253 = vmul.f32 %v1249, 0.5
    %v1254 = vadd.f32 %v1251, 0.5
    %v1255 = vadd.f32 %v1252, 0.5
    %v1256 = vadd.f32 %v1253, 0.5
    %v1257 = vmul.f32 %v1255, %v968
    %v1258 = vmul.f32 %v1254, %v1250
    %v1259 = vadd.f32 %v1257, %v1258
    %v1260 = vtanh.pop %v1259
    %v1261 = vmul.f32 %v1256, %v1260
    %s1262 = scalar_lea.vmem [#allocation3], 64
    %v1263 = vld [vmem:[%s1262] sm:$0xff]
    %v1264 = vld [vmem:[%s1262 + $0x8] sm:$0xff]
    %v1265 = vld [vmem:[%s1262 + $0x10] sm:$0xff]
    %v1266 = vld [vmem:[%s1262 + $0x18] sm:$0xff]
    %1267 = vmatprep.subr.bf16.mxu0 %v303
    %1268 = vmatpush1.bf16.msra.mxu0 %v302
    %1269 = vmatprep.subr.bf16.mxu0 %v307
    %1270 = vmatpush1.bf16.msra.mxu0 %v306
    %1271 = vmatprep.subr.bf16.mxu0 %v311
    %1272 = vmatpush1.bf16.msra.mxu0 %v310
    %1273 = vmatprep.subr.bf16.mxu0 %v315
    %1274 = vmatpush1.bf16.msra.mxu0 %v314
    %1275 = vmatprep.subr.bf16.mxu0 %v319
    %1276 = vmatpush1.bf16.msra.mxu0 %v318
    %1277 = vmatprep.subr.bf16.mxu0 %v323
    %1278 = vmatpush1.bf16.msra.mxu0 %v322
    %1279 = vmatprep.subr.bf16.mxu0 %v327
    %1280 = vmatpush1.bf16.msra.mxu0 %v326
    %1281 = vmatprep.subr.bf16.mxu0 %v331
    %1282 = vmatpush1.bf16.msra.mxu0 %v330
    %1283 = vmatprep.subr.bf16.mxu0 0
    %1284 = vmatpush1.bf16.msra.mxu0 0
    %1285 = vmatprep.subr.bf16.mxu0 0
    %1286 = vmatpush1.bf16.msra.mxu0 0
    %1287 = vmatprep.subr.bf16.mxu0 0
    %1288 = vmatpush1.bf16.msra.mxu0 0
    %1289 = vmatprep.subr.bf16.mxu0 0
    %1290 = vmatpush1.bf16.msra.mxu0 0
    %1291 = vmatprep.subr.bf16.mxu0 0
    %1292 = vmatpush1.bf16.msra.mxu0 0
    %1293 = vmatprep.subr.bf16.mxu0 0
    %1294 = vmatpush1.bf16.msra.mxu0 0
    %1295 = vmatprep.subr.bf16.mxu0 0
    %1296 = vmatpush1.bf16.msra.mxu0 0
    %1297 = vmatprep.subr.bf16.mxu0 0
    %1298 = vmatpush1.bf16.msra.mxu0 0
    %1299 = vmatprep.mubr.bf16.mxu0 0
    %1300 = vmatmul.mubr.bf16.gmra.mrb[0].mxu0 %v1077
    %v1301 = vpop.f32.mrb[0].mxu0
    %v1302 = vadd.f32 0.0, %v1301
    %v1303 = vpop.f32.mrb[0].mxu0
    %v1304 = vadd.f32 0.0, %v1303
    %v1305 = vpop.f32.mrb[0].mxu0
    %v1306 = vpop.f32.mrb[0].mxu0
    %1307 = vdwg.mxu0
    %1308 = vmatprep.subr.bf16.mxu0 %v305
    %1309 = vmatpush1.bf16.msra.mxu0 %v304
    %1310 = vmatprep.subr.bf16.mxu0 %v309
    %1311 = vmatpush1.bf16.msra.mxu0 %v308
    %1312 = vmatprep.subr.bf16.mxu0 %v313
    %1313 = vmatpush1.bf16.msra.mxu0 %v312
    %1314 = vmatprep.subr.bf16.mxu0 %v317
    %1315 = vmatpush1.bf16.msra.mxu0 %v316
    %1316 = vmatprep.subr.bf16.mxu0 %v321
    %1317 = vmatpush1.bf16.msra.mxu0 %v320
    %1318 = vmatprep.subr.bf16.mxu0 %v325
    %1319 = vmatpush1.bf16.msra.mxu0 %v324
    %1320 = vmatprep.subr.bf16.mxu0 %v329
    %1321 = vmatpush1.bf16.msra.mxu0 %v328
    %1322 = vmatprep.subr.bf16.mxu0 %v333
    %1323 = vmatpush1.bf16.msra.mxu0 %v332
    %1324 = vmatprep.subr.bf16.mxu0 0
    %1325 = vmatpush1.bf16.msra.mxu0 0
    %1326 = vmatprep.subr.bf16.mxu0 0
    %1327 = vmatpush1.bf16.msra.mxu0 0
    %1328 = vmatprep.subr.bf16.mxu0 0
    %1329 = vmatpush1.bf16.msra.mxu0 0
    %1330 = vmatprep.subr.bf16.mxu0 0
    %1331 = vmatpush1.bf16.msra.mxu0 0
    %1332 = vmatprep.subr.bf16.mxu0 0
    %1333 = vmatpush1.bf16.msra.mxu0 0
    %1334 = vmatprep.subr.bf16.mxu0 0
    %1335 = vmatpush1.bf16.msra.mxu0 0
    %1336 = vmatprep.subr.bf16.mxu0 0
    %1337 = vmatpush1.bf16.msra.mxu0 0
    %1338 = vmatprep.subr.bf16.mxu0 0
    %1339 = vmatpush1.bf16.msra.mxu0 0
    %1340 = vmatprep.mubr.bf16.mxu0 0
    %1341 = vmatmul.mubr.bf16.gmra.mrb[0].mxu0 %v1077
    %v1342 = vpop.f32.mrb[0].mxu0
    %v1343 = vadd.f32 0.0, %v1342
    %v1344 = vpop.f32.mrb[0].mxu0
    %v1345 = vadd.f32 0.0, %v1344
    %v1346 = vpop.f32.mrb[0].mxu0
    %v1347 = vpop.f32.mrb[0].mxu0
    %1348 = vdwg.mxu0
    %v1349 = vadd.f32 %v1263, %v1302
    %v1350 = vadd.f32 %v1264, %v1304
    %v1351 = vadd.f32 %v1265, %v1343
    %v1352 = vadd.f32 %v1266, %v1345
    %v1353 = vtanh.pop %v1349
    %v1354 = vtanh.pop %v1350
    %v1355 = vtanh.pop %v1351
    %v1356 = vtanh.pop %v1352
    %v1357 = vmul.f32 %v1353, 0.5
    %v1358 = vmul.f32 %v1354, 0.5
    %v1359 = vmul.f32 %v1355, 0.5
    %v1360 = vadd.f32 %v1357, 0.5
    %v1361 = vadd.f32 %v1358, 0.5
    %v1362 = vadd.f32 %v1359, 0.5
    %v1363 = vmul.f32 %v1361, %v1074
    %v1364 = vmul.f32 %v1360, %v1356
    %v1365 = vadd.f32 %v1363, %v1364
    %v1366 = vtanh.pop %v1365
    %v1367 = vmul.f32 %v1362, %v1366
    %v1368 = vpack.c.bf16 %v1367, %v1367
    %v1369 = vpack.c.bf16 %v1261, %v1261
    %1370 = vmatprep.subr.bf16.mxu0 %v565
    %1371 = vmatpush1.bf16.msra.mxu0 %v564
    %1372 = vmatprep.subr.bf16.mxu0 %v569
    %1373 = vmatpush1.bf16.msra.mxu0 %v568
    %1374 = vmatprep.subr.bf16.mxu0 %v573
    %1375 = vmatpush1.bf16.msra.mxu0 %v572
    %1376 = vmatprep.subr.bf16.mxu0 %v577
    %1377 = vmatpush1.bf16.msra.mxu0 %v576
    %1378 = vmatprep.subr.bf16.mxu0 %v581
    %1379 = vmatpush1.bf16.msra.mxu0 %v580
    %1380 = vmatprep.subr.bf16.mxu0 %v585
    %1381 = vmatpush1.bf16.msra.mxu0 %v584
    %1382 = vmatprep.subr.bf16.mxu0 %v589
    %1383 = vmatpush1.bf16.msra.mxu0 %v588
    %1384 = vmatprep.subr.bf16.mxu0 %v593
    %1385 = vmatpush1.bf16.msra.mxu0 %v592
    %1386 = vmatprep.subr.bf16.mxu0 0
    %1387 = vmatpush1.bf16.msra.mxu0 0
    %1388 = vmatprep.subr.bf16.mxu0 0
    %1389 = vmatpush1.bf16.msra.mxu0 0
    %1390 = vmatprep.subr.bf16.mxu0 0
    %1391 = vmatpush1.bf16.msra.mxu0 0
    %1392 = vmatprep.subr.bf16.mxu0 0
    %1393 = vmatpush1.bf16.msra.mxu0 0
    %1394 = vmatprep.subr.bf16.mxu0 0
    %1395 = vmatpush1.bf16.msra.mxu0 0
    %1396 = vmatprep.subr.bf16.mxu0 0
    %1397 = vmatpush1.bf16.msra.mxu0 0
    %1398 = vmatprep.subr.bf16.mxu0 0
    %1399 = vmatpush1.bf16.msra.mxu0 0
    %1400 = vmatprep.subr.bf16.mxu0 0
    %1401 = vmatpush1.bf16.msra.mxu0 0
    %1402 = vmatprep.mubr.bf16.mxu0 0
    %1403 = vmatmul.mubr.bf16.gmra.mrb[0].mxu0 %v1369
    %v1404 = vpop.f32.mrb[0].mxu0
    %v1405 = vadd.f32 0.0, %v1404
    %v1406 = vpop.f32.mrb[0].mxu0
    %v1407 = vadd.f32 0.0, %v1406
    %v1408 = vpop.f32.mrb[0].mxu0
    %v1409 = vpop.f32.mrb[0].mxu0
    %1410 = vdwg.mxu0
    %1411 = vmatprep.subr.bf16.mxu0 %v567
    %1412 = vmatpush1.bf16.msra.mxu0 %v566
    %1413 = vmatprep.subr.bf16.mxu0 %v571
    %1414 = vmatpush1.bf16.msra.mxu0 %v570
    %1415 = vmatprep.subr.bf16.mxu0 %v575
    %1416 = vmatpush1.bf16.msra.mxu0 %v574
    %1417 = vmatprep.subr.bf16.mxu0 %v579
    %1418 = vmatpush1.bf16.msra.mxu0 %v578
    %1419 = vmatprep.subr.bf16.mxu0 %v583
    %1420 = vmatpush1.bf16.msra.mxu0 %v582
    %1421 = vmatprep.subr.bf16.mxu0 %v587
    %1422 = vmatpush1.bf16.msra.mxu0 %v586
    %1423 = vmatprep.subr.bf16.mxu0 %v591
    %1424 = vmatpush1.bf16.msra.mxu0 %v590
    %1425 = vmatprep.subr.bf16.mxu0 %v595
    %1426 = vmatpush1.bf16.msra.mxu0 %v594
    %1427 = vmatprep.subr.bf16.mxu0 0
    %1428 = vmatpush1.bf16.msra.mxu0 0
    %1429 = vmatprep.subr.bf16.mxu0 0
    %1430 = vmatpush1.bf16.msra.mxu0 0
    %1431 = vmatprep.subr.bf16.mxu0 0
    %1432 = vmatpush1.bf16.msra.mxu0 0
    %1433 = vmatprep.subr.bf16.mxu0 0
    %1434 = vmatpush1.bf16.msra.mxu0 0
    %1435 = vmatprep.subr.bf16.mxu0 0
    %1436 = vmatpush1.bf16.msra.mxu0 0
    %1437 = vmatprep.subr.bf16.mxu0 0
    %1438 = vmatpush1.bf16.msra.mxu0 0
    %1439 = vmatprep.subr.bf16.mxu0 0
    %1440 = vmatpush1.bf16.msra.mxu0 0
    %1441 = vmatprep.subr.bf16.mxu0 0
    %1442 = vmatpush1.bf16.msra.mxu0 0
    %1443 = vmatprep.mubr.bf16.mxu0 0
    %1444 = vmatmul.mubr.bf16.gmra.mrb[0].mxu0 %v1369
    %v1445 = vpop.f32.mrb[0].mxu0
    %v1446 = vadd.f32 0.0, %v1445
    %v1447 = vpop.f32.mrb[0].mxu0
    %v1448 = vadd.f32 0.0, %v1447
    %v1449 = vpop.f32.mrb[0].mxu0
    %v1450 = vpop.f32.mrb[0].mxu0
    %1451 = vdwg.mxu0
    %1452 = vmatprep.subr.bf16.mxu0 %v807
    %1453 = vmatpush1.bf16.msra.mxu0 %v806
    %1454 = vmatprep.subr.bf16.mxu0 %v811
    %1455 = vmatpush1.bf16.msra.mxu0 %v810
    %1456 = vmatprep.subr.bf16.mxu0 %v815
    %1457 = vmatpush1.bf16.msra.mxu0 %v814
    %1458 = vmatprep.subr.bf16.mxu0 %v819
    %1459 = vmatpush1.bf16.msra.mxu0 %v818
    %1460 = vmatprep.subr.bf16.mxu0 %v823
    %1461 = vmatpush1.bf16.msra.mxu0 %v822
    %1462 = vmatprep.subr.bf16.mxu0 %v827
    %1463 = vmatpush1.bf16.msra.mxu0 %v826
    %1464 = vmatprep.subr.bf16.mxu0 %v831
    %1465 = vmatpush1.bf16.msra.mxu0 %v830
    %1466 = vmatprep.subr.bf16.mxu0 %v835
    %1467 = vmatpush1.bf16.msra.mxu0 %v834
    %1468 = vmatprep.subr.bf16.mxu0 0
    %1469 = vmatpush1.bf16.msra.mxu0 0
    %1470 = vmatprep.subr.bf16.mxu0 0
    %1471 = vmatpush1.bf16.msra.mxu0 0
    %1472 = vmatprep.subr.bf16.mxu0 0
    %1473 = vmatpush1.bf16.msra.mxu0 0
    %1474 = vmatprep.subr.bf16.mxu0 0
    %1475 = vmatpush1.bf16.msra.mxu0 0
    %1476 = vmatprep.subr.bf16.mxu0 0
    %1477 = vmatpush1.bf16.msra.mxu0 0
    %1478 = vmatprep.subr.bf16.mxu0 0
    %1479 = vmatpush1.bf16.msra.mxu0 0
    %1480 = vmatprep.subr.bf16.mxu0 0
    %1481 = vmatpush1.bf16.msra.mxu0 0
    %1482 = vmatprep.subr.bf16.mxu0 0
    %1483 = vmatpush1.bf16.msra.mxu0 0
    %1484 = vmatprep.mubr.bf16.mxu0 0
    %1485 = vmatmul.mubr.bf16.gmra.mrb[0].mxu0 %v1368
    %v1486 = vpop.f32.mrb[0].mxu0
    %v1487 = vadd.f32 %v1405, %v1486
    %v1488 = vpop.f32.mrb[0].mxu0
    %v1489 = vadd.f32 %v1407, %v1488
    %v1490 = vpop.f32.mrb[0].mxu0
    %v1491 = vpop.f32.mrb[0].mxu0
    %1492 = vdwg.mxu0
    %1493 = vmatprep.subr.bf16.mxu0 %v809
    %1494 = vmatpush1.bf16.msra.mxu0 %v808
    %1495 = vmatprep.subr.bf16.mxu0 %v813
    %1496 = vmatpush1.bf16.msra.mxu0 %v812
    %1497 = vmatprep.subr.bf16.mxu0 %v817
    %1498 = vmatpush1.bf16.msra.mxu0 %v816
    %1499 = vmatprep.subr.bf16.mxu0 %v821
    %1500 = vmatpush1.bf16.msra.mxu0 %v820
    %1501 = vmatprep.subr.bf16.mxu0 %v825
    %1502 = vmatpush1.bf16.msra.mxu0 %v824
    %1503 = vmatprep.subr.bf16.mxu0 %v829
    %1504 = vmatpush1.bf16.msra.mxu0 %v828
    %1505 = vmatprep.subr.bf16.mxu0 %v833
    %1506 = vmatpush1.bf16.msra.mxu0 %v832
    %1507 = vmatprep.subr.bf16.mxu0 %v837
    %1508 = vmatpush1.bf16.msra.mxu0 %v836
    %1509 = vmatprep.subr.bf16.mxu0 0
    %1510 = vmatpush1.bf16.msra.mxu0 0
    %1511 = vmatprep.subr.bf16.mxu0 0
    %1512 = vmatpush1.bf16.msra.mxu0 0
    %1513 = vmatprep.subr.bf16.mxu0 0
    %1514 = vmatpush1.bf16.msra.mxu0 0
    %1515 = vmatprep.subr.bf16.mxu0 0
    %1516 = vmatpush1.bf16.msra.mxu0 0
    %1517 = vmatprep.subr.bf16.mxu0 0
    %1518 = vmatpush1.bf16.msra.mxu0 0
    %1519 = vmatprep.subr.bf16.mxu0 0
    %1520 = vmatpush1.bf16.msra.mxu0 0
    %1521 = vmatprep.subr.bf16.mxu0 0
    %1522 = vmatpush1.bf16.msra.mxu0 0
    %1523 = vmatprep.subr.bf16.mxu0 0
    %1524 = vmatpush1.bf16.msra.mxu0 0
    %1525 = vmatprep.mubr.bf16.mxu0 0
    %1526 = vmatmul.mubr.bf16.gmra.mrb[0].mxu0 %v1368
    %v1527 = vpop.f32.mrb[0].mxu0
    %v1528 = vadd.f32 %v1446, %v1527
    %v1529 = vpop.f32.mrb[0].mxu0
    %v1530 = vadd.f32 %v1448, %v1529
    %v1531 = vpop.f32.mrb[0].mxu0
    %v1532 = vpop.f32.mrb[0].mxu0
    %1533 = vdwg.mxu0
    %v1534 = vadd.f32 %v1487, %v185
    %v1535 = vadd.f32 %v1489, %v189
    %v1536 = vadd.f32 %v1528, %v193
    %v1537 = vadd.f32 %v1530, %v197
    %v1538 = vtanh.pop %v1534
    %v1539 = vtanh.pop %v1535
    %v1540 = vtanh.pop %v1536
    %v1541 = vtanh.pop %v1537
    %v1542 = vmul.f32 %v1538, 0.5
    %v1543 = vmul.f32 %v1539, 0.5
    %v1544 = vmul.f32 %v1540, 0.5
    %v1545 = vadd.f32 %v1542, 0.5
    %v1546 = vadd.f32 %v1543, 0.5
    %v1547 = vadd.f32 %v1544, 0.5
    %v1548 = vmul.f32 %v1546, %v1259
    %v1549 = vmul.f32 %v1545, %v1541
    %v1550 = vadd.f32 %v1548, %v1549
    %v1551 = vtanh.pop %v1550
    %v1552 = vmul.f32 %v1547, %v1551
    %s1553 = scalar_lea.vmem [#allocation3], 96
    %v1554 = vld [vmem:[%s1553] sm:$0xff]
    %v1555 = vld [vmem:[%s1553 + $0x8] sm:$0xff]
    %v1556 = vld [vmem:[%s1553 + $0x10] sm:$0xff]
    %v1557 = vld [vmem:[%s1553 + $0x18] sm:$0xff]
    %1558 = vmatprep.subr.bf16.mxu0 %v303
    %1559 = vmatpush1.bf16.msra.mxu0 %v302
    %1560 = vmatprep.subr.bf16.mxu0 %v307
    %1561 = vmatpush1.bf16.msra.mxu0 %v306
    %1562 = vmatprep.subr.bf16.mxu0 %v311
    %1563 = vmatpush1.bf16.msra.mxu0 %v310
    %1564 = vmatprep.subr.bf16.mxu0 %v315
    %1565 = vmatpush1.bf16.msra.mxu0 %v314
    %1566 = vmatprep.subr.bf16.mxu0 %v319
    %1567 = vmatpush1.bf16.msra.mxu0 %v318
    %1568 = vmatprep.subr.bf16.mxu0 %v323
    %1569 = vmatpush1.bf16.msra.mxu0 %v322
    %1570 = vmatprep.subr.bf16.mxu0 %v327
    %1571 = vmatpush1.bf16.msra.mxu0 %v326
    %1572 = vmatprep.subr.bf16.mxu0 %v331
    %1573 = vmatpush1.bf16.msra.mxu0 %v330
    %1574 = vmatprep.subr.bf16.mxu0 0
    %1575 = vmatpush1.bf16.msra.mxu0 0
    %1576 = vmatprep.subr.bf16.mxu0 0
    %1577 = vmatpush1.bf16.msra.mxu0 0
    %1578 = vmatprep.subr.bf16.mxu0 0
    %1579 = vmatpush1.bf16.msra.mxu0 0
    %1580 = vmatprep.subr.bf16.mxu0 0
    %1581 = vmatpush1.bf16.msra.mxu0 0
    %1582 = vmatprep.subr.bf16.mxu0 0
    %1583 = vmatpush1.bf16.msra.mxu0 0
    %1584 = vmatprep.subr.bf16.mxu0 0
    %1585 = vmatpush1.bf16.msra.mxu0 0
    %1586 = vmatprep.subr.bf16.mxu0 0
    %1587 = vmatpush1.bf16.msra.mxu0 0
    %1588 = vmatprep.subr.bf16.mxu0 0
    %1589 = vmatpush1.bf16.msra.mxu0 0
    %1590 = vmatprep.mubr.bf16.mxu0 0
    %1591 = vmatmul.mubr.bf16.gmra.mrb[0].mxu0 %v1368
    %v1592 = vpop.f32.mrb[0].mxu0
    %v1593 = vadd.f32 0.0, %v1592
    %v1594 = vpop.f32.mrb[0].mxu0
    %v1595 = vadd.f32 0.0, %v1594
    %v1596 = vpop.f32.mrb[0].mxu0
    %v1597 = vpop.f32.mrb[0].mxu0
    %1598 = vdwg.mxu0
    %1599 = vmatprep.subr.bf16.mxu0 %v305
    %1600 = vmatpush1.bf16.msra.mxu0 %v304
    %1601 = vmatprep.subr.bf16.mxu0 %v309
    %1602 = vmatpush1.bf16.msra.mxu0 %v308
    %1603 = vmatprep.subr.bf16.mxu0 %v313
    %1604 = vmatpush1.bf16.msra.mxu0 %v312
    %1605 = vmatprep.subr.bf16.mxu0 %v317
    %1606 = vmatpush1.bf16.msra.mxu0 %v316
    %1607 = vmatprep.subr.bf16.mxu0 %v321
    %1608 = vmatpush1.bf16.msra.mxu0 %v320
    %1609 = vmatprep.subr.bf16.mxu0 %v325
    %1610 = vmatpush1.bf16.msra.mxu0 %v324
    %1611 = vmatprep.subr.bf16.mxu0 %v329
    %1612 = vmatpush1.bf16.msra.mxu0 %v328
    %1613 = vmatprep.subr.bf16.mxu0 %v333
    %1614 = vmatpush1.bf16.msra.mxu0 %v332
    %1615 = vmatprep.subr.bf16.mxu0 0
    %1616 = vmatpush1.bf16.msra.mxu0 0
    %1617 = vmatprep.subr.bf16.mxu0 0
    %1618 = vmatpush1.bf16.msra.mxu0 0
    %1619 = vmatprep.subr.bf16.mxu0 0
    %1620 = vmatpush1.bf16.msra.mxu0 0
    %1621 = vmatprep.subr.bf16.mxu0 0
    %1622 = vmatpush1.bf16.msra.mxu0 0
    %1623 = vmatprep.subr.bf16.mxu0 0
    %1624 = vmatpush1.bf16.msra.mxu0 0
    %1625 = vmatprep.subr.bf16.mxu0 0
    %1626 = vmatpush1.bf16.msra.mxu0 0
    %1627 = vmatprep.subr.bf16.mxu0 0
    %1628 = vmatpush1.bf16.msra.mxu0 0
    %1629 = vmatprep.subr.bf16.mxu0 0
    %1630 = vmatpush1.bf16.msra.mxu0 0
    %1631 = vmatprep.mubr.bf16.mxu0 0
    %1632 = vmatmul.mubr.bf16.gmra.mrb[0].mxu0 %v1368
    %v1633 = vpop.f32.mrb[0].mxu0
    %v1634 = vadd.f32 0.0, %v1633
    %v1635 = vpop.f32.mrb[0].mxu0
    %v1636 = vadd.f32 0.0, %v1635
    %v1637 = vpop.f32.mrb[0].mxu0
    %v1638 = vpop.f32.mrb[0].mxu0
    %1639 = vdwg.mxu0
    %v1640 = vadd.f32 %v1554, %v1593
    %v1641 = vadd.f32 %v1555, %v1595
    %v1642 = vadd.f32 %v1556, %v1634
    %v1643 = vadd.f32 %v1557, %v1636
    %v1644 = vtanh.pop %v1640
    %v1645 = vtanh.pop %v1641
    %v1646 = vtanh.pop %v1642
    %v1647 = vtanh.pop %v1643
    %v1648 = vmul.f32 %v1644, 0.5
    %v1649 = vmul.f32 %v1645, 0.5
    %v1650 = vmul.f32 %v1646, 0.5
    %v1651 = vadd.f32 %v1648, 0.5
    %v1652 = vadd.f32 %v1649, 0.5
    %v1653 = vadd.f32 %v1650, 0.5
    %v1654 = vmul.f32 %v1652, %v1365
    %v1655 = vmul.f32 %v1651, %v1647
    %v1656 = vadd.f32 %v1654, %v1655
    %v1657 = vtanh.pop %v1656
    %v1658 = vmul.f32 %v1653, %v1657
    %v1659 = vpack.c.bf16 %v1658, %v1658
    %v1660 = vpack.c.bf16 %v1552, %v1552
    %1661 = vmatprep.subr.bf16.mxu0 %v565
    %1662 = vmatpush1.bf16.msra.mxu0 %v564
    %1663 = vmatprep.subr.bf16.mxu0 %v569
    %1664 = vmatpush1.bf16.msra.mxu0 %v568
    %1665 = vmatprep.subr.bf16.mxu0 %v573
    %1666 = vmatpush1.bf16.msra.mxu0 %v572
    %1667 = vmatprep.subr.bf16.mxu0 %v577
    %1668 = vmatpush1.bf16.msra.mxu0 %v576
    %1669 = vmatprep.subr.bf16.mxu0 %v581
    %1670 = vmatpush1.bf16.msra.mxu0 %v580
    %1671 = vmatprep.subr.bf16.mxu0 %v585
    %1672 = vmatpush1.bf16.msra.mxu0 %v584
    %1673 = vmatprep.subr.bf16.mxu0 %v589
    %1674 = vmatpush1.bf16.msra.mxu0 %v588
    %1675 = vmatprep.subr.bf16.mxu0 %v593
    %1676 = vmatpush1.bf16.msra.mxu0 %v592
    %1677 = vmatprep.subr.bf16.mxu0 0
    %1678 = vmatpush1.bf16.msra.mxu0 0
    %1679 = vmatprep.subr.bf16.mxu0 0
    %1680 = vmatpush1.bf16.msra.mxu0 0
    %1681 = vmatprep.subr.bf16.mxu0 0
    %1682 = vmatpush1.bf16.msra.mxu0 0
    %1683 = vmatprep.subr.bf16.mxu0 0
    %1684 = vmatpush1.bf16.msra.mxu0 0
    %1685 = vmatprep.subr.bf16.mxu0 0
    %1686 = vmatpush1.bf16.msra.mxu0 0
    %1687 = vmatprep.subr.bf16.mxu0 0
    %1688 = vmatpush1.bf16.msra.mxu0 0
    %1689 = vmatprep.subr.bf16.mxu0 0
    %1690 = vmatpush1.bf16.msra.mxu0 0
    %1691 = vmatprep.subr.bf16.mxu0 0
    %1692 = vmatpush1.bf16.msra.mxu0 0
    %1693 = vmatprep.mubr.bf16.mxu0 0
    %1694 = vmatmul.mubr.bf16.gmra.mrb[0].mxu0 %v1660
    %v1695 = vpop.f32.mrb[0].mxu0
    %v1696 = vadd.f32 0.0, %v1695
    %v1697 = vpop.f32.mrb[0].mxu0
    %v1698 = vadd.f32 0.0, %v1697
    %v1699 = vpop.f32.mrb[0].mxu0
    %v1700 = vpop.f32.mrb[0].mxu0
    %1701 = vdwg.mxu0
    %1702 = vmatprep.subr.bf16.mxu0 %v567
    %1703 = vmatpush1.bf16.msra.mxu0 %v566
    %1704 = vmatprep.subr.bf16.mxu0 %v571
    %1705 = vmatpush1.bf16.msra.mxu0 %v570
    %1706 = vmatprep.subr.bf16.mxu0 %v575
    %1707 = vmatpush1.bf16.msra.mxu0 %v574
    %1708 = vmatprep.subr.bf16.mxu0 %v579
    %1709 = vmatpush1.bf16.msra.mxu0 %v578
    %1710 = vmatprep.subr.bf16.mxu0 %v583
    %1711 = vmatpush1.bf16.msra.mxu0 %v582
    %1712 = vmatprep.subr.bf16.mxu0 %v587
    %1713 = vmatpush1.bf16.msra.mxu0 %v586
    %1714 = vmatprep.subr.bf16.mxu0 %v591
    %1715 = vmatpush1.bf16.msra.mxu0 %v590
    %1716 = vmatprep.subr.bf16.mxu0 %v595
    %1717 = vmatpush1.bf16.msra.mxu0 %v594
    %1718 = vmatprep.subr.bf16.mxu0 0
    %1719 = vmatpush1.bf16.msra.mxu0 0
    %1720 = vmatprep.subr.bf16.mxu0 0
    %1721 = vmatpush1.bf16.msra.mxu0 0
    %1722 = vmatprep.subr.bf16.mxu0 0
    %1723 = vmatpush1.bf16.msra.mxu0 0
    %1724 = vmatprep.subr.bf16.mxu0 0
    %1725 = vmatpush1.bf16.msra.mxu0 0
    %1726 = vmatprep.subr.bf16.mxu0 0
    %1727 = vmatpush1.bf16.msra.mxu0 0
    %1728 = vmatprep.subr.bf16.mxu0 0
    %1729 = vmatpush1.bf16.msra.mxu0 0
    %1730 = vmatprep.subr.bf16.mxu0 0
    %1731 = vmatpush1.bf16.msra.mxu0 0
    %1732 = vmatprep.subr.bf16.mxu0 0
    %1733 = vmatpush1.bf16.msra.mxu0 0
    %1734 = vmatprep.mubr.bf16.mxu0 0
    %1735 = vmatmul.mubr.bf16.gmra.mrb[0].mxu0 %v1660
    %v1736 = vpop.f32.mrb[0].mxu0
    %v1737 = vadd.f32 0.0, %v1736
    %v1738 = vpop.f32.mrb[0].mxu0
    %v1739 = vadd.f32 0.0, %v1738
    %v1740 = vpop.f32.mrb[0].mxu0
    %v1741 = vpop.f32.mrb[0].mxu0
    %1742 = vdwg.mxu0
    %1743 = vmatprep.subr.bf16.mxu0 %v807
    %1744 = vmatpush1.bf16.msra.mxu0 %v806
    %1745 = vmatprep.subr.bf16.mxu0 %v811
    %1746 = vmatpush1.bf16.msra.mxu0 %v810
    %1747 = vmatprep.subr.bf16.mxu0 %v815
    %1748 = vmatpush1.bf16.msra.mxu0 %v814
    %1749 = vmatprep.subr.bf16.mxu0 %v819
    %1750 = vmatpush1.bf16.msra.mxu0 %v818
    %1751 = vmatprep.subr.bf16.mxu0 %v823
    %1752 = vmatpush1.bf16.msra.mxu0 %v822
    %1753 = vmatprep.subr.bf16.mxu0 %v827
    %1754 = vmatpush1.bf16.msra.mxu0 %v826
    %1755 = vmatprep.subr.bf16.mxu0 %v831
    %1756 = vmatpush1.bf16.msra.mxu0 %v830
    %1757 = vmatprep.subr.bf16.mxu0 %v835
    %1758 = vmatpush1.bf16.msra.mxu0 %v834
    %1759 = vmatprep.subr.bf16.mxu0 0
    %1760 = vmatpush1.bf16.msra.mxu0 0
    %1761 = vmatprep.subr.bf16.mxu0 0
    %1762 = vmatpush1.bf16.msra.mxu0 0
    %1763 = vmatprep.subr.bf16.mxu0 0
    %1764 = vmatpush1.bf16.msra.mxu0 0
    %1765 = vmatprep.subr.bf16.mxu0 0
    %1766 = vmatpush1.bf16.msra.mxu0 0
    %1767 = vmatprep.subr.bf16.mxu0 0
    %1768 = vmatpush1.bf16.msra.mxu0 0
    %1769 = vmatprep.subr.bf16.mxu0 0
    %1770 = vmatpush1.bf16.msra.mxu0 0
    %1771 = vmatprep.subr.bf16.mxu0 0
    %1772 = vmatpush1.bf16.msra.mxu0 0
    %1773 = vmatprep.subr.bf16.mxu0 0
    %1774 = vmatpush1.bf16.msra.mxu0 0
    %1775 = vmatprep.mubr.bf16.mxu0 0
    %1776 = vmatmul.mubr.bf16.gmra.mrb[0].mxu0 %v1659
    %v1777 = vpop.f32.mrb[0].mxu0
    %v1778 = vadd.f32 %v1696, %v1777
    %v1779 = vpop.f32.mrb[0].mxu0
    %v1780 = vadd.f32 %v1698, %v1779
    %v1781 = vpop.f32.mrb[0].mxu0
    %v1782 = vpop.f32.mrb[0].mxu0
    %1783 = vdwg.mxu0
    %1784 = vmatprep.subr.bf16.mxu0 %v809
    %1785 = vmatpush1.bf16.msra.mxu0 %v808
    %1786 = vmatprep.subr.bf16.mxu0 %v813
    %1787 = vmatpush1.bf16.msra.mxu0 %v812
    %1788 = vmatprep.subr.bf16.mxu0 %v817
    %1789 = vmatpush1.bf16.msra.mxu0 %v816
    %1790 = vmatprep.subr.bf16.mxu0 %v821
    %1791 = vmatpush1.bf16.msra.mxu0 %v820
    %1792 = vmatprep.subr.bf16.mxu0 %v825
    %1793 = vmatpush1.bf16.msra.mxu0 %v824
    %1794 = vmatprep.subr.bf16.mxu0 %v829
    %1795 = vmatpush1.bf16.msra.mxu0 %v828
    %1796 = vmatprep.subr.bf16.mxu0 %v833
    %1797 = vmatpush1.bf16.msra.mxu0 %v832
    %1798 = vmatprep.subr.bf16.mxu0 %v837
    %1799 = vmatpush1.bf16.msra.mxu0 %v836
    %1800 = vmatprep.subr.bf16.mxu0 0
    %1801 = vmatpush1.bf16.msra.mxu0 0
    %1802 = vmatprep.subr.bf16.mxu0 0
    %1803 = vmatpush1.bf16.msra.mxu0 0
    %1804 = vmatprep.subr.bf16.mxu0 0
    %1805 = vmatpush1.bf16.msra.mxu0 0
    %1806 = vmatprep.subr.bf16.mxu0 0
    %1807 = vmatpush1.bf16.msra.mxu0 0
    %1808 = vmatprep.subr.bf16.mxu0 0
    %1809 = vmatpush1.bf16.msra.mxu0 0
    %1810 = vmatprep.subr.bf16.mxu0 0
    %1811 = vmatpush1.bf16.msra.mxu0 0
    %1812 = vmatprep.subr.bf16.mxu0 0
    %1813 = vmatpush1.bf16.msra.mxu0 0
    %1814 = vmatprep.subr.bf16.mxu0 0
    %1815 = vmatpush1.bf16.msra.mxu0 0
    %1816 = vmatprep.mubr.bf16.mxu0 0
    %1817 = vmatmul.mubr.bf16.gmra.mrb[0].mxu0 %v1659
    %v1818 = vpop.f32.mrb[0].mxu0
    %v1819 = vadd.f32 %v1737, %v1818
    %v1820 = vpop.f32.mrb[0].mxu0
    %v1821 = vadd.f32 %v1739, %v1820
    %v1822 = vpop.f32.mrb[0].mxu0
    %v1823 = vpop.f32.mrb[0].mxu0
    %1824 = vdwg.mxu0
    %v1825 = vadd.f32 %v1778, %v185
    %v1826 = vadd.f32 %v1780, %v189
    %v1827 = vadd.f32 %v1819, %v193
    %v1828 = vadd.f32 %v1821, %v197
    %v1829 = vtanh.pop %v1825
    %v1830 = vtanh.pop %v1826
    %v1831 = vtanh.pop %v1827
    %v1832 = vtanh.pop %v1828
    %v1833 = vmul.f32 %v1829, 0.5
    %v1834 = vmul.f32 %v1830, 0.5
    %v1835 = vmul.f32 %v1831, 0.5
    %v1836 = vadd.f32 %v1833, 0.5
    %v1837 = vadd.f32 %v1834, 0.5
    %v1838 = vadd.f32 %v1835, 0.5
    %v1839 = vmul.f32 %v1837, %v1550
    %v1840 = vmul.f32 %v1836, %v1832
    %v1841 = vadd.f32 %v1839, %v1840
    %v1842 = vtanh.pop %v1841
    %v1843 = vmul.f32 %v1838, %v1842
    %s1844 = scalar_lea.vmem [#allocation3], 128
    %v1845 = vld [vmem:[%s1844] sm:$0xff]
    %v1846 = vld [vmem:[%s1844 + $0x8] sm:$0xff]
    %v1847 = vld [vmem:[%s1844 + $0x10] sm:$0xff]
    %v1848 = vld [vmem:[%s1844 + $0x18] sm:$0xff]
    %1849 = vmatprep.subr.bf16.mxu0 %v303
    %1850 = vmatpush1.bf16.msra.mxu0 %v302
    %1851 = vmatprep.subr.bf16.mxu0 %v307
    %1852 = vmatpush1.bf16.msra.mxu0 %v306
    %1853 = vmatprep.subr.bf16.mxu0 %v311
    %1854 = vmatpush1.bf16.msra.mxu0 %v310
    %1855 = vmatprep.subr.bf16.mxu0 %v315
    %1856 = vmatpush1.bf16.msra.mxu0 %v314
    %1857 = vmatprep.subr.bf16.mxu0 %v319
    %1858 = vmatpush1.bf16.msra.mxu0 %v318
    %1859 = vmatprep.subr.bf16.mxu0 %v323
    %1860 = vmatpush1.bf16.msra.mxu0 %v322
    %1861 = vmatprep.subr.bf16.mxu0 %v327
    %1862 = vmatpush1.bf16.msra.mxu0 %v326
    %1863 = vmatprep.subr.bf16.mxu0 %v331
    %1864 = vmatpush1.bf16.msra.mxu0 %v330
    %1865 = vmatprep.subr.bf16.mxu0 0
    %1866 = vmatpush1.bf16.msra.mxu0 0
    %1867 = vmatprep.subr.bf16.mxu0 0
    %1868 = vmatpush1.bf16.msra.mxu0 0
    %1869 = vmatprep.subr.bf16.mxu0 0
    %1870 = vmatpush1.bf16.msra.mxu0 0
    %1871 = vmatprep.subr.bf16.mxu0 0
    %1872 = vmatpush1.bf16.msra.mxu0 0
    %1873 = vmatprep.subr.bf16.mxu0 0
    %1874 = vmatpush1.bf16.msra.mxu0 0
    %1875 = vmatprep.subr.bf16.mxu0 0
    %1876 = vmatpush1.bf16.msra.mxu0 0
    %1877 = vmatprep.subr.bf16.mxu0 0
    %1878 = vmatpush1.bf16.msra.mxu0 0
    %1879 = vmatprep.subr.bf16.mxu0 0
    %1880 = vmatpush1.bf16.msra.mxu0 0
    %1881 = vmatprep.mubr.bf16.mxu0 0
    %1882 = vmatmul.mubr.bf16.gmra.mrb[0].mxu0 %v1659
    %v1883 = vpop.f32.mrb[0].mxu0
    %v1884 = vadd.f32 0.0, %v1883
    %v1885 = vpop.f32.mrb[0].mxu0
    %v1886 = vadd.f32 0.0, %v1885
    %v1887 = vpop.f32.mrb[0].mxu0
    %v1888 = vpop.f32.mrb[0].mxu0
    %1889 = vdwg.mxu0
    %1890 = vmatprep.subr.bf16.mxu0 %v305
    %1891 = vmatpush1.bf16.msra.mxu0 %v304
    %1892 = vmatprep.subr.bf16.mxu0 %v309
    %1893 = vmatpush1.bf16.msra.mxu0 %v308
    %1894 = vmatprep.subr.bf16.mxu0 %v313
    %1895 = vmatpush1.bf16.msra.mxu0 %v312
    %1896 = vmatprep.subr.bf16.mxu0 %v317
    %1897 = vmatpush1.bf16.msra.mxu0 %v316
    %1898 = vmatprep.subr.bf16.mxu0 %v321
    %1899 = vmatpush1.bf16.msra.mxu0 %v320
    %1900 = vmatprep.subr.bf16.mxu0 %v325
    %1901 = vmatpush1.bf16.msra.mxu0 %v324
    %1902 = vmatprep.subr.bf16.mxu0 %v329
    %1903 = vmatpush1.bf16.msra.mxu0 %v328
    %1904 = vmatprep.subr.bf16.mxu0 %v333
    %1905 = vmatpush1.bf16.msra.mxu0 %v332
    %1906 = vmatprep.subr.bf16.mxu0 0
    %1907 = vmatpush1.bf16.msra.mxu0 0
    %1908 = vmatprep.subr.bf16.mxu0 0
    %1909 = vmatpush1.bf16.msra.mxu0 0
    %1910 = vmatprep.subr.bf16.mxu0 0
    %1911 = vmatpush1.bf16.msra.mxu0 0
    %1912 = vmatprep.subr.bf16.mxu0 0
    %1913 = vmatpush1.bf16.msra.mxu0 0
    %1914 = vmatprep.subr.bf16.mxu0 0
    %1915 = vmatpush1.bf16.msra.mxu0 0
    %1916 = vmatprep.subr.bf16.mxu0 0
    %1917 = vmatpush1.bf16.msra.mxu0 0
    %1918 = vmatprep.subr.bf16.mxu0 0
    %1919 = vmatpush1.bf16.msra.mxu0 0
    %1920 = vmatprep.subr.bf16.mxu0 0
    %1921 = vmatpush1.bf16.msra.mxu0 0
    %1922 = vmatprep.mubr.bf16.mxu0 0
    %1923 = vmatmul.mubr.bf16.gmra.mrb[0].mxu0 %v1659
    %v1924 = vpop.f32.mrb[0].mxu0
    %v1925 = vadd.f32 0.0, %v1924
    %v1926 = vpop.f32.mrb[0].mxu0
    %v1927 = vadd.f32 0.0, %v1926
    %v1928 = vpop.f32.mrb[0].mxu0
    %v1929 = vpop.f32.mrb[0].mxu0
    %1930 = vdwg.mxu0
    %v1931 = vadd.f32 %v1845, %v1884
    %v1932 = vadd.f32 %v1846, %v1886
    %v1933 = vadd.f32 %v1847, %v1925
    %v1934 = vadd.f32 %v1848, %v1927
    %v1935 = vtanh.pop %v1931
    %v1936 = vtanh.pop %v1932
    %v1937 = vtanh.pop %v1933
    %v1938 = vtanh.pop %v1934
    %v1939 = vmul.f32 %v1935, 0.5
    %v1940 = vmul.f32 %v1936, 0.5
    %v1941 = vmul.f32 %v1937, 0.5
    %v1942 = vadd.f32 %v1939, 0.5
    %v1943 = vadd.f32 %v1940, 0.5
    %v1944 = vadd.f32 %v1941, 0.5
    %v1945 = vmul.f32 %v1943, %v1656
    %v1946 = vmul.f32 %v1942, %v1938
    %v1947 = vadd.f32 %v1945, %v1946
    %v1948 = vtanh.pop %v1947
    %v1949 = vmul.f32 %v1944, %v1948
    %v1950 = vpack.c.bf16 %v1949, %v1949
    %v1951 = vpack.c.bf16 %v1843, %v1843
    %1952 = vmatprep.subr.bf16.mxu0 %v565
    %1953 = vmatpush1.bf16.msra.mxu0 %v564
    %1954 = vmatprep.subr.bf16.mxu0 %v569
    %1955 = vmatpush1.bf16.msra.mxu0 %v568
    %1956 = vmatprep.subr.bf16.mxu0 %v573
    %1957 = vmatpush1.bf16.msra.mxu0 %v572
    %1958 = vmatprep.subr.bf16.mxu0 %v577
    %1959 = vmatpush1.bf16.msra.mxu0 %v576
    %1960 = vmatprep.subr.bf16.mxu0 %v581
    %1961 = vmatpush1.bf16.msra.mxu0 %v580
    %1962 = vmatprep.subr.bf16.mxu0 %v585
    %1963 = vmatpush1.bf16.msra.mxu0 %v584
    %1964 = vmatprep.subr.bf16.mxu0 %v589
    %1965 = vmatpush1.bf16.msra.mxu0 %v588
    %1966 = vmatprep.subr.bf16.mxu0 %v593
    %1967 = vmatpush1.bf16.msra.mxu0 %v592
    %1968 = vmatprep.subr.bf16.mxu0 0
    %1969 = vmatpush1.bf16.msra.mxu0 0
    %1970 = vmatprep.subr.bf16.mxu0 0
    %1971 = vmatpush1.bf16.msra.mxu0 0
    %1972 = vmatprep.subr.bf16.mxu0 0
    %1973 = vmatpush1.bf16.msra.mxu0 0
    %1974 = vmatprep.subr.bf16.mxu0 0
    %1975 = vmatpush1.bf16.msra.mxu0 0
    %1976 = vmatprep.subr.bf16.mxu0 0
    %1977 = vmatpush1.bf16.msra.mxu0 0
    %1978 = vmatprep.subr.bf16.mxu0 0
    %1979 = vmatpush1.bf16.msra.mxu0 0
    %1980 = vmatprep.subr.bf16.mxu0 0
    %1981 = vmatpush1.bf16.msra.mxu0 0
    %1982 = vmatprep.subr.bf16.mxu0 0
    %1983 = vmatpush1.bf16.msra.mxu0 0
    %1984 = vmatprep.mubr.bf16.mxu0 0
    %1985 = vmatmul.mubr.bf16.gmra.mrb[0].mxu0 %v1951
    %v1986 = vpop.f32.mrb[0].mxu0
    %v1987 = vadd.f32 0.0, %v1986
    %v1988 = vpop.f32.mrb[0].mxu0
    %v1989 = vadd.f32 0.0, %v1988
    %v1990 = vpop.f32.mrb[0].mxu0
    %v1991 = vpop.f32.mrb[0].mxu0
    %1992 = vdwg.mxu0
    %1993 = vmatprep.subr.bf16.mxu0 %v567
    %1994 = vmatpush1.bf16.msra.mxu0 %v566
    %1995 = vmatprep.subr.bf16.mxu0 %v571
    %1996 = vmatpush1.bf16.msra.mxu0 %v570
    %1997 = vmatprep.subr.bf16.mxu0 %v575
    %1998 = vmatpush1.bf16.msra.mxu0 %v574
    %1999 = vmatprep.subr.bf16.mxu0 %v579
    %2000 = vmatpush1.bf16.msra.mxu0 %v578
    %2001 = vmatprep.subr.bf16.mxu0 %v583
    %2002 = vmatpush1.bf16.msra.mxu0 %v582
    %2003 = vmatprep.subr.bf16.mxu0 %v587
    %2004 = vmatpush1.bf16.msra.mxu0 %v586
    %2005 = vmatprep.subr.bf16.mxu0 %v591
    %2006 = vmatpush1.bf16.msra.mxu0 %v590
    %2007 = vmatprep.subr.bf16.mxu0 %v595
    %2008 = vmatpush1.bf16.msra.mxu0 %v594
    %2009 = vmatprep.subr.bf16.mxu0 0
    %2010 = vmatpush1.bf16.msra.mxu0 0
    %2011 = vmatprep.subr.bf16.mxu0 0
    %2012 = vmatpush1.bf16.msra.mxu0 0
    %2013 = vmatprep.subr.bf16.mxu0 0
    %2014 = vmatpush1.bf16.msra.mxu0 0
    %2015 = vmatprep.subr.bf16.mxu0 0
    %2016 = vmatpush1.bf16.msra.mxu0 0
    %2017 = vmatprep.subr.bf16.mxu0 0
    %2018 = vmatpush1.bf16.msra.mxu0 0
    %2019 = vmatprep.subr.bf16.mxu0 0
    %2020 = vmatpush1.bf16.msra.mxu0 0
    %2021 = vmatprep.subr.bf16.mxu0 0
    %2022 = vmatpush1.bf16.msra.mxu0 0
    %2023 = vmatprep.subr.bf16.mxu0 0
    %2024 = vmatpush1.bf16.msra.mxu0 0
    %2025 = vmatprep.mubr.bf16.mxu0 0
    %2026 = vmatmul.mubr.bf16.gmra.mrb[0].mxu0 %v1951
    %v2027 = vpop.f32.mrb[0].mxu0
    %v2028 = vadd.f32 0.0, %v2027
    %v2029 = vpop.f32.mrb[0].mxu0
    %v2030 = vadd.f32 0.0, %v2029
    %v2031 = vpop.f32.mrb[0].mxu0
    %v2032 = vpop.f32.mrb[0].mxu0
    %2033 = vdwg.mxu0
    %2034 = vmatprep.subr.bf16.mxu0 %v807
    %2035 = vmatpush1.bf16.msra.mxu0 %v806
    %2036 = vmatprep.subr.bf16.mxu0 %v811
    %2037 = vmatpush1.bf16.msra.mxu0 %v810
    %2038 = vmatprep.subr.bf16.mxu0 %v815
    %2039 = vmatpush1.bf16.msra.mxu0 %v814
    %2040 = vmatprep.subr.bf16.mxu0 %v819
    %2041 = vmatpush1.bf16.msra.mxu0 %v818
    %2042 = vmatprep.subr.bf16.mxu0 %v823
    %2043 = vmatpush1.bf16.msra.mxu0 %v822
    %2044 = vmatprep.subr.bf16.mxu0 %v827
    %2045 = vmatpush1.bf16.msra.mxu0 %v826
    %2046 = vmatprep.subr.bf16.mxu0 %v831
    %2047 = vmatpush1.bf16.msra.mxu0 %v830
    %2048 = vmatprep.subr.bf16.mxu0 %v835
    %2049 = vmatpush1.bf16.msra.mxu0 %v834
    %2050 = vmatprep.subr.bf16.mxu0 0
    %2051 = vmatpush1.bf16.msra.mxu0 0
    %2052 = vmatprep.subr.bf16.mxu0 0
    %2053 = vmatpush1.bf16.msra.mxu0 0
    %2054 = vmatprep.subr.bf16.mxu0 0
    %2055 = vmatpush1.bf16.msra.mxu0 0
    %2056 = vmatprep.subr.bf16.mxu0 0
    %2057 = vmatpush1.bf16.msra.mxu0 0
    %2058 = vmatprep.subr.bf16.mxu0 0
    %2059 = vmatpush1.bf16.msra.mxu0 0
    %2060 = vmatprep.subr.bf16.mxu0 0
    %2061 = vmatpush1.bf16.msra.mxu0 0
    %2062 = vmatprep.subr.bf16.mxu0 0
    %2063 = vmatpush1.bf16.msra.mxu0 0
    %2064 = vmatprep.subr.bf16.mxu0 0
    %2065 = vmatpush1.bf16.msra.mxu0 0
    %2066 = vmatprep.mubr.bf16.mxu0 0
    %2067 = vmatmul.mubr.bf16.gmra.mrb[0].mxu0 %v1950
    %v2068 = vpop.f32.mrb[0].mxu0
    %v2069 = vadd.f32 %v1987, %v2068
    %v2070 = vpop.f32.mrb[0].mxu0
    %v2071 = vadd.f32 %v1989, %v2070
    %v2072 = vpop.f32.mrb[0].mxu0
    %v2073 = vpop.f32.mrb[0].mxu0
    %2074 = vdwg.mxu0
    %2075 = vmatprep.subr.bf16.mxu0 %v809
    %2076 = vmatpush1.bf16.msra.mxu0 %v808
    %2077 = vmatprep.subr.bf16.mxu0 %v813
    %2078 = vmatpush1.bf16.msra.mxu0 %v812
    %2079 = vmatprep.subr.bf16.mxu0 %v817
    %2080 = vmatpush1.bf16.msra.mxu0 %v816
    %2081 = vmatprep.subr.bf16.mxu0 %v821
    %2082 = vmatpush1.bf16.msra.mxu0 %v820
    %2083 = vmatprep.subr.bf16.mxu0 %v825
    %2084 = vmatpush1.bf16.msra.mxu0 %v824
    %2085 = vmatprep.subr.bf16.mxu0 %v829
    %2086 = vmatpush1.bf16.msra.mxu0 %v828
    %2087 = vmatprep.subr.bf16.mxu0 %v833
    %2088 = vmatpush1.bf16.msra.mxu0 %v832
    %2089 = vmatprep.subr.bf16.mxu0 %v837
    %2090 = vmatpush1.bf16.msra.mxu0 %v836
    %2091 = vmatprep.subr.bf16.mxu0 0
    %2092 = vmatpush1.bf16.msra.mxu0 0
    %2093 = vmatprep.subr.bf16.mxu0 0
    %2094 = vmatpush1.bf16.msra.mxu0 0
    %2095 = vmatprep.subr.bf16.mxu0 0
    %2096 = vmatpush1.bf16.msra.mxu0 0
    %2097 = vmatprep.subr.bf16.mxu0 0
    %2098 = vmatpush1.bf16.msra.mxu0 0
    %2099 = vmatprep.subr.bf16.mxu0 0
    %2100 = vmatpush1.bf16.msra.mxu0 0
    %2101 = vmatprep.subr.bf16.mxu0 0
    %2102 = vmatpush1.bf16.msra.mxu0 0
    %2103 = vmatprep.subr.bf16.mxu0 0
    %2104 = vmatpush1.bf16.msra.mxu0 0
    %2105 = vmatprep.subr.bf16.mxu0 0
    %2106 = vmatpush1.bf16.msra.mxu0 0
    %2107 = vmatprep.mubr.bf16.mxu0 0
    %2108 = vmatmul.mubr.bf16.gmra.mrb[0].mxu0 %v1950
    %v2109 = vpop.f32.mrb[0].mxu0
    %v2110 = vadd.f32 %v2028, %v2109
    %v2111 = vpop.f32.mrb[0].mxu0
    %v2112 = vadd.f32 %v2030, %v2111
    %v2113 = vpop.f32.mrb[0].mxu0
    %v2114 = vpop.f32.mrb[0].mxu0
    %2115 = vdwg.mxu0
    %v2116 = vadd.f32 %v2069, %v185
    %v2117 = vadd.f32 %v2071, %v189
    %v2118 = vadd.f32 %v2110, %v193
    %v2119 = vadd.f32 %v2112, %v197
    %v2120 = vtanh.pop %v2116
    %v2121 = vtanh.pop %v2117
    %v2122 = vtanh.pop %v2118
    %v2123 = vtanh.pop %v2119
    %v2124 = vmul.f32 %v2120, 0.5
    %v2125 = vmul.f32 %v2121, 0.5
    %v2126 = vmul.f32 %v2122, 0.5
    %v2127 = vadd.f32 %v2124, 0.5
    %v2128 = vadd.f32 %v2125, 0.5
    %v2129 = vadd.f32 %v2126, 0.5
    %v2130 = vmul.f32 %v2128, %v1841
    %v2131 = vmul.f32 %v2127, %v2123
    %v2132 = vadd.f32 %v2130, %v2131
    %v2133 = vtanh.pop %v2132
    %v2134 = vmul.f32 %v2129, %v2133
    %s2135 = scalar_lea.vmem [#allocation3], 160
    %v2136 = vld [vmem:[%s2135] sm:$0xff]
    %v2137 = vld [vmem:[%s2135 + $0x8] sm:$0xff]
    %v2138 = vld [vmem:[%s2135 + $0x10] sm:$0xff]
    %v2139 = vld [vmem:[%s2135 + $0x18] sm:$0xff]
    %2140 = vmatprep.subr.bf16.mxu0 %v303
    %2141 = vmatpush1.bf16.msra.mxu0 %v302
    %2142 = vmatprep.subr.bf16.mxu0 %v307
    %2143 = vmatpush1.bf16.msra.mxu0 %v306
    %2144 = vmatprep.subr.bf16.mxu0 %v311
    %2145 = vmatpush1.bf16.msra.mxu0 %v310
    %2146 = vmatprep.subr.bf16.mxu0 %v315
    %2147 = vmatpush1.bf16.msra.mxu0 %v314
    %2148 = vmatprep.subr.bf16.mxu0 %v319
    %2149 = vmatpush1.bf16.msra.mxu0 %v318
    %2150 = vmatprep.subr.bf16.mxu0 %v323
    %2151 = vmatpush1.bf16.msra.mxu0 %v322
    %2152 = vmatprep.subr.bf16.mxu0 %v327
    %2153 = vmatpush1.bf16.msra.mxu0 %v326
    %2154 = vmatprep.subr.bf16.mxu0 %v331
    %2155 = vmatpush1.bf16.msra.mxu0 %v330
    %2156 = vmatprep.subr.bf16.mxu0 0
    %2157 = vmatpush1.bf16.msra.mxu0 0
    %2158 = vmatprep.subr.bf16.mxu0 0
    %2159 = vmatpush1.bf16.msra.mxu0 0
    %2160 = vmatprep.subr.bf16.mxu0 0
    %2161 = vmatpush1.bf16.msra.mxu0 0
    %2162 = vmatprep.subr.bf16.mxu0 0
    %2163 = vmatpush1.bf16.msra.mxu0 0
    %2164 = vmatprep.subr.bf16.mxu0 0
    %2165 = vmatpush1.bf16.msra.mxu0 0
    %2166 = vmatprep.subr.bf16.mxu0 0
    %2167 = vmatpush1.bf16.msra.mxu0 0
    %2168 = vmatprep.subr.bf16.mxu0 0
    %2169 = vmatpush1.bf16.msra.mxu0 0
    %2170 = vmatprep.subr.bf16.mxu0 0
    %2171 = vmatpush1.bf16.msra.mxu0 0
    %2172 = vmatprep.mubr.bf16.mxu0 0
    %2173 = vmatmul.mubr.bf16.gmra.mrb[0].mxu0 %v1950
    %v2174 = vpop.f32.mrb[0].mxu0
    %v2175 = vadd.f32 0.0, %v2174
    %v2176 = vpop.f32.mrb[0].mxu0
    %v2177 = vadd.f32 0.0, %v2176
    %v2178 = vpop.f32.mrb[0].mxu0
    %v2179 = vpop.f32.mrb[0].mxu0
    %2180 = vdwg.mxu0
    %2181 = vmatprep.subr.bf16.mxu0 %v305
    %2182 = vmatpush1.bf16.msra.mxu0 %v304
    %2183 = vmatprep.subr.bf16.mxu0 %v309
    %2184 = vmatpush1.bf16.msra.mxu0 %v308
    %2185 = vmatprep.subr.bf16.mxu0 %v313
    %2186 = vmatpush1.bf16.msra.mxu0 %v312
    %2187 = vmatprep.subr.bf16.mxu0 %v317
    %2188 = vmatpush1.bf16.msra.mxu0 %v316
    %2189 = vmatprep.subr.bf16.mxu0 %v321
    %2190 = vmatpush1.bf16.msra.mxu0 %v320
    %2191 = vmatprep.subr.bf16.mxu0 %v325
    %2192 = vmatpush1.bf16.msra.mxu0 %v324
    %2193 = vmatprep.subr.bf16.mxu0 %v329
    %2194 = vmatpush1.bf16.msra.mxu0 %v328
    %2195 = vmatprep.subr.bf16.mxu0 %v333
    %2196 = vmatpush1.bf16.msra.mxu0 %v332
    %2197 = vmatprep.subr.bf16.mxu0 0
    %2198 = vmatpush1.bf16.msra.mxu0 0
    %2199 = vmatprep.subr.bf16.mxu0 0
    %2200 = vmatpush1.bf16.msra.mxu0 0
    %2201 = vmatprep.subr.bf16.mxu0 0
    %2202 = vmatpush1.bf16.msra.mxu0 0
    %2203 = vmatprep.subr.bf16.mxu0 0
    %2204 = vmatpush1.bf16.msra.mxu0 0
    %2205 = vmatprep.subr.bf16.mxu0 0
    %2206 = vmatpush1.bf16.msra.mxu0 0
    %2207 = vmatprep.subr.bf16.mxu0 0
    %2208 = vmatpush1.bf16.msra.mxu0 0
    %2209 = vmatprep.subr.bf16.mxu0 0
    %2210 = vmatpush1.bf16.msra.mxu0 0
    %2211 = vmatprep.subr.bf16.mxu0 0
    %2212 = vmatpush1.bf16.msra.mxu0 0
    %2213 = vmatprep.mubr.bf16.mxu0 0
    %2214 = vmatmul.mubr.bf16.gmra.mrb[0].mxu0 %v1950
    %v2215 = vpop.f32.mrb[0].mxu0
    %v2216 = vadd.f32 0.0, %v2215
    %v2217 = vpop.f32.mrb[0].mxu0
    %v2218 = vadd.f32 0.0, %v2217
    %v2219 = vpop.f32.mrb[0].mxu0
    %v2220 = vpop.f32.mrb[0].mxu0
    %2221 = vdwg.mxu0
    %v2222 = vadd.f32 %v2136, %v2175
    %v2223 = vadd.f32 %v2137, %v2177
    %v2224 = vadd.f32 %v2138, %v2216
    %v2225 = vadd.f32 %v2139, %v2218
    %v2226 = vtanh.pop %v2222
    %v2227 = vtanh.pop %v2223
    %v2228 = vtanh.pop %v2224
    %v2229 = vtanh.pop %v2225
    %v2230 = vmul.f32 %v2226, 0.5
    %v2231 = vmul.f32 %v2227, 0.5
    %v2232 = vmul.f32 %v2228, 0.5
    %v2233 = vadd.f32 %v2230, 0.5
    %v2234 = vadd.f32 %v2231, 0.5
    %v2235 = vadd.f32 %v2232, 0.5
    %v2236 = vmul.f32 %v2234, %v1947
    %v2237 = vmul.f32 %v2233, %v2229
    %v2238 = vadd.f32 %v2236, %v2237
    %v2239 = vtanh.pop %v2238
    %v2240 = vmul.f32 %v2235, %v2239
    %v2241 = vpack.c.bf16 %v2240, %v2240
    %v2242 = vpack.c.bf16 %v2134, %v2134
    %2243 = vmatprep.subr.bf16.mxu0 %v565
    %2244 = vmatpush1.bf16.msra.mxu0 %v564
    %2245 = vmatprep.subr.bf16.mxu0 %v569
    %2246 = vmatpush1.bf16.msra.mxu0 %v568
    %2247 = vmatprep.subr.bf16.mxu0 %v573
    %2248 = vmatpush1.bf16.msra.mxu0 %v572
    %2249 = vmatprep.subr.bf16.mxu0 %v577
    %2250 = vmatpush1.bf16.msra.mxu0 %v576
    %2251 = vmatprep.subr.bf16.mxu0 %v581
    %2252 = vmatpush1.bf16.msra.mxu0 %v580
    %2253 = vmatprep.subr.bf16.mxu0 %v585
    %2254 = vmatpush1.bf16.msra.mxu0 %v584
    %2255 = vmatprep.subr.bf16.mxu0 %v589
    %2256 = vmatpush1.bf16.msra.mxu0 %v588
    %2257 = vmatprep.subr.bf16.mxu0 %v593
    %2258 = vmatpush1.bf16.msra.mxu0 %v592
    %2259 = vmatprep.subr.bf16.mxu0 0
    %2260 = vmatpush1.bf16.msra.mxu0 0
    %2261 = vmatprep.subr.bf16.mxu0 0
    %2262 = vmatpush1.bf16.msra.mxu0 0
    %2263 = vmatprep.subr.bf16.mxu0 0
    %2264 = vmatpush1.bf16.msra.mxu0 0
    %2265 = vmatprep.subr.bf16.mxu0 0
    %2266 = vmatpush1.bf16.msra.mxu0 0
    %2267 = vmatprep.subr.bf16.mxu0 0
    %2268 = vmatpush1.bf16.msra.mxu0 0
    %2269 = vmatprep.subr.bf16.mxu0 0
    %2270 = vmatpush1.bf16.msra.mxu0 0
    %2271 = vmatprep.subr.bf16.mxu0 0
    %2272 = vmatpush1.bf16.msra.mxu0 0
    %2273 = vmatprep.subr.bf16.mxu0 0
    %2274 = vmatpush1.bf16.msra.mxu0 0
    %2275 = vmatprep.mubr.bf16.mxu0 0
    %2276 = vmatmul.mubr.bf16.gmra.mrb[0].mxu0 %v2242
    %v2277 = vpop.f32.mrb[0].mxu0
    %v2278 = vadd.f32 0.0, %v2277
    %v2279 = vpop.f32.mrb[0].mxu0
    %v2280 = vadd.f32 0.0, %v2279
    %v2281 = vpop.f32.mrb[0].mxu0
    %v2282 = vpop.f32.mrb[0].mxu0
    %2283 = vdwg.mxu0
    %2284 = vmatprep.subr.bf16.mxu0 %v567
    %2285 = vmatpush1.bf16.msra.mxu0 %v566
    %2286 = vmatprep.subr.bf16.mxu0 %v571
    %2287 = vmatpush1.bf16.msra.mxu0 %v570
    %2288 = vmatprep.subr.bf16.mxu0 %v575
    %2289 = vmatpush1.bf16.msra.mxu0 %v574
    %2290 = vmatprep.subr.bf16.mxu0 %v579
    %2291 = vmatpush1.bf16.msra.mxu0 %v578
    %2292 = vmatprep.subr.bf16.mxu0 %v583
    %2293 = vmatpush1.bf16.msra.mxu0 %v582
    %2294 = vmatprep.subr.bf16.mxu0 %v587
    %2295 = vmatpush1.bf16.msra.mxu0 %v586
    %2296 = vmatprep.subr.bf16.mxu0 %v591
    %2297 = vmatpush1.bf16.msra.mxu0 %v590
    %2298 = vmatprep.subr.bf16.mxu0 %v595
    %2299 = vmatpush1.bf16.msra.mxu0 %v594
    %2300 = vmatprep.subr.bf16.mxu0 0
    %2301 = vmatpush1.bf16.msra.mxu0 0
    %2302 = vmatprep.subr.bf16.mxu0 0
    %2303 = vmatpush1.bf16.msra.mxu0 0
    %2304 = vmatprep.subr.bf16.mxu0 0
    %2305 = vmatpush1.bf16.msra.mxu0 0
    %2306 = vmatprep.subr.bf16.mxu0 0
    %2307 = vmatpush1.bf16.msra.mxu0 0
    %2308 = vmatprep.subr.bf16.mxu0 0
    %2309 = vmatpush1.bf16.msra.mxu0 0
    %2310 = vmatprep.subr.bf16.mxu0 0
    %2311 = vmatpush1.bf16.msra.mxu0 0
    %2312 = vmatprep.subr.bf16.mxu0 0
    %2313 = vmatpush1.bf16.msra.mxu0 0
    %2314 = vmatprep.subr.bf16.mxu0 0
    %2315 = vmatpush1.bf16.msra.mxu0 0
    %2316 = vmatprep.mubr.bf16.mxu0 0
    %2317 = vmatmul.mubr.bf16.gmra.mrb[0].mxu0 %v2242
    %v2318 = vpop.f32.mrb[0].mxu0
    %v2319 = vadd.f32 0.0, %v2318
    %v2320 = vpop.f32.mrb[0].mxu0
    %v2321 = vadd.f32 0.0, %v2320
    %v2322 = vpop.f32.mrb[0].mxu0
    %v2323 = vpop.f32.mrb[0].mxu0
    %2324 = vdwg.mxu0
    %2325 = vmatprep.subr.bf16.mxu0 %v807
    %2326 = vmatpush1.bf16.msra.mxu0 %v806
    %2327 = vmatprep.subr.bf16.mxu0 %v811
    %2328 = vmatpush1.bf16.msra.mxu0 %v810
    %2329 = vmatprep.subr.bf16.mxu0 %v815
    %2330 = vmatpush1.bf16.msra.mxu0 %v814
    %2331 = vmatprep.subr.bf16.mxu0 %v819
    %2332 = vmatpush1.bf16.msra.mxu0 %v818
    %2333 = vmatprep.subr.bf16.mxu0 %v823
    %2334 = vmatpush1.bf16.msra.mxu0 %v822
    %2335 = vmatprep.subr.bf16.mxu0 %v827
    %2336 = vmatpush1.bf16.msra.mxu0 %v826
    %2337 = vmatprep.subr.bf16.mxu0 %v831
    %2338 = vmatpush1.bf16.msra.mxu0 %v830
    %2339 = vmatprep.subr.bf16.mxu0 %v835
    %2340 = vmatpush1.bf16.msra.mxu0 %v834
    %2341 = vmatprep.subr.bf16.mxu0 0
    %2342 = vmatpush1.bf16.msra.mxu0 0
    %2343 = vmatprep.subr.bf16.mxu0 0
    %2344 = vmatpush1.bf16.msra.mxu0 0
    %2345 = vmatprep.subr.bf16.mxu0 0
    %2346 = vmatpush1.bf16.msra.mxu0 0
    %2347 = vmatprep.subr.bf16.mxu0 0
    %2348 = vmatpush1.bf16.msra.mxu0 0
    %2349 = vmatprep.subr.bf16.mxu0 0
    %2350 = vmatpush1.bf16.msra.mxu0 0
    %2351 = vmatprep.subr.bf16.mxu0 0
    %2352 = vmatpush1.bf16.msra.mxu0 0
    %2353 = vmatprep.subr.bf16.mxu0 0
    %2354 = vmatpush1.bf16.msra.mxu0 0
    %2355 = vmatprep.subr.bf16.mxu0 0
    %2356 = vmatpush1.bf16.msra.mxu0 0
    %2357 = vmatprep.mubr.bf16.mxu0 0
    %2358 = vmatmul.mubr.bf16.gmra.mrb[0].mxu0 %v2241
    %v2359 = vpop.f32.mrb[0].mxu0
    %v2360 = vadd.f32 %v2278, %v2359
    %v2361 = vpop.f32.mrb[0].mxu0
    %v2362 = vadd.f32 %v2280, %v2361
    %v2363 = vpop.f32.mrb[0].mxu0
    %v2364 = vpop.f32.mrb[0].mxu0
    %2365 = vdwg.mxu0
    %2366 = vmatprep.subr.bf16.mxu0 %v809
    %2367 = vmatpush1.bf16.msra.mxu0 %v808
    %2368 = vmatprep.subr.bf16.mxu0 %v813
    %2369 = vmatpush1.bf16.msra.mxu0 %v812
    %2370 = vmatprep.subr.bf16.mxu0 %v817
    %2371 = vmatpush1.bf16.msra.mxu0 %v816
    %2372 = vmatprep.subr.bf16.mxu0 %v821
    %2373 = vmatpush1.bf16.msra.mxu0 %v820
    %2374 = vmatprep.subr.bf16.mxu0 %v825
    %2375 = vmatpush1.bf16.msra.mxu0 %v824
    %2376 = vmatprep.subr.bf16.mxu0 %v829
    %2377 = vmatpush1.bf16.msra.mxu0 %v828
    %2378 = vmatprep.subr.bf16.mxu0 %v833
    %2379 = vmatpush1.bf16.msra.mxu0 %v832
    %2380 = vmatprep.subr.bf16.mxu0 %v837
    %2381 = vmatpush1.bf16.msra.mxu0 %v836
    %2382 = vmatprep.subr.bf16.mxu0 0
    %2383 = vmatpush1.bf16.msra.mxu0 0
    %2384 = vmatprep.subr.bf16.mxu0 0
    %2385 = vmatpush1.bf16.msra.mxu0 0
    %2386 = vmatprep.subr.bf16.mxu0 0
    %2387 = vmatpush1.bf16.msra.mxu0 0
    %2388 = vmatprep.subr.bf16.mxu0 0
    %2389 = vmatpush1.bf16.msra.mxu0 0
    %2390 = vmatprep.subr.bf16.mxu0 0
    %2391 = vmatpush1.bf16.msra.mxu0 0
    %2392 = vmatprep.subr.bf16.mxu0 0
    %2393 = vmatpush1.bf16.msra.mxu0 0
    %2394 = vmatprep.subr.bf16.mxu0 0
    %2395 = vmatpush1.bf16.msra.mxu0 0
    %2396 = vmatprep.subr.bf16.mxu0 0
    %2397 = vmatpush1.bf16.msra.mxu0 0
    %2398 = vmatprep.mubr.bf16.mxu0 0
    %2399 = vmatmul.mubr.bf16.gmra.mrb[0].mxu0 %v2241
    %v2400 = vpop.f32.mrb[0].mxu0
    %v2401 = vadd.f32 %v2319, %v2400
    %v2402 = vpop.f32.mrb[0].mxu0
    %v2403 = vadd.f32 %v2321, %v2402
    %v2404 = vpop.f32.mrb[0].mxu0
    %v2405 = vpop.f32.mrb[0].mxu0
    %2406 = vdwg.mxu0
    %v2407 = vadd.f32 %v2360, %v185
    %v2408 = vadd.f32 %v2362, %v189
    %v2409 = vadd.f32 %v2401, %v193
    %v2410 = vadd.f32 %v2403, %v197
    %v2411 = vtanh.pop %v2407
    %v2412 = vtanh.pop %v2408
    %v2413 = vtanh.pop %v2409
    %v2414 = vtanh.pop %v2410
    %v2415 = vmul.f32 %v2411, 0.5
    %v2416 = vmul.f32 %v2412, 0.5
    %v2417 = vmul.f32 %v2413, 0.5
    %v2418 = vadd.f32 %v2415, 0.5
    %v2419 = vadd.f32 %v2416, 0.5
    %v2420 = vadd.f32 %v2417, 0.5
    %v2421 = vmul.f32 %v2419, %v2132
    %v2422 = vmul.f32 %v2418, %v2414
    %v2423 = vadd.f32 %v2421, %v2422
    %v2424 = vtanh.pop %v2423
    %v2425 = vmul.f32 %v2420, %v2424
    %s2426 = scalar_lea.vmem [#allocation3], 192
    %v2427 = vld [vmem:[%s2426] sm:$0xff]
    %v2428 = vld [vmem:[%s2426 + $0x8] sm:$0xff]
    %v2429 = vld [vmem:[%s2426 + $0x10] sm:$0xff]
    %v2430 = vld [vmem:[%s2426 + $0x18] sm:$0xff]
    %2431 = vmatprep.subr.bf16.mxu0 %v303
    %2432 = vmatpush1.bf16.msra.mxu0 %v302
    %2433 = vmatprep.subr.bf16.mxu0 %v307
    %2434 = vmatpush1.bf16.msra.mxu0 %v306
    %2435 = vmatprep.subr.bf16.mxu0 %v311
    %2436 = vmatpush1.bf16.msra.mxu0 %v310
    %2437 = vmatprep.subr.bf16.mxu0 %v315
    %2438 = vmatpush1.bf16.msra.mxu0 %v314
    %2439 = vmatprep.subr.bf16.mxu0 %v319
    %2440 = vmatpush1.bf16.msra.mxu0 %v318
    %2441 = vmatprep.subr.bf16.mxu0 %v323
    %2442 = vmatpush1.bf16.msra.mxu0 %v322
    %2443 = vmatprep.subr.bf16.mxu0 %v327
    %2444 = vmatpush1.bf16.msra.mxu0 %v326
    %2445 = vmatprep.subr.bf16.mxu0 %v331
    %2446 = vmatpush1.bf16.msra.mxu0 %v330
    %2447 = vmatprep.subr.bf16.mxu0 0
    %2448 = vmatpush1.bf16.msra.mxu0 0
    %2449 = vmatprep.subr.bf16.mxu0 0
    %2450 = vmatpush1.bf16.msra.mxu0 0
    %2451 = vmatprep.subr.bf16.mxu0 0
    %2452 = vmatpush1.bf16.msra.mxu0 0
    %2453 = vmatprep.subr.bf16.mxu0 0
    %2454 = vmatpush1.bf16.msra.mxu0 0
    %2455 = vmatprep.subr.bf16.mxu0 0
    %2456 = vmatpush1.bf16.msra.mxu0 0
    %2457 = vmatprep.subr.bf16.mxu0 0
    %2458 = vmatpush1.bf16.msra.mxu0 0
    %2459 = vmatprep.subr.bf16.mxu0 0
    %2460 = vmatpush1.bf16.msra.mxu0 0
    %2461 = vmatprep.subr.bf16.mxu0 0
    %2462 = vmatpush1.bf16.msra.mxu0 0
    %2463 = vmatprep.mubr.bf16.mxu0 0
    %2464 = vmatmul.mubr.bf16.gmra.mrb[0].mxu0 %v2241
    %v2465 = vpop.f32.mrb[0].mxu0
    %v2466 = vadd.f32 0.0, %v2465
    %v2467 = vpop.f32.mrb[0].mxu0
    %v2468 = vadd.f32 0.0, %v2467
    %v2469 = vpop.f32.mrb[0].mxu0
    %v2470 = vpop.f32.mrb[0].mxu0
    %2471 = vdwg.mxu0
    %2472 = vmatprep.subr.bf16.mxu0 %v305
    %2473 = vmatpush1.bf16.msra.mxu0 %v304
    %2474 = vmatprep.subr.bf16.mxu0 %v309
    %2475 = vmatpush1.bf16.msra.mxu0 %v308
    %2476 = vmatprep.subr.bf16.mxu0 %v313
    %2477 = vmatpush1.bf16.msra.mxu0 %v312
    %2478 = vmatprep.subr.bf16.mxu0 %v317
    %2479 = vmatpush1.bf16.msra.mxu0 %v316
    %2480 = vmatprep.subr.bf16.mxu0 %v321
    %2481 = vmatpush1.bf16.msra.mxu0 %v320
    %2482 = vmatprep.subr.bf16.mxu0 %v325
    %2483 = vmatpush1.bf16.msra.mxu0 %v324
    %2484 = vmatprep.subr.bf16.mxu0 %v329
    %2485 = vmatpush1.bf16.msra.mxu0 %v328
    %2486 = vmatprep.subr.bf16.mxu0 %v333
    %2487 = vmatpush1.bf16.msra.mxu0 %v332
    %2488 = vmatprep.subr.bf16.mxu0 0
    %2489 = vmatpush1.bf16.msra.mxu0 0
    %2490 = vmatprep.subr.bf16.mxu0 0
    %2491 = vmatpush1.bf16.msra.mxu0 0
    %2492 = vmatprep.subr.bf16.mxu0 0
    %2493 = vmatpush1.bf16.msra.mxu0 0
    %2494 = vmatprep.subr.bf16.mxu0 0
    %2495 = vmatpush1.bf16.msra.mxu0 0
    %2496 = vmatprep.subr.bf16.mxu0 0
    %2497 = vmatpush1.bf16.msra.mxu0 0
    %2498 = vmatprep.subr.bf16.mxu0 0
    %2499 = vmatpush1.bf16.msra.mxu0 0
    %2500 = vmatprep.subr.bf16.mxu0 0
    %2501 = vmatpush1.bf16.msra.mxu0 0
    %2502 = vmatprep.subr.bf16.mxu0 0
    %2503 = vmatpush1.bf16.msra.mxu0 0
    %2504 = vmatprep.mubr.bf16.mxu0 0
    %2505 = vmatmul.mubr.bf16.gmra.mrb[0].mxu0 %v2241
    %v2506 = vpop.f32.mrb[0].mxu0
    %v2507 = vadd.f32 0.0, %v2506
    %v2508 = vpop.f32.mrb[0].mxu0
    %v2509 = vadd.f32 0.0, %v2508
    %v2510 = vpop.f32.mrb[0].mxu0
    %v2511 = vpop.f32.mrb[0].mxu0
    %2512 = vdwg.mxu0
    %v2513 = vadd.f32 %v2427, %v2466
    %v2514 = vadd.f32 %v2428, %v2468
    %v2515 = vadd.f32 %v2429, %v2507
    %v2516 = vadd.f32 %v2430, %v2509
    %v2517 = vtanh.pop %v2513
    %v2518 = vtanh.pop %v2514
    %v2519 = vtanh.pop %v2515
    %v2520 = vtanh.pop %v2516
    %v2521 = vmul.f32 %v2517, 0.5
    %v2522 = vmul.f32 %v2518, 0.5
    %v2523 = vmul.f32 %v2519, 0.5
    %v2524 = vadd.f32 %v2521, 0.5
    %v2525 = vadd.f32 %v2522, 0.5
    %v2526 = vadd.f32 %v2523, 0.5
    %v2527 = vmul.f32 %v2525, %v2238
    %v2528 = vmul.f32 %v2524, %v2520
    %v2529 = vadd.f32 %v2527, %v2528
    %v2530 = vtanh.pop %v2529
    %v2531 = vmul.f32 %v2526, %v2530
    %v2532 = vpack.c.bf16 %v2531, %v2531
    %v2533 = vpack.c.bf16 %v2425, %v2425
    %2534 = vmatprep.subr.bf16.mxu0 %v565
    %2535 = vmatpush1.bf16.msra.mxu0 %v564
    %2536 = vmatprep.subr.bf16.mxu0 %v569
    %2537 = vmatpush1.bf16.msra.mxu0 %v568
    %2538 = vmatprep.subr.bf16.mxu0 %v573
    %2539 = vmatpush1.bf16.msra.mxu0 %v572
    %2540 = vmatprep.subr.bf16.mxu0 %v577
    %2541 = vmatpush1.bf16.msra.mxu0 %v576
    %2542 = vmatprep.subr.bf16.mxu0 %v581
    %2543 = vmatpush1.bf16.msra.mxu0 %v580
    %2544 = vmatprep.subr.bf16.mxu0 %v585
    %2545 = vmatpush1.bf16.msra.mxu0 %v584
    %2546 = vmatprep.subr.bf16.mxu0 %v589
    %2547 = vmatpush1.bf16.msra.mxu0 %v588
    %2548 = vmatprep.subr.bf16.mxu0 %v593
    %2549 = vmatpush1.bf16.msra.mxu0 %v592
    %2550 = vmatprep.subr.bf16.mxu0 0
    %2551 = vmatpush1.bf16.msra.mxu0 0
    %2552 = vmatprep.subr.bf16.mxu0 0
    %2553 = vmatpush1.bf16.msra.mxu0 0
    %2554 = vmatprep.subr.bf16.mxu0 0
    %2555 = vmatpush1.bf16.msra.mxu0 0
    %2556 = vmatprep.subr.bf16.mxu0 0
    %2557 = vmatpush1.bf16.msra.mxu0 0
    %2558 = vmatprep.subr.bf16.mxu0 0
    %2559 = vmatpush1.bf16.msra.mxu0 0
    %2560 = vmatprep.subr.bf16.mxu0 0
    %2561 = vmatpush1.bf16.msra.mxu0 0
    %2562 = vmatprep.subr.bf16.mxu0 0
    %2563 = vmatpush1.bf16.msra.mxu0 0
    %2564 = vmatprep.subr.bf16.mxu0 0
    %2565 = vmatpush1.bf16.msra.mxu0 0
    %2566 = vmatprep.mubr.bf16.mxu0 0
    %2567 = vmatmul.mubr.bf16.gmra.mrb[0].mxu0 %v2533
    %v2568 = vpop.f32.mrb[0].mxu0
    %v2569 = vadd.f32 0.0, %v2568
    %v2570 = vpop.f32.mrb[0].mxu0
    %v2571 = vadd.f32 0.0, %v2570
    %v2572 = vpop.f32.mrb[0].mxu0
    %v2573 = vpop.f32.mrb[0].mxu0
    %2574 = vdwg.mxu0
    %2575 = vmatprep.subr.bf16.mxu0 %v567
    %2576 = vmatpush1.bf16.msra.mxu0 %v566
    %2577 = vmatprep.subr.bf16.mxu0 %v571
    %2578 = vmatpush1.bf16.msra.mxu0 %v570
    %2579 = vmatprep.subr.bf16.mxu0 %v575
    %2580 = vmatpush1.bf16.msra.mxu0 %v574
    %2581 = vmatprep.subr.bf16.mxu0 %v579
    %2582 = vmatpush1.bf16.msra.mxu0 %v578
    %2583 = vmatprep.subr.bf16.mxu0 %v583
    %2584 = vmatpush1.bf16.msra.mxu0 %v582
    %2585 = vmatprep.subr.bf16.mxu0 %v587
    %2586 = vmatpush1.bf16.msra.mxu0 %v586
    %2587 = vmatprep.subr.bf16.mxu0 %v591
    %2588 = vmatpush1.bf16.msra.mxu0 %v590
    %2589 = vmatprep.subr.bf16.mxu0 %v595
    %2590 = vmatpush1.bf16.msra.mxu0 %v594
    %2591 = vmatprep.subr.bf16.mxu0 0
    %2592 = vmatpush1.bf16.msra.mxu0 0
    %2593 = vmatprep.subr.bf16.mxu0 0
    %2594 = vmatpush1.bf16.msra.mxu0 0
    %2595 = vmatprep.subr.bf16.mxu0 0
    %2596 = vmatpush1.bf16.msra.mxu0 0
    %2597 = vmatprep.subr.bf16.mxu0 0
    %2598 = vmatpush1.bf16.msra.mxu0 0
    %2599 = vmatprep.subr.bf16.mxu0 0
    %2600 = vmatpush1.bf16.msra.mxu0 0
    %2601 = vmatprep.subr.bf16.mxu0 0
    %2602 = vmatpush1.bf16.msra.mxu0 0
    %2603 = vmatprep.subr.bf16.mxu0 0
    %2604 = vmatpush1.bf16.msra.mxu0 0
    %2605 = vmatprep.subr.bf16.mxu0 0
    %2606 = vmatpush1.bf16.msra.mxu0 0
    %2607 = vmatprep.mubr.bf16.mxu0 0
    %2608 = vmatmul.mubr.bf16.gmra.mrb[0].mxu0 %v2533
    %v2609 = vpop.f32.mrb[0].mxu0
    %v2610 = vadd.f32 0.0, %v2609
    %v2611 = vpop.f32.mrb[0].mxu0
    %v2612 = vadd.f32 0.0, %v2611
    %v2613 = vpop.f32.mrb[0].mxu0
    %v2614 = vpop.f32.mrb[0].mxu0
    %2615 = vdwg.mxu0
    %2616 = vmatprep.subr.bf16.mxu0 %v807
    %2617 = vmatpush1.bf16.msra.mxu0 %v806
    %2618 = vmatprep.subr.bf16.mxu0 %v811
    %2619 = vmatpush1.bf16.msra.mxu0 %v810
    %2620 = vmatprep.subr.bf16.mxu0 %v815
    %2621 = vmatpush1.bf16.msra.mxu0 %v814
    %2622 = vmatprep.subr.bf16.mxu0 %v819
    %2623 = vmatpush1.bf16.msra.mxu0 %v818
    %2624 = vmatprep.subr.bf16.mxu0 %v823
    %2625 = vmatpush1.bf16.msra.mxu0 %v822
    %2626 = vmatprep.subr.bf16.mxu0 %v827
    %2627 = vmatpush1.bf16.msra.mxu0 %v826
    %2628 = vmatprep.subr.bf16.mxu0 %v831
    %2629 = vmatpush1.bf16.msra.mxu0 %v830
    %2630 = vmatprep.subr.bf16.mxu0 %v835
    %2631 = vmatpush1.bf16.msra.mxu0 %v834
    %2632 = vmatprep.subr.bf16.mxu0 0
    %2633 = vmatpush1.bf16.msra.mxu0 0
    %2634 = vmatprep.subr.bf16.mxu0 0
    %2635 = vmatpush1.bf16.msra.mxu0 0
    %2636 = vmatprep.subr.bf16.mxu0 0
    %2637 = vmatpush1.bf16.msra.mxu0 0
    %2638 = vmatprep.subr.bf16.mxu0 0
    %2639 = vmatpush1.bf16.msra.mxu0 0
    %2640 = vmatprep.subr.bf16.mxu0 0
    %2641 = vmatpush1.bf16.msra.mxu0 0
    %2642 = vmatprep.subr.bf16.mxu0 0
    %2643 = vmatpush1.bf16.msra.mxu0 0
    %2644 = vmatprep.subr.bf16.mxu0 0
    %2645 = vmatpush1.bf16.msra.mxu0 0
    %2646 = vmatprep.subr.bf16.mxu0 0
    %2647 = vmatpush1.bf16.msra.mxu0 0
    %2648 = vmatprep.mubr.bf16.mxu0 0
    %2649 = vmatmul.mubr.bf16.gmra.mrb[0].mxu0 %v2532
    %v2650 = vpop.f32.mrb[0].mxu0
    %v2651 = vadd.f32 %v2569, %v2650
    %v2652 = vpop.f32.mrb[0].mxu0
    %v2653 = vadd.f32 %v2571, %v2652
    %v2654 = vpop.f32.mrb[0].mxu0
    %v2655 = vpop.f32.mrb[0].mxu0
    %2656 = vdwg.mxu0
    %2657 = vmatprep.subr.bf16.mxu0 %v809
    %2658 = vmatpush1.bf16.msra.mxu0 %v808
    %2659 = vmatprep.subr.bf16.mxu0 %v813
    %2660 = vmatpush1.bf16.msra.mxu0 %v812
    %2661 = vmatprep.subr.bf16.mxu0 %v817
    %2662 = vmatpush1.bf16.msra.mxu0 %v816
    %2663 = vmatprep.subr.bf16.mxu0 %v821
    %2664 = vmatpush1.bf16.msra.mxu0 %v820
    %2665 = vmatprep.subr.bf16.mxu0 %v825
    %2666 = vmatpush1.bf16.msra.mxu0 %v824
    %2667 = vmatprep.subr.bf16.mxu0 %v829
    %2668 = vmatpush1.bf16.msra.mxu0 %v828
    %2669 = vmatprep.subr.bf16.mxu0 %v833
    %2670 = vmatpush1.bf16.msra.mxu0 %v832
    %2671 = vmatprep.subr.bf16.mxu0 %v837
    %2672 = vmatpush1.bf16.msra.mxu0 %v836
    %2673 = vmatprep.subr.bf16.mxu0 0
    %2674 = vmatpush1.bf16.msra.mxu0 0
    %2675 = vmatprep.subr.bf16.mxu0 0
    %2676 = vmatpush1.bf16.msra.mxu0 0
    %2677 = vmatprep.subr.bf16.mxu0 0
    %2678 = vmatpush1.bf16.msra.mxu0 0
    %2679 = vmatprep.subr.bf16.mxu0 0
    %2680 = vmatpush1.bf16.msra.mxu0 0
    %2681 = vmatprep.subr.bf16.mxu0 0
    %2682 = vmatpush1.bf16.msra.mxu0 0
    %2683 = vmatprep.subr.bf16.mxu0 0
    %2684 = vmatpush1.bf16.msra.mxu0 0
    %2685 = vmatprep.subr.bf16.mxu0 0
    %2686 = vmatpush1.bf16.msra.mxu0 0
    %2687 = vmatprep.subr.bf16.mxu0 0
    %2688 = vmatpush1.bf16.msra.mxu0 0
    %2689 = vmatprep.mubr.bf16.mxu0 0
    %2690 = vmatmul.mubr.bf16.gmra.mrb[0].mxu0 %v2532
    %v2691 = vpop.f32.mrb[0].mxu0
    %v2692 = vadd.f32 %v2610, %v2691
    %v2693 = vpop.f32.mrb[0].mxu0
    %v2694 = vadd.f32 %v2612, %v2693
    %v2695 = vpop.f32.mrb[0].mxu0
    %v2696 = vpop.f32.mrb[0].mxu0
    %2697 = vdwg.mxu0
    %v2698 = vadd.f32 %v2651, %v185
    %v2699 = vadd.f32 %v2653, %v189
    %v2700 = vadd.f32 %v2692, %v193
    %v2701 = vadd.f32 %v2694, %v197
    %v2702 = vtanh.pop %v2698
    %v2703 = vtanh.pop %v2699
    %v2704 = vtanh.pop %v2700
    %v2705 = vtanh.pop %v2701
    %v2706 = vmul.f32 %v2702, 0.5
    %v2707 = vmul.f32 %v2703, 0.5
    %v2708 = vmul.f32 %v2704, 0.5
    %v2709 = vadd.f32 %v2706, 0.5
    %v2710 = vadd.f32 %v2707, 0.5
    %v2711 = vadd.f32 %v2708, 0.5
    %v2712 = vmul.f32 %v2710, %v2423
    %v2713 = vmul.f32 %v2709, %v2705
    %v2714 = vadd.f32 %v2712, %v2713
    %v2715 = vtanh.pop %v2714
    %v2716 = vmul.f32 %v2711, %v2715
    %s2717 = scalar_lea.vmem [#allocation3], 224
    %v2718 = vld [vmem:[%s2717] sm:$0xff]
    %v2719 = vld [vmem:[%s2717 + $0x8] sm:$0xff]
    %v2720 = vld [vmem:[%s2717 + $0x10] sm:$0xff]
    %v2721 = vld [vmem:[%s2717 + $0x18] sm:$0xff]
    %2722 = vmatprep.subr.bf16.mxu0 %v303
    %2723 = vmatpush1.bf16.msra.mxu0 %v302
    %2724 = vmatprep.subr.bf16.mxu0 %v307
    %2725 = vmatpush1.bf16.msra.mxu0 %v306
    %2726 = vmatprep.subr.bf16.mxu0 %v311
    %2727 = vmatpush1.bf16.msra.mxu0 %v310
    %2728 = vmatprep.subr.bf16.mxu0 %v315
    %2729 = vmatpush1.bf16.msra.mxu0 %v314
    %2730 = vmatprep.subr.bf16.mxu0 %v319
    %2731 = vmatpush1.bf16.msra.mxu0 %v318
    %2732 = vmatprep.subr.bf16.mxu0 %v323
    %2733 = vmatpush1.bf16.msra.mxu0 %v322
    %2734 = vmatprep.subr.bf16.mxu0 %v327
    %2735 = vmatpush1.bf16.msra.mxu0 %v326
    %2736 = vmatprep.subr.bf16.mxu0 %v331
    %2737 = vmatpush1.bf16.msra.mxu0 %v330
    %2738 = vmatprep.subr.bf16.mxu0 0
    %2739 = vmatpush1.bf16.msra.mxu0 0
    %2740 = vmatprep.subr.bf16.mxu0 0
    %2741 = vmatpush1.bf16.msra.mxu0 0
    %2742 = vmatprep.subr.bf16.mxu0 0
    %2743 = vmatpush1.bf16.msra.mxu0 0
    %2744 = vmatprep.subr.bf16.mxu0 0
    %2745 = vmatpush1.bf16.msra.mxu0 0
    %2746 = vmatprep.subr.bf16.mxu0 0
    %2747 = vmatpush1.bf16.msra.mxu0 0
    %2748 = vmatprep.subr.bf16.mxu0 0
    %2749 = vmatpush1.bf16.msra.mxu0 0
    %2750 = vmatprep.subr.bf16.mxu0 0
    %2751 = vmatpush1.bf16.msra.mxu0 0
    %2752 = vmatprep.subr.bf16.mxu0 0
    %2753 = vmatpush1.bf16.msra.mxu0 0
    %2754 = vmatprep.mubr.bf16.mxu0 0
    %2755 = vmatmul.mubr.bf16.gmra.mrb[0].mxu0 %v2532
    %v2756 = vpop.f32.mrb[0].mxu0
    %v2757 = vadd.f32 0.0, %v2756
    %v2758 = vpop.f32.mrb[0].mxu0
    %v2759 = vadd.f32 0.0, %v2758
    %v2760 = vpop.f32.mrb[0].mxu0
    %v2761 = vpop.f32.mrb[0].mxu0
    %2762 = vdwg.mxu0
    %2763 = vmatprep.subr.bf16.mxu0 %v305
    %2764 = vmatpush1.bf16.msra.mxu0 %v304
    %2765 = vmatprep.subr.bf16.mxu0 %v309
    %2766 = vmatpush1.bf16.msra.mxu0 %v308
    %2767 = vmatprep.subr.bf16.mxu0 %v313
    %2768 = vmatpush1.bf16.msra.mxu0 %v312
    %2769 = vmatprep.subr.bf16.mxu0 %v317
    %2770 = vmatpush1.bf16.msra.mxu0 %v316
    %2771 = vmatprep.subr.bf16.mxu0 %v321
    %2772 = vmatpush1.bf16.msra.mxu0 %v320
    %2773 = vmatprep.subr.bf16.mxu0 %v325
    %2774 = vmatpush1.bf16.msra.mxu0 %v324
    %2775 = vmatprep.subr.bf16.mxu0 %v329
    %2776 = vmatpush1.bf16.msra.mxu0 %v328
    %2777 = vmatprep.subr.bf16.mxu0 %v333
    %2778 = vmatpush1.bf16.msra.mxu0 %v332
    %2779 = vmatprep.subr.bf16.mxu0 0
    %2780 = vmatpush1.bf16.msra.mxu0 0
    %2781 = vmatprep.subr.bf16.mxu0 0
    %2782 = vmatpush1.bf16.msra.mxu0 0
    %2783 = vmatprep.subr.bf16.mxu0 0
    %2784 = vmatpush1.bf16.msra.mxu0 0
    %2785 = vmatprep.subr.bf16.mxu0 0
    %2786 = vmatpush1.bf16.msra.mxu0 0
    %2787 = vmatprep.subr.bf16.mxu0 0
    %2788 = vmatpush1.bf16.msra.mxu0 0
    %2789 = vmatprep.subr.bf16.mxu0 0
    %2790 = vmatpush1.bf16.msra.mxu0 0
    %2791 = vmatprep.subr.bf16.mxu0 0
    %2792 = vmatpush1.bf16.msra.mxu0 0
    %2793 = vmatprep.subr.bf16.mxu0 0
    %2794 = vmatpush1.bf16.msra.mxu0 0
    %2795 = vmatprep.mubr.bf16.mxu0 0
    %2796 = vmatmul.mubr.bf16.gmra.mrb[0].mxu0 %v2532
    %v2797 = vpop.f32.mrb[0].mxu0
    %v2798 = vadd.f32 0.0, %v2797
    %v2799 = vpop.f32.mrb[0].mxu0
    %v2800 = vadd.f32 0.0, %v2799
    %v2801 = vpop.f32.mrb[0].mxu0
    %v2802 = vpop.f32.mrb[0].mxu0
    %2803 = vdwg.mxu0
    %v2804 = vadd.f32 %v2718, %v2757
    %v2805 = vadd.f32 %v2719, %v2759
    %v2806 = vadd.f32 %v2720, %v2798
    %v2807 = vadd.f32 %v2721, %v2800
    %v2808 = vtanh.pop %v2804
    %v2809 = vtanh.pop %v2805
    %v2810 = vtanh.pop %v2806
    %v2811 = vtanh.pop %v2807
    %v2812 = vmul.f32 %v2808, 0.5
    %v2813 = vmul.f32 %v2809, 0.5
    %v2814 = vmul.f32 %v2810, 0.5
    %v2815 = vadd.f32 %v2812, 0.5
    %v2816 = vadd.f32 %v2813, 0.5
    %v2817 = vadd.f32 %v2814, 0.5
    %v2818 = vmul.f32 %v2816, %v2529
    %v2819 = vmul.f32 %v2815, %v2811
    %v2820 = vadd.f32 %v2818, %v2819
    %v2821 = vtanh.pop %v2820
    %v2822 = vmul.f32 %v2817, %v2821
    %v2823 = vpack.c.bf16 %v2822, %v2822
    %v2824 = vpack.c.bf16 %v2716, %v2716
    %2825 = vmatprep.subr.bf16.mxu0 %v565
    %2826 = vmatpush1.bf16.msra.mxu0 %v564
    %2827 = vmatprep.subr.bf16.mxu0 %v569
    %2828 = vmatpush1.bf16.msra.mxu0 %v568
    %2829 = vmatprep.subr.bf16.mxu0 %v573
    %2830 = vmatpush1.bf16.msra.mxu0 %v572
    %2831 = vmatprep.subr.bf16.mxu0 %v577
    %2832 = vmatpush1.bf16.msra.mxu0 %v576
    %2833 = vmatprep.subr.bf16.mxu0 %v581
    %2834 = vmatpush1.bf16.msra.mxu0 %v580
    %2835 = vmatprep.subr.bf16.mxu0 %v585
    %2836 = vmatpush1.bf16.msra.mxu0 %v584
    %2837 = vmatprep.subr.bf16.mxu0 %v589
    %2838 = vmatpush1.bf16.msra.mxu0 %v588
    %2839 = vmatprep.subr.bf16.mxu0 %v593
    %2840 = vmatpush1.bf16.msra.mxu0 %v592
    %2841 = vmatprep.subr.bf16.mxu0 0
    %2842 = vmatpush1.bf16.msra.mxu0 0
    %2843 = vmatprep.subr.bf16.mxu0 0
    %2844 = vmatpush1.bf16.msra.mxu0 0
    %2845 = vmatprep.subr.bf16.mxu0 0
    %2846 = vmatpush1.bf16.msra.mxu0 0
    %2847 = vmatprep.subr.bf16.mxu0 0
    %2848 = vmatpush1.bf16.msra.mxu0 0
    %2849 = vmatprep.subr.bf16.mxu0 0
    %2850 = vmatpush1.bf16.msra.mxu0 0
    %2851 = vmatprep.subr.bf16.mxu0 0
    %2852 = vmatpush1.bf16.msra.mxu0 0
    %2853 = vmatprep.subr.bf16.mxu0 0
    %2854 = vmatpush1.bf16.msra.mxu0 0
    %2855 = vmatprep.subr.bf16.mxu0 0
    %2856 = vmatpush1.bf16.msra.mxu0 0
    %2857 = vmatprep.mubr.bf16.mxu0 0
    %2858 = vmatmul.mubr.bf16.gmra.mrb[0].mxu0 %v2824
    %v2859 = vpop.f32.mrb[0].mxu0
    %v2860 = vadd.f32 0.0, %v2859
    %v2861 = vpop.f32.mrb[0].mxu0
    %v2862 = vadd.f32 0.0, %v2861
    %v2863 = vpop.f32.mrb[0].mxu0
    %v2864 = vpop.f32.mrb[0].mxu0
    %2865 = vdwg.mxu0
    %2866 = vmatprep.subr.bf16.mxu0 %v567
    %2867 = vmatpush1.bf16.msra.mxu0 %v566
    %2868 = vmatprep.subr.bf16.mxu0 %v571
    %2869 = vmatpush1.bf16.msra.mxu0 %v570
    %2870 = vmatprep.subr.bf16.mxu0 %v575
    %2871 = vmatpush1.bf16.msra.mxu0 %v574
    %2872 = vmatprep.subr.bf16.mxu0 %v579
    %2873 = vmatpush1.bf16.msra.mxu0 %v578
    %2874 = vmatprep.subr.bf16.mxu0 %v583
    %2875 = vmatpush1.bf16.msra.mxu0 %v582
    %2876 = vmatprep.subr.bf16.mxu0 %v587
    %2877 = vmatpush1.bf16.msra.mxu0 %v586
    %2878 = vmatprep.subr.bf16.mxu0 %v591
    %2879 = vmatpush1.bf16.msra.mxu0 %v590
    %2880 = vmatprep.subr.bf16.mxu0 %v595
    %2881 = vmatpush1.bf16.msra.mxu0 %v594
    %2882 = vmatprep.subr.bf16.mxu0 0
    %2883 = vmatpush1.bf16.msra.mxu0 0
    %2884 = vmatprep.subr.bf16.mxu0 0
    %2885 = vmatpush1.bf16.msra.mxu0 0
    %2886 = vmatprep.subr.bf16.mxu0 0
    %2887 = vmatpush1.bf16.msra.mxu0 0
    %2888 = vmatprep.subr.bf16.mxu0 0
    %2889 = vmatpush1.bf16.msra.mxu0 0
    %2890 = vmatprep.subr.bf16.mxu0 0
    %2891 = vmatpush1.bf16.msra.mxu0 0
    %2892 = vmatprep.subr.bf16.mxu0 0
    %2893 = vmatpush1.bf16.msra.mxu0 0
    %2894 = vmatprep.subr.bf16.mxu0 0
    %2895 = vmatpush1.bf16.msra.mxu0 0
    %2896 = vmatprep.subr.bf16.mxu0 0
    %2897 = vmatpush1.bf16.msra.mxu0 0
    %2898 = vmatprep.mubr.bf16.mxu0 0
    %2899 = vmatmul.mubr.bf16.gmra.mrb[0].mxu0 %v2824
    %v2900 = vpop.f32.mrb[0].mxu0
    %v2901 = vadd.f32 0.0, %v2900
    %v2902 = vpop.f32.mrb[0].mxu0
    %v2903 = vadd.f32 0.0, %v2902
    %v2904 = vpop.f32.mrb[0].mxu0
    %v2905 = vpop.f32.mrb[0].mxu0
    %2906 = vdwg.mxu0
    %2907 = vmatprep.subr.bf16.mxu0 %v807
    %2908 = vmatpush1.bf16.msra.mxu0 %v806
    %2909 = vmatprep.subr.bf16.mxu0 %v811
    %2910 = vmatpush1.bf16.msra.mxu0 %v810
    %2911 = vmatprep.subr.bf16.mxu0 %v815
    %2912 = vmatpush1.bf16.msra.mxu0 %v814
    %2913 = vmatprep.subr.bf16.mxu0 %v819
    %2914 = vmatpush1.bf16.msra.mxu0 %v818
    %2915 = vmatprep.subr.bf16.mxu0 %v823
    %2916 = vmatpush1.bf16.msra.mxu0 %v822
    %2917 = vmatprep.subr.bf16.mxu0 %v827
    %2918 = vmatpush1.bf16.msra.mxu0 %v826
    %2919 = vmatprep.subr.bf16.mxu0 %v831
    %2920 = vmatpush1.bf16.msra.mxu0 %v830
    %2921 = vmatprep.subr.bf16.mxu0 %v835
    %2922 = vmatpush1.bf16.msra.mxu0 %v834
    %2923 = vmatprep.subr.bf16.mxu0 0
    %2924 = vmatpush1.bf16.msra.mxu0 0
    %2925 = vmatprep.subr.bf16.mxu0 0
    %2926 = vmatpush1.bf16.msra.mxu0 0
    %2927 = vmatprep.subr.bf16.mxu0 0
    %2928 = vmatpush1.bf16.msra.mxu0 0
    %2929 = vmatprep.subr.bf16.mxu0 0
    %2930 = vmatpush1.bf16.msra.mxu0 0
    %2931 = vmatprep.subr.bf16.mxu0 0
    %2932 = vmatpush1.bf16.msra.mxu0 0
    %2933 = vmatprep.subr.bf16.mxu0 0
    %2934 = vmatpush1.bf16.msra.mxu0 0
    %2935 = vmatprep.subr.bf16.mxu0 0
    %2936 = vmatpush1.bf16.msra.mxu0 0
    %2937 = vmatprep.subr.bf16.mxu0 0
    %2938 = vmatpush1.bf16.msra.mxu0 0
    %2939 = vmatprep.mubr.bf16.mxu0 0
    %2940 = vmatmul.mubr.bf16.gmra.mrb[0].mxu0 %v2823
    %v2941 = vpop.f32.mrb[0].mxu0
    %v2942 = vadd.f32 %v2860, %v2941
    %v2943 = vpop.f32.mrb[0].mxu0
    %v2944 = vadd.f32 %v2862, %v2943
    %v2945 = vpop.f32.mrb[0].mxu0
    %v2946 = vpop.f32.mrb[0].mxu0
    %2947 = vdwg.mxu0
    %2948 = vmatprep.subr.bf16.mxu0 %v809
    %2949 = vmatpush1.bf16.msra.mxu0 %v808
    %2950 = vmatprep.subr.bf16.mxu0 %v813
    %2951 = vmatpush1.bf16.msra.mxu0 %v812
    %2952 = vmatprep.subr.bf16.mxu0 %v817
    %2953 = vmatpush1.bf16.msra.mxu0 %v816
    %2954 = vmatprep.subr.bf16.mxu0 %v821
    %2955 = vmatpush1.bf16.msra.mxu0 %v820
    %2956 = vmatprep.subr.bf16.mxu0 %v825
    %2957 = vmatpush1.bf16.msra.mxu0 %v824
    %2958 = vmatprep.subr.bf16.mxu0 %v829
    %2959 = vmatpush1.bf16.msra.mxu0 %v828
    %2960 = vmatprep.subr.bf16.mxu0 %v833
    %2961 = vmatpush1.bf16.msra.mxu0 %v832
    %2962 = vmatprep.subr.bf16.mxu0 %v837
    %2963 = vmatpush1.bf16.msra.mxu0 %v836
    %2964 = vmatprep.subr.bf16.mxu0 0
    %2965 = vmatpush1.bf16.msra.mxu0 0
    %2966 = vmatprep.subr.bf16.mxu0 0
    %2967 = vmatpush1.bf16.msra.mxu0 0
    %2968 = vmatprep.subr.bf16.mxu0 0
    %2969 = vmatpush1.bf16.msra.mxu0 0
    %2970 = vmatprep.subr.bf16.mxu0 0
    %2971 = vmatpush1.bf16.msra.mxu0 0
    %2972 = vmatprep.subr.bf16.mxu0 0
    %2973 = vmatpush1.bf16.msra.mxu0 0
    %2974 = vmatprep.subr.bf16.mxu0 0
    %2975 = vmatpush1.bf16.msra.mxu0 0
    %2976 = vmatprep.subr.bf16.mxu0 0
    %2977 = vmatpush1.bf16.msra.mxu0 0
    %2978 = vmatprep.subr.bf16.mxu0 0
    %2979 = vmatpush1.bf16.msra.mxu0 0
    %2980 = vmatprep.mubr.bf16.mxu0 0
    %2981 = vmatmul.mubr.bf16.gmra.mrb[0].mxu0 %v2823
    %v2982 = vpop.f32.mrb[0].mxu0
    %v2983 = vadd.f32 %v2901, %v2982
    %v2984 = vpop.f32.mrb[0].mxu0
    %v2985 = vadd.f32 %v2903, %v2984
    %v2986 = vpop.f32.mrb[0].mxu0
    %v2987 = vpop.f32.mrb[0].mxu0
    %2988 = vdwg.mxu0
    %v2989 = vadd.f32 %v2942, %v185
    %v2990 = vadd.f32 %v2944, %v189
    %v2991 = vadd.f32 %v2983, %v193
    %v2992 = vadd.f32 %v2985, %v197
    %v2993 = vtanh.pop %v2989
    %v2994 = vtanh.pop %v2990
    %v2995 = vtanh.pop %v2991
    %v2996 = vtanh.pop %v2992
    %v2997 = vmul.f32 %v2993, 0.5
    %v2998 = vmul.f32 %v2994, 0.5
    %v2999 = vmul.f32 %v2995, 0.5
    %v3000 = vadd.f32 %v2997, 0.5
    %v3001 = vadd.f32 %v2998, 0.5
    %v3002 = vadd.f32 %v2999, 0.5
    %v3003 = vmul.f32 %v3001, %v2714
    %v3004 = vmul.f32 %v3000, %v2996
    %v3005 = vadd.f32 %v3003, %v3004
    %v3006 = vtanh.pop %v3005
    %v3007 = vmul.f32 %v3002, %v3006
    %v3008 = vpack.c.bf16 %v3007, %v3007
    %v3009 = vld [vmem:[%s5] sm:$0xf]
    %v3010 = vld [vmem:[%s5 + $0x4] sm:$0xf]
    %v3011 = vld [vmem:[%s5 + $0x8] sm:$0xf]
    %v3012 = vld [vmem:[%s5 + $0xc] sm:$0xf]
    %v3013 = vld [vmem:[%s5 + $0x10] sm:$0xf]
    %v3014 = vld [vmem:[%s5 + $0x14] sm:$0xf]
    %v3015 = vld [vmem:[%s5 + $0x18] sm:$0xf]
    %v3016 = vld [vmem:[%s5 + $0x1c] sm:$0xf]
    %v3017 = vld [vmem:[%s5 + $0x20] sm:$0xf]
    %v3018 = vld [vmem:[%s5 + $0x24] sm:$0xf]
    %v3019 = vld [vmem:[%s5 + $0x28] sm:$0xf]
    %v3020 = vld [vmem:[%s5 + $0x2c] sm:$0xf]
    %v3021 = vld [vmem:[%s5 + $0x30] sm:$0xf]
    %v3022 = vld [vmem:[%s5 + $0x34] sm:$0xf]
    %v3023 = vld [vmem:[%s5 + $0x38] sm:$0xf]
    %v3024 = vld [vmem:[%s5 + $0x3c] sm:$0xf]
    %v3025 = vld [vmem:[#allocation2] sm:$0x1]
    %v3027 = vlaneseq
    %v3028 = vshrl.u32 %v3027, 7
    %v3029 = vsub.s32 0, %v3028
    %v3030 = vrot.slane %v3025, %v3029
    %v3048 = vunpack.c.l.b16 %v3009
    %v3049 = vunpack.c.l.b16 %v3010
    %v3050 = vunpack.c.l.b16 %v3011
    %v3051 = vunpack.c.l.b16 %v3012
    %v3052 = vunpack.c.l.b16 %v3013
    %v3053 = vunpack.c.l.b16 %v3014
    %v3054 = vunpack.c.l.b16 %v3015
    %v3055 = vunpack.c.l.b16 %v3016
    %v3056 = vunpack.c.l.b16 %v3017
    %v3057 = vunpack.c.l.b16 %v3018
    %v3058 = vunpack.c.l.b16 %v3019
    %v3059 = vunpack.c.l.b16 %v3020
    %v3060 = vunpack.c.l.b16 %v3021
    %v3061 = vunpack.c.l.b16 %v3022
    %v3062 = vunpack.c.l.b16 %v3023
    %v3063 = vunpack.c.l.b16 %v3024
    %v3064 = vpack.c.b16 %v3049, %v3048
    %v3065 = vpack.c.b16 %v3051, %v3050
    %v3066 = vpack.c.b16 %v3053, %v3052
    %v3067 = vpack.c.b16 %v3055, %v3054
    %v3068 = vpack.c.b16 %v3057, %v3056
    %v3069 = vpack.c.b16 %v3059, %v3058
    %v3070 = vpack.c.b16 %v3061, %v3060
    %v3071 = vpack.c.b16 %v3063, %v3062
    %3080 = vmatprep.subr.bf16.mxu0 0
    %3081 = vmatpush1.bf16.msra.mxu0 %v3064
    %3082 = vmatprep.subr.bf16.mxu0 0
    %3083 = vmatpush1.bf16.msra.mxu0 %v3065
    %3084 = vmatprep.subr.bf16.mxu0 0
    %3085 = vmatpush1.bf16.msra.mxu0 %v3066
    %3086 = vmatprep.subr.bf16.mxu0 0
    %3087 = vmatpush1.bf16.msra.mxu0 %v3067
    %3088 = vmatprep.subr.bf16.mxu0 0
    %3089 = vmatpush1.bf16.msra.mxu0 %v3068
    %3090 = vmatprep.subr.bf16.mxu0 0
    %3091 = vmatpush1.bf16.msra.mxu0 %v3069
    %3092 = vmatprep.subr.bf16.mxu0 0
    %3093 = vmatpush1.bf16.msra.mxu0 %v3070
    %3094 = vmatprep.subr.bf16.mxu0 0
    %3095 = vmatpush1.bf16.msra.mxu0 %v3071
    %3096 = vmatprep.subr.bf16.mxu0 0
    %3097 = vmatpush1.bf16.msra.mxu0 0
    %3098 = vmatprep.subr.bf16.mxu0 0
    %3099 = vmatpush1.bf16.msra.mxu0 0
    %3100 = vmatprep.subr.bf16.mxu0 0
    %3101 = vmatpush1.bf16.msra.mxu0 0
    %3102 = vmatprep.subr.bf16.mxu0 0
    %3103 = vmatpush1.bf16.msra.mxu0 0
    %3104 = vmatprep.subr.bf16.mxu0 0
    %3105 = vmatpush1.bf16.msra.mxu0 0
    %3106 = vmatprep.subr.bf16.mxu0 0
    %3107 = vmatpush1.bf16.msra.mxu0 0
    %3108 = vmatprep.subr.bf16.mxu0 0
    %3109 = vmatpush1.bf16.msra.mxu0 0
    %3110 = vmatprep.subr.bf16.mxu0 0
    %3111 = vmatpush1.bf16.msra.mxu0 0
    %3112 = vmatprep.mubr.bf16.mxu0 0
    %3113 = vmatmul.mubr.bf16.gmra.mrb[0].mxu0 %v3008
    %v3114 = vpop.f32.mrb[0].mxu0
    %v3115 = vadd.f32 %v3030, %v3114
    %v3116 = vpop.f32.mrb[0].mxu0
    %v3117 = vpop.f32.mrb[0].mxu0
    %v3118 = vpop.f32.mrb[0].mxu0
    %3119 = vdwg.mxu0
    %vm3120 = vcmask 7168
    %3121 = vst.msk [vmem:[%s7] sm:$0xff] %vm3120, %v3115
    // Predicated region
    $region46: #{tpu_custom_call.1} parent=1 // pred_check
      _
    $region47: #{tpu_custom_call.1} parent=1 // pred_check_branch
      %3123 = sbr.rel (0) target = $region49
    $region48: #{tpu_custom_call.1} parent=1 // pred_region
      _
    $region49: #{tpu_custom_call.1} parent=1 // pred_fallthru
      _
    // Predicated region
    $region50: #{tpu_custom_call.1} parent=1 // pred_check
      _
    $region51: #{tpu_custom_call.1} parent=1 // pred_check_branch
      %3125 = sbr.rel (0) target = $region53
    $region52: #{tpu_custom_call.1} parent=1 // pred_region
      _
    $region53: #{tpu_custom_call.1} parent=1 // pred_fallthru
      _
    %3126 = vsyncpa [#allocation4], 1
    %3127 = vsyncpa [#allocation6], 1
    %3128 = vsyncpa [#allocation9], 1

</llo_original>
